<compile_context>
chip_gen: v7x
topology: tpu7x:2x2x1
jax: 0.10.0
libtpu: 0.0.40
codegen_flags: <defaults>
</compile_context>

<pallas_src>
import functools
import math

import numpy as np
import jax
import jax.numpy as jnp
from jax.experimental import pallas as pl
from jax.experimental.pallas import tpu as pltpu


CFG = dict(
    in_channels=1,
    camera_num=1,
    token_dim=32,
    activation="relu",
    state_dim=16,
    hidden_dims=[32, 32],
    add_pos_emb=True,
    visual_dim=64 * 64,            # camera_num * in_channels * 64 * 64
    add_ln=False,
    max_pool=True,
    token_norm=True,
    transformer_params=[(2, 64)],  # (n_head, dim_feedforward)
    recurrent=dict(hidden_size=64, num_layers=1),
)

_PER_MODAL_TOKENS = 16             # NatureEncoder on 64x64 -> 4x4 feature map
_SPAD = 24                         # tokens per batch padded 17 -> 24 (8-aligned blocks)
_H0_COL = 64                       # lane offset of h0 inside the (8,128) state/h0 slab


# ---------------------------------------------------------------------------
# Host-side parameter slab packer (every segment starts at an 8-aligned row)
# ---------------------------------------------------------------------------
class _SlabPacker:
    def __init__(self, width):
        self.width = width
        self.parts, self.offsets, self.shapes, self.cur = [], {}, {}, 0

    def add(self, name, arr):
        arr = np.asarray(arr, np.float32)
        assert arr.ndim == 2 and arr.shape[1] <= self.width, (name, arr.shape)
        r, c = arr.shape
        rp = -(-r // 8) * 8
        buf = np.zeros((rp, self.width), np.float32)
        buf[:r, :c] = arr
        self.offsets[name] = self.cur
        self.shapes[name] = (r, c)
        self.parts.append(buf)
        self.cur += rp

    def finish(self):
        return np.concatenate(self.parts, axis=0), self.offsets, self.shapes


# ---------------------------------------------------------------------------
# The single fused Pallas kernel
# ---------------------------------------------------------------------------
def _fused_forward_kernel(patches_ref, sh_ref, w64_ref, w192_ref, out_ref, *,
                          B, SPAD, P, D, heads, n_layers, n_mlp, gru_hidden,
                          state_dim, token_norm, max_pool,
                          off64, shp64, off192, shp192):
    f32 = jnp.float32
    relu = lambda t: jnp.maximum(t, 0.0)
    dot = lambda a, b: jnp.dot(a, b, preferred_element_type=f32)

    def rd(name):
        # static-offset read out of one of the two packed parameter slabs
        if name in off64:
            o, (r, c) = off64[name], shp64[name]
            return w64_ref[o:o + r, 0:c]
        o, (r, c) = off192[name], shp192[name]
        return w192_ref[o:o + r, 0:c]

    def ln(v, g, b, eps=1e-5):
        mu = jnp.mean(v, axis=-1, keepdims=True)
        cz = v - mu
        var = jnp.mean(cz * cz, axis=-1, keepdims=True)
        return cz * jax.lax.rsqrt(var + eps) * g + b

    n36 = B * 36                                  # rows of the 6x6 conv2 grid per ki block

    # ---- conv1 (8x8/4): ONE block-diagonal (over kj) GEMM on the patch matrix ----
    y1 = relu(dot(patches_ref[...], rd("conv1_bd")) + rd("conv1_b"))    # (4*B*36, 128)

    # ---- conv2 (4x4/2): 4 aligned row-block GEMMs, accumulated ----
    y2 = rd("conv2_b")
    for ki in range(4):
        y2 = y2 + dot(y1[ki * n36:(ki + 1) * n36, :], rd(f"conv2_k{ki}"))
    y2 = relu(y2)                                                       # (B*36, 64), rows (b,h2,w2)

    # ---- conv3 (3x3/1): 9 XLU sublane rolls + 9 GEMMs over the full 6x6 grid ----
    y3 = rd("conv3_b")
    for ki in range(3):
        for kj in range(3):
            k = ki * 6 + kj
            src = y2 if k == 0 else pltpu.roll(y2, n36 - k, axis=0)     # row i -> y2[i + k]
            y3 = y3 + dot(src, rd(f"conv3_k{ki}{kj}"))
    y3 = relu(y3)                                # (B*36, 64); only the 4x4 interior rows are valid

    # 1x1 up-conv (weight zero-padded to D lanes so tokens land in lanes [0, token_dim))
    vis = dot(y3, rd("up_w")) + rd("up_b")                              # (B*36, D)

    # ---- state path: MLPBase + RLProjection on the 8 padded rows ----
    s = sh_ref[:, 0:state_dim]                                          # (8, state_dim)
    for li in range(n_mlp):
        s = relu(dot(s, rd(f"mlp{li}_w")) + rd(f"mlp{li}_b"))
    s = relu(dot(s, rd("sp_w")) + rd("sp_b"))                           # (8, D)

    # ---- padded, 8-aligned token matrix via constant selection GEMMs + pos-emb table ----
    x = dot(rd("asm_v"), vis) + dot(rd("asm_s"), s) + rd("pos_tab")     # (B*SPAD, D)
    if token_norm:
        x = ln(x, rd("tok_g"), rd("tok_b"))

    # ---- nn.TransformerEncoderLayer(s): batched attention, block-diag mask ----
    amask = rd("attn_mask")                                             # (B*SPAD, B*SPAD)
    for li in range(n_layers):
        H = heads[li]
        Dh = D // H
        scale = 1.0 / math.sqrt(Dh)
        qkv = dot(x, rd(f"l{li}_wqkv")) + rd(f"l{li}_bqkv")             # (B*SPAD, 3D)
        houts = []
        for h in range(H):
            q = qkv[:, h * Dh:(h + 1) * Dh] * scale
            kk = qkv[:, D + h * Dh:D + (h + 1) * Dh]
            vv = qkv[:, 2 * D + h * Dh:2 * D + (h + 1) * Dh]
            sc = jax.lax.dot_general(q, kk, (((1,), (1,)), ((), ())),
                                     preferred_element_type=f32) + amask
            sc = sc - jnp.max(sc, axis=-1, keepdims=True)
            pr = jnp.exp(sc)
            pr = pr * pl.reciprocal(jnp.sum(pr, axis=-1, keepdims=True), approx=True)
            houts.append(dot(pr, vv))
        attn = jnp.concatenate(houts, axis=1)                           # (B*SPAD, D)
        x = ln(x + dot(attn, rd(f"l{li}_wo")) + rd(f"l{li}_bo"),
               rd(f"l{li}_ln1g"), rd(f"l{li}_ln1b"))
        ff = dot(relu(dot(x, rd(f"l{li}_wf1")) + rd(f"l{li}_bf1")),
                 rd(f"l{li}_wf2")) + rd(f"l{li}_bf2")
        x = ln(x + ff, rd(f"l{li}_ln2g"), rd(f"l{li}_ln2b"))

    # ---- [state token | pooled visual tokens] per batch (all slices 8-aligned) ----
    valid = rd("pool_mask")                                             # 1.0 on visual-token rows
    if max_pool:
        xp = x + (valid - 1.0) * 1e30
    else:
        xp = x * valid
    feats = []
    for b in range(B):
        r0 = b * SPAD
        st = x[r0:r0 + 1, :]
        blk = xp[r0:r0 + SPAD, :]
        pooled = (jnp.max(blk, axis=0, keepdims=True) if max_pool
                  else jnp.sum(blk, axis=0, keepdims=True) * (1.0 / P))
        feats.append(jnp.concatenate([st, pooled], axis=1))
    feat = jnp.concatenate(feats, axis=0)                               # (B, 2D)

    # ---- single-step GRU cell (torch gate order [r | z | n]) ----
    h0 = sh_ref[0:B, _H0_COL:_H0_COL + gru_hidden]
    gi = dot(feat, rd("gru_wih")) + rd("gru_bih")
    gh = dot(h0, rd("gru_whh")) + rd("gru_bhh")
    Hg = gru_hidden
    r = jax.nn.sigmoid(gi[:, 0:Hg] + gh[:, 0:Hg])
    z = jax.nn.sigmoid(gi[:, Hg:2 * Hg] + gh[:, Hg:2 * Hg])
    n = jnp.tanh(gi[:, 2 * Hg:3 * Hg] + r * gh[:, 2 * Hg:3 * Hg])
    out_ref[...] = (1.0 - z) * n + z * h0


# ---------------------------------------------------------------------------
# Plain-JAX patch matrix: conv1 evaluated at exactly the positions conv2 reads.
# Rows: (ki, b, h2, w2); lanes: (kj, r, s).  (Kept in the wrapper — it is a pure
# layout op XLA handles well; everything downstream is in the fused kernel.)
# ---------------------------------------------------------------------------
def _conv_patch_matrix(img):
    B = img.shape[0]
    ki_blocks = []
    for ki in range(4):
        kj_blocks = []
        for kj in range(4):
            blk = img[:, 4 * ki:4 * ki + 48, 4 * kj:4 * kj + 48]
            blk = blk.reshape(B, 6, 8, 6, 8).transpose(0, 1, 3, 2, 4)   # (b,h2,w2,r,s)
            kj_blocks.append(blk.reshape(B * 36, 64))
        ki_blocks.append(jnp.concatenate(kj_blocks, axis=1))            # (B*36, 256)
    return jnp.concatenate(ki_blocks, axis=0)                           # (4*B*36, 256)


# ---------------------------------------------------------------------------
# Parameters: deterministic synthetic weights in GEMM "math" layout, packed into
# two VMEM slabs at init (so the kernel sees only 4 inputs at call time).
# ---------------------------------------------------------------------------
def init_params(key, cfg, batch):
    td = cfg["token_dim"]
    assert cfg["add_pos_emb"], "TODO(synk): add_pos_emb=False (d_model=token_dim) not wired"
    D = 2 * td
    sd = cfg["state_dim"]
    Hg = cfg["recurrent"]["hidden_size"]
    P = _PER_MODAL_TOKENS
    keys = iter(jax.random.split(key, 64))

    def rnd(shape, s=0.05):
        return np.asarray(s * jax.random.normal(next(keys), shape, jnp.float32))

    # raw weights (torch-equivalent GEMM layouts):
    #   conv kernels stored as (kh*kw*Cin or Cin, Cout); Linear stored as (in, out)
    w1, b1 = rnd((64, 32)), rnd((1, 32))          # conv1 8x8/4, rows r*8+s
    w2, b2 = rnd((4, 4, 32, 64)), rnd((1, 64))    # conv2 (ki,kj,cin,cout)
    w3, b3 = rnd((3, 3, 64, 64)), rnd((1, 64))    # conv3 (ki,kj,cin,cout)
    wup, bup = rnd((64, td)), rnd((1, td))        # 1x1 up conv
    mlp_dims = list(cfg["hidden_dims"])
    mlp, d = [], sd
    for h in mlp_dims:
        mlp.append((rnd((d, h)), rnd((1, h))))
        d = h
    spw, spb = rnd((d, td)), rnd((1, td))
    pos = rnd((P + 1, td), 0.1)
    layers = []
    for (nh, ff) in cfg["transformer_params"]:
        layers.append(dict(
            wqkv=rnd((D, 3 * D)), bqkv=rnd((1, 3 * D)),
            wo=rnd((D, D)), bo=rnd((1, D)),
            ln1g=np.ones((1, D), np.float32), ln1b=np.zeros((1, D), np.float32),
            wf1=rnd((D, ff)), bf1=rnd((1, ff)),
            wf2=rnd((ff, D)), bf2=rnd((1, D)),
            ln2g=np.ones((1, D), np.float32), ln2b=np.zeros((1, D), np.float32)))
    wih, whh = rnd((2 * D, 3 * Hg)), rnd((Hg, 3 * Hg))
    bih, bhh = rnd((1, 3 * Hg)), rnd((1, 3 * Hg))

    # conv1 as a block-diagonal (over kj) weight: (4*64, 4*32)
    conv1_bd = np.zeros((256, 128), np.float32)
    for kj in range(4):
        conv1_bd[kj * 64:(kj + 1) * 64, kj * 32:(kj + 1) * 32] = w1
    conv1_b = np.tile(b1, (1, 4))

    def pad_cols(a, c):
        out = np.zeros((a.shape[0], c), np.float32)
        out[:, :a.shape[1]] = a
        return out

    # batch-dependent constant assembly / mask tables
    # TODO(synk): these are packed for a fixed batch size (rebuild params if it changes)
    R = batch * _SPAD
    asm_v = np.zeros((R, batch * 36), np.float32)
    asm_s = np.zeros((R, 8), np.float32)
    pos_tab = np.zeros((R, D), np.float32)
    attn_mask = np.full((R, R), -1e9, np.float32)
    pool_mask = np.zeros((R, D), np.float32)
    for b in range(batch):
        asm_s[b * _SPAD, b] = 1.0
        pos_tab[b * _SPAD, td:] = pos[0]
        for p in range(P):
            asm_v[b * _SPAD + 1 + p, b * 36 + (p // 4) * 6 + (p % 4)] = 1.0
            pos_tab[b * _SPAD + 1 + p, td:] = pos[1 + p]
        attn_mask[b * _SPAD:(b + 1) * _SPAD, b * _SPAD:b * _SPAD + 1 + P] = 0.0
        pool_mask[b * _SPAD + 1:b * _SPAD + 1 + P, :] = 1.0

    # ---- pack everything into two slabs (width 64 and width 192) ----
    p64, p192 = _SlabPacker(64), _SlabPacker(192)

    def add(name, arr):
        arr = np.asarray(arr, np.float32)
        (p64 if arr.shape[1] <= 64 else p192).add(name, arr)

    add("conv1_bd", conv1_bd); add("conv1_b", conv1_b)
    add("conv2_b", b2)
    for ki in range(4):
        add(f"conv2_k{ki}", w2[ki].reshape(4 * 32, 64))
    add("conv3_b", b3)
    for ki in range(3):
        for kj in range(3):
            add(f"conv3_k{ki}{kj}", w3[ki, kj])
    add("up_w", pad_cols(wup, D)); add("up_b", pad_cols(bup, D))
    for li, (w, b) in enumerate(mlp):
        add(f"mlp{li}_w", w); add(f"mlp{li}_b", b)
    add("sp_w", pad_cols(spw, D)); add("sp_b", pad_cols(spb, D))
    add("asm_v", asm_v); add("asm_s", asm_s); add("pos_tab", pos_tab)
    add("tok_g", np.ones((1, D), np.float32)); add("tok_b", np.zeros((1, D), np.float32))
    add("attn_mask", attn_mask); add("pool_mask", pool_mask)
    for li, lp in enumerate(layers):
        add(f"l{li}_wqkv", lp["wqkv"]); add(f"l{li}_bqkv", lp["bqkv"])
        add(f"l{li}_wo", lp["wo"]); add(f"l{li}_bo", lp["bo"])
        add(f"l{li}_ln1g", lp["ln1g"]); add(f"l{li}_ln1b", lp["ln1b"])
        add(f"l{li}_wf1", lp["wf1"]); add(f"l{li}_bf1", lp["bf1"])
        add(f"l{li}_wf2", lp["wf2"]); add(f"l{li}_bf2", lp["bf2"])
        add(f"l{li}_ln2g", lp["ln2g"]); add(f"l{li}_ln2b", lp["ln2b"])
    add("gru_wih", wih); add("gru_whh", whh)
    add("gru_bih", bih); add("gru_bhh", bhh)

    w64_slab, off64, shp64 = p64.finish()
    w192_slab, off192, shp192 = p192.finish()

    return dict(
        batch=batch, spad=_SPAD,
        w64=jnp.asarray(w64_slab), w192=jnp.asarray(w192_slab),
        off64=off64, shp64=shp64, off192=off192, shp192=shp192,
        mlp_dims=tuple(mlp_dims),
        heads=tuple(nh for (nh, _) in cfg["transformer_params"]),
    )


# ---------------------------------------------------------------------------
# Forward pass (matches LocoTransformerLSTMEncoder.forward semantics)
# ---------------------------------------------------------------------------
def loco_transformer_lstm_forward(bundle, cfg, x, states):
    sd, ic, cn = cfg["state_dim"], cfg["in_channels"], cfg["camera_num"]
    wh = int(math.isqrt(cfg["visual_dim"] // cn // ic))
    Hg = cfg["recurrent"]["hidden_size"]
    L = cfg["recurrent"]["num_layers"]
    assert ic == 1 and cn == 1 and L == 1 and cfg["add_pos_emb"]
    # TODO(synk): camera_num==2 branch, in_channels>1, multi-layer GRU, the
    #             len(x.shape)>=3 state-permute path and return_raw_visual_vecs are
    #             not implemented.

    orig_shape = x.shape
    state_x = x[..., :sd].reshape(-1, sd).astype(jnp.float32)
    visual_x = x[..., sd:].reshape(-1, ic * cn, wh, wh).astype(jnp.float32)
    B = state_x.shape[0]
    assert B == bundle["batch"], "assembly constants were packed for a fixed batch"

    patches = _conv_patch_matrix(visual_x[:, 0])                 # (4*B*36, 256)
    h0 = states.reshape(L, B, Hg)[0].astype(jnp.float32)
    sh = jnp.zeros((8, 128), jnp.float32)
    sh = sh.at[:B, :sd].set(state_x)
    sh = sh.at[:B, _H0_COL:_H0_COL + Hg].set(h0)

    td = cfg["token_dim"]
    kernel = functools.partial(
        _fused_forward_kernel,
        B=B, SPAD=bundle["spad"], P=_PER_MODAL_TOKENS, D=2 * td,
        heads=bundle["heads"], n_layers=len(bundle["heads"]),
        n_mlp=len(bundle["mlp_dims"]), gru_hidden=Hg, state_dim=sd,
        token_norm=cfg["token_norm"], max_pool=cfg["max_pool"],
        off64=bundle["off64"], shp64=bundle["shp64"],
        off192=bundle["off192"], shp192=bundle["shp192"])

    h_new = pl.pallas_call(
        kernel,
        out_shape=jax.ShapeDtypeStruct((B, Hg), jnp.float32),
    )(patches, sh, bundle["w64"], bundle["w192"])

    out = h_new                                                  # single-step GRU: out == h_n
    new_states = h_new[None]                                     # (L=1, B, Hg)
    if len(orig_shape) >= 3:
        out = out.reshape(orig_shape[0], orig_shape[1], -1)
    return out, new_states


if __name__ == "__main__":
    cfg = CFG
    key = jax.random.PRNGKey(0)
    pkey, xkey, skey = jax.random.split(key, 3)

    batch = 2
    bundle = init_params(pkey, cfg, batch)

    x = jax.random.normal(xkey, (batch, cfg["state_dim"] + cfg["visual_dim"]), jnp.float32)
    states = 0.1 * jax.random.normal(
        skey,
        (cfg["recurrent"]["num_layers"], batch, cfg["recurrent"]["hidden_size"]),
        jnp.float32)

    fwd = jax.jit(functools.partial(loco_transformer_lstm_forward, bundle, cfg))
    y, new_states = fwd(x, states)
    jax.block_until_ready((y, new_states))

    assert y.shape == (batch, cfg["recurrent"]["hidden_size"]) and y.dtype == jnp.float32
    assert new_states.shape == (cfg["recurrent"]["num_layers"], batch,
                                cfg["recurrent"]["hidden_size"])
    assert bool(jnp.all(jnp.isfinite(y))) and bool(jnp.all(jnp.isfinite(new_states)))
    print("KERNEL_OK")
</pallas_src>

<mosaic_0001>
module attributes {stable_mosaic.version = 11 : i64} {
  func.func @_fused_forward_kernel(%arg0: memref<288x256xf32, #tpu.memory_space<vmem>>, %arg1: memref<8x128xf32, #tpu.memory_space<vmem>>, %arg2: memref<1736x64xf32, #tpu.memory_space<vmem>>, %arg3: memref<592x192xf32, #tpu.memory_space<vmem>>, %arg4: memref<2x64xf32, #tpu.memory_space<vmem>>) attributes {dimension_semantics = [], scalar_prefetch = 0 : i64, scratch_operands = 0 : i64, tpu.core_type = #tpu.core_type<tc>} {
    %c0 = arith.constant 0 : index
    %c0_0 = arith.constant 0 : index
    %0 = vector.load %arg0[%c0, %c0_0] : memref<288x256xf32, #tpu.memory_space<vmem>>, vector<288x256xf32>
    %c0_1 = arith.constant 0 : index
    %c0_2 = arith.constant 0 : index
    %1 = vector.load %arg3[%c0_1, %c0_2] : memref<592x192xf32, #tpu.memory_space<vmem>>, vector<256x128xf32>
    %cst = arith.constant dense<0.000000e+00> : vector<288x128xf32>
    %2 = tpu.matmul %0, %1, %cst {dimension_numbers = #tpu.dot_dimension_numbers<[1], [0], [0], [1], [0, 0, 1, 1], [], []>} : vector<288x256xf32>, vector<256x128xf32>, vector<288x128xf32> -> vector<288x128xf32>
    %c256 = arith.constant 256 : index
    %c0_3 = arith.constant 0 : index
    %3 = vector.load %arg3[%c256, %c0_3] : memref<592x192xf32, #tpu.memory_space<vmem>>, vector<1x128xf32>
    %4 = vector.broadcast %3 : vector<1x128xf32> to vector<288x128xf32>
    %5 = arith.addf %2, %4 : vector<288x128xf32>
    %cst_4 = arith.constant 0.000000e+00 : f32
    %6 = vector.broadcast %cst_4 : f32 to vector<288x128xf32>
    %7 = arith.maximumf %5, %6 : vector<288x128xf32>
    %c0_5 = arith.constant 0 : index
    %c0_6 = arith.constant 0 : index
    %8 = vector.load %arg2[%c0_5, %c0_6] : memref<1736x64xf32, #tpu.memory_space<vmem>>, vector<1x64xf32>
    %9 = vector.extract_strided_slice %7 {offsets = [0, 0], sizes = [72, 128], strides = [1, 1]} : vector<288x128xf32> to vector<72x128xf32>
    %c8 = arith.constant 8 : index
    %c0_7 = arith.constant 0 : index
    %10 = vector.load %arg2[%c8, %c0_7] : memref<1736x64xf32, #tpu.memory_space<vmem>>, vector<128x64xf32>
    %cst_8 = arith.constant dense<0.000000e+00> : vector<72x64xf32>
    %11 = tpu.matmul %9, %10, %cst_8 {dimension_numbers = #tpu.dot_dimension_numbers<[1], [0], [0], [1], [0, 0, 1, 1], [], []>} : vector<72x128xf32>, vector<128x64xf32>, vector<72x64xf32> -> vector<72x64xf32>
    %12 = vector.broadcast %8 : vector<1x64xf32> to vector<72x64xf32>
    %13 = arith.addf %12, %11 : vector<72x64xf32>
    %14 = vector.extract_strided_slice %7 {offsets = [72, 0], sizes = [72, 128], strides = [1, 1]} : vector<288x128xf32> to vector<72x128xf32>
    %c136 = arith.constant 136 : index
    %c0_9 = arith.constant 0 : index
    %15 = vector.load %arg2[%c136, %c0_9] : memref<1736x64xf32, #tpu.memory_space<vmem>>, vector<128x64xf32>
    %cst_10 = arith.constant dense<0.000000e+00> : vector<72x64xf32>
    %16 = tpu.matmul %14, %15, %cst_10 {dimension_numbers = #tpu.dot_dimension_numbers<[1], [0], [0], [1], [0, 0, 1, 1], [], []>} : vector<72x128xf32>, vector<128x64xf32>, vector<72x64xf32> -> vector<72x64xf32>
    %17 = arith.addf %13, %16 : vector<72x64xf32>
    %18 = vector.extract_strided_slice %7 {offsets = [144, 0], sizes = [72, 128], strides = [1, 1]} : vector<288x128xf32> to vector<72x128xf32>
    %c264 = arith.constant 264 : index
    %c0_11 = arith.constant 0 : index
    %19 = vector.load %arg2[%c264, %c0_11] : memref<1736x64xf32, #tpu.memory_space<vmem>>, vector<128x64xf32>
    %cst_12 = arith.constant dense<0.000000e+00> : vector<72x64xf32>
    %20 = tpu.matmul %18, %19, %cst_12 {dimension_numbers = #tpu.dot_dimension_numbers<[1], [0], [0], [1], [0, 0, 1, 1], [], []>} : vector<72x128xf32>, vector<128x64xf32>, vector<72x64xf32> -> vector<72x64xf32>
    %21 = arith.addf %17, %20 : vector<72x64xf32>
    %22 = vector.extract_strided_slice %7 {offsets = [216, 0], sizes = [72, 128], strides = [1, 1]} : vector<288x128xf32> to vector<72x128xf32>
    %c392 = arith.constant 392 : index
    %c0_13 = arith.constant 0 : index
    %23 = vector.load %arg2[%c392, %c0_13] : memref<1736x64xf32, #tpu.memory_space<vmem>>, vector<128x64xf32>
    %cst_14 = arith.constant dense<0.000000e+00> : vector<72x64xf32>
    %24 = tpu.matmul %22, %23, %cst_14 {dimension_numbers = #tpu.dot_dimension_numbers<[1], [0], [0], [1], [0, 0, 1, 1], [], []>} : vector<72x128xf32>, vector<128x64xf32>, vector<72x64xf32> -> vector<72x64xf32>
    %25 = arith.addf %21, %24 : vector<72x64xf32>
    %cst_15 = arith.constant 0.000000e+00 : f32
    %26 = vector.broadcast %cst_15 : f32 to vector<72x64xf32>
    %27 = arith.maximumf %25, %26 : vector<72x64xf32>
    %c520 = arith.constant 520 : index
    %c0_16 = arith.constant 0 : index
    %28 = vector.load %arg2[%c520, %c0_16] : memref<1736x64xf32, #tpu.memory_space<vmem>>, vector<1x64xf32>
    %c528 = arith.constant 528 : index
    %c0_17 = arith.constant 0 : index
    %29 = vector.load %arg2[%c528, %c0_17] : memref<1736x64xf32, #tpu.memory_space<vmem>>, vector<64x64xf32>
    %cst_18 = arith.constant dense<0.000000e+00> : vector<72x64xf32>
    %30 = tpu.matmul %27, %29, %cst_18 {dimension_numbers = #tpu.dot_dimension_numbers<[1], [0], [0], [1], [0, 0, 1, 1], [], []>} : vector<72x64xf32>, vector<64x64xf32>, vector<72x64xf32> -> vector<72x64xf32>
    %31 = vector.broadcast %28 : vector<1x64xf32> to vector<72x64xf32>
    %32 = arith.addf %31, %30 : vector<72x64xf32>
    %c71_i32 = arith.constant 71 : i32
    %33 = tpu.dynamic_rotate %27 by %c71_i32 dim 0 : vector<72x64xf32>, i32 -> vector<72x64xf32>
    %c592 = arith.constant 592 : index
    %c0_19 = arith.constant 0 : index
    %34 = vector.load %arg2[%c592, %c0_19] : memref<1736x64xf32, #tpu.memory_space<vmem>>, vector<64x64xf32>
    %cst_20 = arith.constant dense<0.000000e+00> : vector<72x64xf32>
    %35 = tpu.matmul %33, %34, %cst_20 {dimension_numbers = #tpu.dot_dimension_numbers<[1], [0], [0], [1], [0, 0, 1, 1], [], []>} : vector<72x64xf32>, vector<64x64xf32>, vector<72x64xf32> -> vector<72x64xf32>
    %36 = arith.addf %32, %35 : vector<72x64xf32>
    %c70_i32 = arith.constant 70 : i32
    %37 = tpu.dynamic_rotate %27 by %c70_i32 dim 0 : vector<72x64xf32>, i32 -> vector<72x64xf32>
    %c656 = arith.constant 656 : index
    %c0_21 = arith.constant 0 : index
    %38 = vector.load %arg2[%c656, %c0_21] : memref<1736x64xf32, #tpu.memory_space<vmem>>, vector<64x64xf32>
    %cst_22 = arith.constant dense<0.000000e+00> : vector<72x64xf32>
    %39 = tpu.matmul %37, %38, %cst_22 {dimension_numbers = #tpu.dot_dimension_numbers<[1], [0], [0], [1], [0, 0, 1, 1], [], []>} : vector<72x64xf32>, vector<64x64xf32>, vector<72x64xf32> -> vector<72x64xf32>
    %40 = arith.addf %36, %39 : vector<72x64xf32>
    %c66_i32 = arith.constant 66 : i32
    %41 = tpu.dynamic_rotate %27 by %c66_i32 dim 0 : vector<72x64xf32>, i32 -> vector<72x64xf32>
    %c720 = arith.constant 720 : index
    %c0_23 = arith.constant 0 : index
    %42 = vector.load %arg2[%c720, %c0_23] : memref<1736x64xf32, #tpu.memory_space<vmem>>, vector<64x64xf32>
    %cst_24 = arith.constant dense<0.000000e+00> : vector<72x64xf32>
    %43 = tpu.matmul %41, %42, %cst_24 {dimension_numbers = #tpu.dot_dimension_numbers<[1], [0], [0], [1], [0, 0, 1, 1], [], []>} : vector<72x64xf32>, vector<64x64xf32>, vector<72x64xf32> -> vector<72x64xf32>
    %44 = arith.addf %40, %43 : vector<72x64xf32>
    %c65_i32 = arith.constant 65 : i32
    %45 = tpu.dynamic_rotate %27 by %c65_i32 dim 0 : vector<72x64xf32>, i32 -> vector<72x64xf32>
    %c784 = arith.constant 784 : index
    %c0_25 = arith.constant 0 : index
    %46 = vector.load %arg2[%c784, %c0_25] : memref<1736x64xf32, #tpu.memory_space<vmem>>, vector<64x64xf32>
    %cst_26 = arith.constant dense<0.000000e+00> : vector<72x64xf32>
    %47 = tpu.matmul %45, %46, %cst_26 {dimension_numbers = #tpu.dot_dimension_numbers<[1], [0], [0], [1], [0, 0, 1, 1], [], []>} : vector<72x64xf32>, vector<64x64xf32>, vector<72x64xf32> -> vector<72x64xf32>
    %48 = arith.addf %44, %47 : vector<72x64xf32>
    %c64_i32 = arith.constant 64 : i32
    %49 = tpu.dynamic_rotate %27 by %c64_i32 dim 0 : vector<72x64xf32>, i32 -> vector<72x64xf32>
    %c848 = arith.constant 848 : index
    %c0_27 = arith.constant 0 : index
    %50 = vector.load %arg2[%c848, %c0_27] : memref<1736x64xf32, #tpu.memory_space<vmem>>, vector<64x64xf32>
    %cst_28 = arith.constant dense<0.000000e+00> : vector<72x64xf32>
    %51 = tpu.matmul %49, %50, %cst_28 {dimension_numbers = #tpu.dot_dimension_numbers<[1], [0], [0], [1], [0, 0, 1, 1], [], []>} : vector<72x64xf32>, vector<64x64xf32>, vector<72x64xf32> -> vector<72x64xf32>
    %52 = arith.addf %48, %51 : vector<72x64xf32>
    %c60_i32 = arith.constant 60 : i32
    %53 = tpu.dynamic_rotate %27 by %c60_i32 dim 0 : vector<72x64xf32>, i32 -> vector<72x64xf32>
    %c912 = arith.constant 912 : index
    %c0_29 = arith.constant 0 : index
    %54 = vector.load %arg2[%c912, %c0_29] : memref<1736x64xf32, #tpu.memory_space<vmem>>, vector<64x64xf32>
    %cst_30 = arith.constant dense<0.000000e+00> : vector<72x64xf32>
    %55 = tpu.matmul %53, %54, %cst_30 {dimension_numbers = #tpu.dot_dimension_numbers<[1], [0], [0], [1], [0, 0, 1, 1], [], []>} : vector<72x64xf32>, vector<64x64xf32>, vector<72x64xf32> -> vector<72x64xf32>
    %56 = arith.addf %52, %55 : vector<72x64xf32>
    %c59_i32 = arith.constant 59 : i32
    %57 = tpu.dynamic_rotate %27 by %c59_i32 dim 0 : vector<72x64xf32>, i32 -> vector<72x64xf32>
    %c976 = arith.constant 976 : index
    %c0_31 = arith.constant 0 : index
    %58 = vector.load %arg2[%c976, %c0_31] : memref<1736x64xf32, #tpu.memory_space<vmem>>, vector<64x64xf32>
    %cst_32 = arith.constant dense<0.000000e+00> : vector<72x64xf32>
    %59 = tpu.matmul %57, %58, %cst_32 {dimension_numbers = #tpu.dot_dimension_numbers<[1], [0], [0], [1], [0, 0, 1, 1], [], []>} : vector<72x64xf32>, vector<64x64xf32>, vector<72x64xf32> -> vector<72x64xf32>
    %60 = arith.addf %56, %59 : vector<72x64xf32>
    %c58_i32 = arith.constant 58 : i32
    %61 = tpu.dynamic_rotate %27 by %c58_i32 dim 0 : vector<72x64xf32>, i32 -> vector<72x64xf32>
    %c1040 = arith.constant 1040 : index
    %c0_33 = arith.constant 0 : index
    %62 = vector.load %arg2[%c1040, %c0_33] : memref<1736x64xf32, #tpu.memory_space<vmem>>, vector<64x64xf32>
    %cst_34 = arith.constant dense<0.000000e+00> : vector<72x64xf32>
    %63 = tpu.matmul %61, %62, %cst_34 {dimension_numbers = #tpu.dot_dimension_numbers<[1], [0], [0], [1], [0, 0, 1, 1], [], []>} : vector<72x64xf32>, vector<64x64xf32>, vector<72x64xf32> -> vector<72x64xf32>
    %64 = arith.addf %60, %63 : vector<72x64xf32>
    %cst_35 = arith.constant 0.000000e+00 : f32
    %65 = vector.broadcast %cst_35 : f32 to vector<72x64xf32>
    %66 = arith.maximumf %64, %65 : vector<72x64xf32>
    %c1104 = arith.constant 1104 : index
    %c0_36 = arith.constant 0 : index
    %67 = vector.load %arg2[%c1104, %c0_36] : memref<1736x64xf32, #tpu.memory_space<vmem>>, vector<64x64xf32>
    %cst_37 = arith.constant dense<0.000000e+00> : vector<72x64xf32>
    %68 = tpu.matmul %66, %67, %cst_37 {dimension_numbers = #tpu.dot_dimension_numbers<[1], [0], [0], [1], [0, 0, 1, 1], [], []>} : vector<72x64xf32>, vector<64x64xf32>, vector<72x64xf32> -> vector<72x64xf32>
    %c1168 = arith.constant 1168 : index
    %c0_38 = arith.constant 0 : index
    %69 = vector.load %arg2[%c1168, %c0_38] : memref<1736x64xf32, #tpu.memory_space<vmem>>, vector<1x64xf32>
    %70 = vector.broadcast %69 : vector<1x64xf32> to vector<72x64xf32>
    %71 = arith.addf %68, %70 : vector<72x64xf32>
    %c0_39 = arith.constant 0 : index
    %c0_40 = arith.constant 0 : index
    %72 = vector.load %arg1[%c0_39, %c0_40] : memref<8x128xf32, #tpu.memory_space<vmem>>, vector<8x16xf32>
    %c1176 = arith.constant 1176 : index
    %c0_41 = arith.constant 0 : index
    %73 = vector.load %arg2[%c1176, %c0_41] : memref<1736x64xf32, #tpu.memory_space<vmem>>, vector<16x32xf32>
    %cst_42 = arith.constant dense<0.000000e+00> : vector<8x32xf32>
    %74 = tpu.matmul %72, %73, %cst_42 {dimension_numbers = #tpu.dot_dimension_numbers<[1], [0], [0], [1], [0, 0, 1, 1], [], []>} : vector<8x16xf32>, vector<16x32xf32>, vector<8x32xf32> -> vector<8x32xf32>
    %c1192 = arith.constant 1192 : index
    %c0_43 = arith.constant 0 : index
    %75 = vector.load %arg2[%c1192, %c0_43] : memref<1736x64xf32, #tpu.memory_space<vmem>>, vector<1x32xf32>
    %76 = vector.broadcast %75 : vector<1x32xf32> to vector<8x32xf32>
    %77 = arith.addf %74, %76 : vector<8x32xf32>
    %cst_44 = arith.constant 0.000000e+00 : f32
    %78 = vector.broadcast %cst_44 : f32 to vector<8x32xf32>
    %79 = arith.maximumf %77, %78 : vector<8x32xf32>
    %c1200 = arith.constant 1200 : index
    %c0_45 = arith.constant 0 : index
    %80 = vector.load %arg2[%c1200, %c0_45] : memref<1736x64xf32, #tpu.memory_space<vmem>>, vector<32x32xf32>
    %cst_46 = arith.constant dense<0.000000e+00> : vector<8x32xf32>
    %81 = tpu.matmul %79, %80, %cst_46 {dimension_numbers = #tpu.dot_dimension_numbers<[1], [0], [0], [1], [0, 0, 1, 1], [], []>} : vector<8x32xf32>, vector<32x32xf32>, vector<8x32xf32> -> vector<8x32xf32>
    %c1232 = arith.constant 1232 : index
    %c0_47 = arith.constant 0 : index
    %82 = vector.load %arg2[%c1232, %c0_47] : memref<1736x64xf32, #tpu.memory_space<vmem>>, vector<1x32xf32>
    %83 = vector.broadcast %82 : vector<1x32xf32> to vector<8x32xf32>
    %84 = arith.addf %81, %83 : vector<8x32xf32>
    %cst_48 = arith.constant 0.000000e+00 : f32
    %85 = vector.broadcast %cst_48 : f32 to vector<8x32xf32>
    %86 = arith.maximumf %84, %85 : vector<8x32xf32>
    %c1240 = arith.constant 1240 : index
    %c0_49 = arith.constant 0 : index
    %87 = vector.load %arg2[%c1240, %c0_49] : memref<1736x64xf32, #tpu.memory_space<vmem>>, vector<32x64xf32>
    %cst_50 = arith.constant dense<0.000000e+00> : vector<8x64xf32>
    %88 = tpu.matmul %86, %87, %cst_50 {dimension_numbers = #tpu.dot_dimension_numbers<[1], [0], [0], [1], [0, 0, 1, 1], [], []>} : vector<8x32xf32>, vector<32x64xf32>, vector<8x64xf32> -> vector<8x64xf32>
    %c1272 = arith.constant 1272 : index
    %c0_51 = arith.constant 0 : index
    %89 = vector.load %arg2[%c1272, %c0_51] : memref<1736x64xf32, #tpu.memory_space<vmem>>, vector<1x64xf32>
    %90 = vector.broadcast %89 : vector<1x64xf32> to vector<8x64xf32>
    %91 = arith.addf %88, %90 : vector<8x64xf32>
    %cst_52 = arith.constant 0.000000e+00 : f32
    %92 = vector.broadcast %cst_52 : f32 to vector<8x64xf32>
    %93 = arith.maximumf %91, %92 : vector<8x64xf32>
    %c264_53 = arith.constant 264 : index
    %c0_54 = arith.constant 0 : index
    %94 = vector.load %arg3[%c264_53, %c0_54] : memref<592x192xf32, #tpu.memory_space<vmem>>, vector<48x72xf32>
    %cst_55 = arith.constant dense<0.000000e+00> : vector<48x64xf32>
    %95 = tpu.matmul %94, %71, %cst_55 {dimension_numbers = #tpu.dot_dimension_numbers<[1], [0], [0], [1], [0, 0, 1, 1], [], []>} : vector<48x72xf32>, vector<72x64xf32>, vector<48x64xf32> -> vector<48x64xf32>
    %c1280 = arith.constant 1280 : index
    %c0_56 = arith.constant 0 : index
    %96 = vector.load %arg2[%c1280, %c0_56] : memref<1736x64xf32, #tpu.memory_space<vmem>>, vector<48x8xf32>
    %cst_57 = arith.constant dense<0.000000e+00> : vector<48x64xf32>
    %97 = tpu.matmul %96, %93, %cst_57 {dimension_numbers = #tpu.dot_dimension_numbers<[1], [0], [0], [1], [0, 0, 1, 1], [], []>} : vector<48x8xf32>, vector<8x64xf32>, vector<48x64xf32> -> vector<48x64xf32>
    %98 = arith.addf %95, %97 : vector<48x64xf32>
    %c1328 = arith.constant 1328 : index
    %c0_58 = arith.constant 0 : index
    %99 = vector.load %arg2[%c1328, %c0_58] : memref<1736x64xf32, #tpu.memory_space<vmem>>, vector<48x64xf32>
    %100 = arith.addf %98, %99 : vector<48x64xf32>
    %c1376 = arith.constant 1376 : index
    %c0_59 = arith.constant 0 : index
    %101 = vector.load %arg2[%c1376, %c0_59] : memref<1736x64xf32, #tpu.memory_space<vmem>>, vector<1x64xf32>
    %c1384 = arith.constant 1384 : index
    %c0_60 = arith.constant 0 : index
    %102 = vector.load %arg2[%c1384, %c0_60] : memref<1736x64xf32, #tpu.memory_space<vmem>>, vector<1x64xf32>
    %cst_61 = arith.constant dense<0.000000e+00> : vector<48xf32>
    %103 = vector.multi_reduction <add>, %100, %cst_61 [1] : vector<48x64xf32> to vector<48xf32>
    %104 = vector.shape_cast %103 : vector<48xf32> to vector<48x1xf32>
    %cst_62 = arith.constant 6.400000e+01 : f32
    %105 = vector.broadcast %cst_62 : f32 to vector<48x1xf32>
    %106 = arith.divf %104, %105 : vector<48x1xf32>
    %107 = vector.broadcast %106 : vector<48x1xf32> to vector<48x64xf32>
    %108 = arith.subf %100, %107 : vector<48x64xf32>
    %109 = arith.mulf %108, %108 : vector<48x64xf32>
    %cst_63 = arith.constant dense<0.000000e+00> : vector<48xf32>
    %110 = vector.multi_reduction <add>, %109, %cst_63 [1] : vector<48x64xf32> to vector<48xf32>
    %111 = vector.shape_cast %110 : vector<48xf32> to vector<48x1xf32>
    %cst_64 = arith.constant 6.400000e+01 : f32
    %112 = vector.broadcast %cst_64 : f32 to vector<48x1xf32>
    %113 = arith.divf %111, %112 : vector<48x1xf32>
    %cst_65 = arith.constant 9.99999974E-6 : f32
    %114 = vector.broadcast %cst_65 : f32 to vector<48x1xf32>
    %115 = arith.addf %113, %114 : vector<48x1xf32>
    %116 = math.rsqrt %115 : vector<48x1xf32>
    %117 = vector.broadcast %116 : vector<48x1xf32> to vector<48x64xf32>
    %118 = arith.mulf %108, %117 : vector<48x64xf32>
    %119 = vector.broadcast %101 : vector<1x64xf32> to vector<48x64xf32>
    %120 = arith.mulf %118, %119 : vector<48x64xf32>
    %121 = vector.broadcast %102 : vector<1x64xf32> to vector<48x64xf32>
    %122 = arith.addf %120, %121 : vector<48x64xf32>
    %c1392 = arith.constant 1392 : index
    %c0_66 = arith.constant 0 : index
    %123 = vector.load %arg2[%c1392, %c0_66] : memref<1736x64xf32, #tpu.memory_space<vmem>>, vector<48x48xf32>
    %c312 = arith.constant 312 : index
    %c0_67 = arith.constant 0 : index
    %124 = vector.load %arg3[%c312, %c0_67] : memref<592x192xf32, #tpu.memory_space<vmem>>, vector<64x192xf32>
    %cst_68 = arith.constant dense<0.000000e+00> : vector<48x192xf32>
    %125 = tpu.matmul %122, %124, %cst_68 {dimension_numbers = #tpu.dot_dimension_numbers<[1], [0], [0], [1], [0, 0, 1, 1], [], []>} : vector<48x64xf32>, vector<64x192xf32>, vector<48x192xf32> -> vector<48x192xf32>
    %c376 = arith.constant 376 : index
    %c0_69 = arith.constant 0 : index
    %126 = vector.load %arg3[%c376, %c0_69] : memref<592x192xf32, #tpu.memory_space<vmem>>, vector<1x192xf32>
    %127 = vector.broadcast %126 : vector<1x192xf32> to vector<48x192xf32>
    %128 = arith.addf %125, %127 : vector<48x192xf32>
    %129 = vector.extract_strided_slice %128 {offsets = [0, 0], sizes = [48, 32], strides = [1, 1]} : vector<48x192xf32> to vector<48x32xf32>
    %cst_70 = arith.constant 0.176776692 : f32
    %130 = vector.broadcast %cst_70 : f32 to vector<48x32xf32>
    %131 = arith.mulf %129, %130 : vector<48x32xf32>
    %132 = vector.extract_strided_slice %128 {offsets = [0, 64], sizes = [48, 32], strides = [1, 1]} : vector<48x192xf32> to vector<48x32xf32>
    %133 = vector.extract_strided_slice %128 {offsets = [0, 128], sizes = [48, 32], strides = [1, 1]} : vector<48x192xf32> to vector<48x32xf32>
    %cst_71 = arith.constant dense<0.000000e+00> : vector<48x48xf32>
    %134 = tpu.matmul %131, %132, %cst_71 {dimension_numbers = #tpu.dot_dimension_numbers<[1], [1], [0], [0], [0, 0, 1, 0], [], []>} : vector<48x32xf32>, vector<48x32xf32>, vector<48x48xf32> -> vector<48x48xf32>
    %135 = arith.addf %134, %123 : vector<48x48xf32>
    %cst_72 = arith.constant dense<0xFF800000> : vector<48xf32>
    %136 = vector.multi_reduction <maximumf>, %135, %cst_72 [1] : vector<48x48xf32> to vector<48xf32>
    %137 = vector.shape_cast %136 : vector<48xf32> to vector<48x1xf32>
    %138 = vector.broadcast %137 : vector<48x1xf32> to vector<48x48xf32>
    %139 = arith.subf %135, %138 : vector<48x48xf32>
    %140 = math.exp %139 : vector<48x48xf32>
    %cst_73 = arith.constant dense<0.000000e+00> : vector<48xf32>
    %141 = vector.multi_reduction <add>, %140, %cst_73 [1] : vector<48x48xf32> to vector<48xf32>
    %142 = vector.shape_cast %141 : vector<48xf32> to vector<48x1xf32>
    %143 = tpu.reciprocal %142 {approx = true} : vector<48x1xf32> -> vector<48x1xf32>
    %144 = vector.broadcast %143 : vector<48x1xf32> to vector<48x48xf32>
    %145 = arith.mulf %140, %144 : vector<48x48xf32>
    %cst_74 = arith.constant dense<0.000000e+00> : vector<48x32xf32>
    %146 = tpu.matmul %145, %133, %cst_74 {dimension_numbers = #tpu.dot_dimension_numbers<[1], [0], [0], [1], [0, 0, 1, 1], [], []>} : vector<48x48xf32>, vector<48x32xf32>, vector<48x32xf32> -> vector<48x32xf32>
    %147 = vector.extract_strided_slice %128 {offsets = [0, 32], sizes = [48, 32], strides = [1, 1]} : vector<48x192xf32> to vector<48x32xf32>
    %cst_75 = arith.constant 0.176776692 : f32
    %148 = vector.broadcast %cst_75 : f32 to vector<48x32xf32>
    %149 = arith.mulf %147, %148 : vector<48x32xf32>
    %150 = vector.extract_strided_slice %128 {offsets = [0, 96], sizes = [48, 32], strides = [1, 1]} : vector<48x192xf32> to vector<48x32xf32>
    %151 = vector.extract_strided_slice %128 {offsets = [0, 160], sizes = [48, 32], strides = [1, 1]} : vector<48x192xf32> to vector<48x32xf32>
    %cst_76 = arith.constant dense<0.000000e+00> : vector<48x48xf32>
    %152 = tpu.matmul %149, %150, %cst_76 {dimension_numbers = #tpu.dot_dimension_numbers<[1], [1], [0], [0], [0, 0, 1, 0], [], []>} : vector<48x32xf32>, vector<48x32xf32>, vector<48x48xf32> -> vector<48x48xf32>
    %153 = arith.addf %152, %123 : vector<48x48xf32>
    %cst_77 = arith.constant dense<0xFF800000> : vector<48xf32>
    %154 = vector.multi_reduction <maximumf>, %153, %cst_77 [1] : vector<48x48xf32> to vector<48xf32>
    %155 = vector.shape_cast %154 : vector<48xf32> to vector<48x1xf32>
    %156 = vector.broadcast %155 : vector<48x1xf32> to vector<48x48xf32>
    %157 = arith.subf %153, %156 : vector<48x48xf32>
    %158 = math.exp %157 : vector<48x48xf32>
    %cst_78 = arith.constant dense<0.000000e+00> : vector<48xf32>
    %159 = vector.multi_reduction <add>, %158, %cst_78 [1] : vector<48x48xf32> to vector<48xf32>
    %160 = vector.shape_cast %159 : vector<48xf32> to vector<48x1xf32>
    %161 = tpu.reciprocal %160 {approx = true} : vector<48x1xf32> -> vector<48x1xf32>
    %162 = vector.broadcast %161 : vector<48x1xf32> to vector<48x48xf32>
    %163 = arith.mulf %158, %162 : vector<48x48xf32>
    %cst_79 = arith.constant dense<0.000000e+00> : vector<48x32xf32>
    %164 = tpu.matmul %163, %151, %cst_79 {dimension_numbers = #tpu.dot_dimension_numbers<[1], [0], [0], [1], [0, 0, 1, 1], [], []>} : vector<48x48xf32>, vector<48x32xf32>, vector<48x32xf32> -> vector<48x32xf32>
    %165 = tpu.concatenate %146, %164 in 1 : vector<48x32xf32>, vector<48x32xf32> -> vector<48x64xf32>
    %c1488 = arith.constant 1488 : index
    %c0_80 = arith.constant 0 : index
    %166 = vector.load %arg2[%c1488, %c0_80] : memref<1736x64xf32, #tpu.memory_space<vmem>>, vector<64x64xf32>
    %cst_81 = arith.constant dense<0.000000e+00> : vector<48x64xf32>
    %167 = tpu.matmul %165, %166, %cst_81 {dimension_numbers = #tpu.dot_dimension_numbers<[1], [0], [0], [1], [0, 0, 1, 1], [], []>} : vector<48x64xf32>, vector<64x64xf32>, vector<48x64xf32> -> vector<48x64xf32>
    %168 = arith.addf %122, %167 : vector<48x64xf32>
    %c1552 = arith.constant 1552 : index
    %c0_82 = arith.constant 0 : index
    %169 = vector.load %arg2[%c1552, %c0_82] : memref<1736x64xf32, #tpu.memory_space<vmem>>, vector<1x64xf32>
    %170 = vector.broadcast %169 : vector<1x64xf32> to vector<48x64xf32>
    %171 = arith.addf %168, %170 : vector<48x64xf32>
    %c1560 = arith.constant 1560 : index
    %c0_83 = arith.constant 0 : index
    %172 = vector.load %arg2[%c1560, %c0_83] : memref<1736x64xf32, #tpu.memory_space<vmem>>, vector<1x64xf32>
    %c1568 = arith.constant 1568 : index
    %c0_84 = arith.constant 0 : index
    %173 = vector.load %arg2[%c1568, %c0_84] : memref<1736x64xf32, #tpu.memory_space<vmem>>, vector<1x64xf32>
    %cst_85 = arith.constant dense<0.000000e+00> : vector<48xf32>
    %174 = vector.multi_reduction <add>, %171, %cst_85 [1] : vector<48x64xf32> to vector<48xf32>
    %175 = vector.shape_cast %174 : vector<48xf32> to vector<48x1xf32>
    %cst_86 = arith.constant 6.400000e+01 : f32
    %176 = vector.broadcast %cst_86 : f32 to vector<48x1xf32>
    %177 = arith.divf %175, %176 : vector<48x1xf32>
    %178 = vector.broadcast %177 : vector<48x1xf32> to vector<48x64xf32>
    %179 = arith.subf %171, %178 : vector<48x64xf32>
    %180 = arith.mulf %179, %179 : vector<48x64xf32>
    %cst_87 = arith.constant dense<0.000000e+00> : vector<48xf32>
    %181 = vector.multi_reduction <add>, %180, %cst_87 [1] : vector<48x64xf32> to vector<48xf32>
    %182 = vector.shape_cast %181 : vector<48xf32> to vector<48x1xf32>
    %cst_88 = arith.constant 6.400000e+01 : f32
    %183 = vector.broadcast %cst_88 : f32 to vector<48x1xf32>
    %184 = arith.divf %182, %183 : vector<48x1xf32>
    %cst_89 = arith.constant 9.99999974E-6 : f32
    %185 = vector.broadcast %cst_89 : f32 to vector<48x1xf32>
    %186 = arith.addf %184, %185 : vector<48x1xf32>
    %187 = math.rsqrt %186 : vector<48x1xf32>
    %188 = vector.broadcast %187 : vector<48x1xf32> to vector<48x64xf32>
    %189 = arith.mulf %179, %188 : vector<48x64xf32>
    %190 = vector.broadcast %172 : vector<1x64xf32> to vector<48x64xf32>
    %191 = arith.mulf %189, %190 : vector<48x64xf32>
    %192 = vector.broadcast %173 : vector<1x64xf32> to vector<48x64xf32>
    %193 = arith.addf %191, %192 : vector<48x64xf32>
    %c1576 = arith.constant 1576 : index
    %c0_90 = arith.constant 0 : index
    %194 = vector.load %arg2[%c1576, %c0_90] : memref<1736x64xf32, #tpu.memory_space<vmem>>, vector<64x64xf32>
    %cst_91 = arith.constant dense<0.000000e+00> : vector<48x64xf32>
    %195 = tpu.matmul %193, %194, %cst_91 {dimension_numbers = #tpu.dot_dimension_numbers<[1], [0], [0], [1], [0, 0, 1, 1], [], []>} : vector<48x64xf32>, vector<64x64xf32>, vector<48x64xf32> -> vector<48x64xf32>
    %c1640 = arith.constant 1640 : index
    %c0_92 = arith.constant 0 : index
    %196 = vector.load %arg2[%c1640, %c0_92] : memref<1736x64xf32, #tpu.memory_space<vmem>>, vector<1x64xf32>
    %197 = vector.broadcast %196 : vector<1x64xf32> to vector<48x64xf32>
    %198 = arith.addf %195, %197 : vector<48x64xf32>
    %cst_93 = arith.constant 0.000000e+00 : f32
    %199 = vector.broadcast %cst_93 : f32 to vector<48x64xf32>
    %200 = arith.maximumf %198, %199 : vector<48x64xf32>
    %c1648 = arith.constant 1648 : index
    %c0_94 = arith.constant 0 : index
    %201 = vector.load %arg2[%c1648, %c0_94] : memref<1736x64xf32, #tpu.memory_space<vmem>>, vector<64x64xf32>
    %cst_95 = arith.constant dense<0.000000e+00> : vector<48x64xf32>
    %202 = tpu.matmul %200, %201, %cst_95 {dimension_numbers = #tpu.dot_dimension_numbers<[1], [0], [0], [1], [0, 0, 1, 1], [], []>} : vector<48x64xf32>, vector<64x64xf32>, vector<48x64xf32> -> vector<48x64xf32>
    %c1712 = arith.constant 1712 : index
    %c0_96 = arith.constant 0 : index
    %203 = vector.load %arg2[%c1712, %c0_96] : memref<1736x64xf32, #tpu.memory_space<vmem>>, vector<1x64xf32>
    %204 = vector.broadcast %203 : vector<1x64xf32> to vector<48x64xf32>
    %205 = arith.addf %202, %204 : vector<48x64xf32>
    %206 = arith.addf %193, %205 : vector<48x64xf32>
    %c1720 = arith.constant 1720 : index
    %c0_97 = arith.constant 0 : index
    %207 = vector.load %arg2[%c1720, %c0_97] : memref<1736x64xf32, #tpu.memory_space<vmem>>, vector<1x64xf32>
    %c1728 = arith.constant 1728 : index
    %c0_98 = arith.constant 0 : index
    %208 = vector.load %arg2[%c1728, %c0_98] : memref<1736x64xf32, #tpu.memory_space<vmem>>, vector<1x64xf32>
    %cst_99 = arith.constant dense<0.000000e+00> : vector<48xf32>
    %209 = vector.multi_reduction <add>, %206, %cst_99 [1] : vector<48x64xf32> to vector<48xf32>
    %210 = vector.shape_cast %209 : vector<48xf32> to vector<48x1xf32>
    %cst_100 = arith.constant 6.400000e+01 : f32
    %211 = vector.broadcast %cst_100 : f32 to vector<48x1xf32>
    %212 = arith.divf %210, %211 : vector<48x1xf32>
    %213 = vector.broadcast %212 : vector<48x1xf32> to vector<48x64xf32>
    %214 = arith.subf %206, %213 : vector<48x64xf32>
    %215 = arith.mulf %214, %214 : vector<48x64xf32>
    %cst_101 = arith.constant dense<0.000000e+00> : vector<48xf32>
    %216 = vector.multi_reduction <add>, %215, %cst_101 [1] : vector<48x64xf32> to vector<48xf32>
    %217 = vector.shape_cast %216 : vector<48xf32> to vector<48x1xf32>
    %cst_102 = arith.constant 6.400000e+01 : f32
    %218 = vector.broadcast %cst_102 : f32 to vector<48x1xf32>
    %219 = arith.divf %217, %218 : vector<48x1xf32>
    %cst_103 = arith.constant 9.99999974E-6 : f32
    %220 = vector.broadcast %cst_103 : f32 to vector<48x1xf32>
    %221 = arith.addf %219, %220 : vector<48x1xf32>
    %222 = math.rsqrt %221 : vector<48x1xf32>
    %223 = vector.broadcast %222 : vector<48x1xf32> to vector<48x64xf32>
    %224 = arith.mulf %214, %223 : vector<48x64xf32>
    %225 = vector.broadcast %207 : vector<1x64xf32> to vector<48x64xf32>
    %226 = arith.mulf %224, %225 : vector<48x64xf32>
    %227 = vector.broadcast %208 : vector<1x64xf32> to vector<48x64xf32>
    %228 = arith.addf %226, %227 : vector<48x64xf32>
    %c1440 = arith.constant 1440 : index
    %c0_104 = arith.constant 0 : index
    %229 = vector.load %arg2[%c1440, %c0_104] : memref<1736x64xf32, #tpu.memory_space<vmem>>, vector<48x64xf32>
    %cst_105 = arith.constant 1.000000e+00 : f32
    %230 = vector.broadcast %cst_105 : f32 to vector<48x64xf32>
    %231 = arith.subf %229, %230 : vector<48x64xf32>
    %cst_106 = arith.constant 1.000000e+30 : f32
    %232 = vector.broadcast %cst_106 : f32 to vector<48x64xf32>
    %233 = arith.mulf %231, %232 : vector<48x64xf32>
    %234 = arith.addf %228, %233 : vector<48x64xf32>
    %235 = vector.extract_strided_slice %228 {offsets = [0, 0], sizes = [1, 64], strides = [1, 1]} : vector<48x64xf32> to vector<1x64xf32>
    %236 = vector.extract_strided_slice %234 {offsets = [0, 0], sizes = [24, 64], strides = [1, 1]} : vector<48x64xf32> to vector<24x64xf32>
    %cst_107 = arith.constant dense<0xFF800000> : vector<64xf32>
    %237 = vector.multi_reduction <maximumf>, %236, %cst_107 [0] : vector<24x64xf32> to vector<64xf32>
    %238 = vector.shape_cast %237 : vector<64xf32> to vector<1x64xf32>
    %239 = tpu.concatenate %235, %238 in 1 : vector<1x64xf32>, vector<1x64xf32> -> vector<1x128xf32>
    %240 = vector.extract_strided_slice %228 {offsets = [24, 0], sizes = [1, 64], strides = [1, 1]} : vector<48x64xf32> to vector<1x64xf32>
    %241 = vector.extract_strided_slice %234 {offsets = [24, 0], sizes = [24, 64], strides = [1, 1]} : vector<48x64xf32> to vector<24x64xf32>
    %cst_108 = arith.constant dense<0xFF800000> : vector<64xf32>
    %242 = vector.multi_reduction <maximumf>, %241, %cst_108 [0] : vector<24x64xf32> to vector<64xf32>
    %243 = vector.shape_cast %242 : vector<64xf32> to vector<1x64xf32>
    %244 = tpu.concatenate %240, %243 in 1 : vector<1x64xf32>, vector<1x64xf32> -> vector<1x128xf32>
    %245 = tpu.concatenate %239, %244 in 0 : vector<1x128xf32>, vector<1x128xf32> -> vector<2x128xf32>
    %c0_109 = arith.constant 0 : index
    %c64 = arith.constant 64 : index
    %246 = vector.load %arg1[%c0_109, %c64] : memref<8x128xf32, #tpu.memory_space<vmem>>, vector<2x64xf32>
    %c384 = arith.constant 384 : index
    %c0_110 = arith.constant 0 : index
    %247 = vector.load %arg3[%c384, %c0_110] : memref<592x192xf32, #tpu.memory_space<vmem>>, vector<128x192xf32>
    %cst_111 = arith.constant dense<0.000000e+00> : vector<2x192xf32>
    %248 = tpu.matmul %245, %247, %cst_111 {dimension_numbers = #tpu.dot_dimension_numbers<[1], [0], [0], [1], [0, 0, 1, 1], [], []>} : vector<2x128xf32>, vector<128x192xf32>, vector<2x192xf32> -> vector<2x192xf32>
    %c576 = arith.constant 576 : index
    %c0_112 = arith.constant 0 : index
    %249 = vector.load %arg3[%c576, %c0_112] : memref<592x192xf32, #tpu.memory_space<vmem>>, vector<1x192xf32>
    %250 = vector.broadcast %249 : vector<1x192xf32> to vector<2x192xf32>
    %251 = arith.addf %248, %250 : vector<2x192xf32>
    %c512 = arith.constant 512 : index
    %c0_113 = arith.constant 0 : index
    %252 = vector.load %arg3[%c512, %c0_113] : memref<592x192xf32, #tpu.memory_space<vmem>>, vector<64x192xf32>
    %cst_114 = arith.constant dense<0.000000e+00> : vector<2x192xf32>
    %253 = tpu.matmul %246, %252, %cst_114 {dimension_numbers = #tpu.dot_dimension_numbers<[1], [0], [0], [1], [0, 0, 1, 1], [], []>} : vector<2x64xf32>, vector<64x192xf32>, vector<2x192xf32> -> vector<2x192xf32>
    %c584 = arith.constant 584 : index
    %c0_115 = arith.constant 0 : index
    %254 = vector.load %arg3[%c584, %c0_115] : memref<592x192xf32, #tpu.memory_space<vmem>>, vector<1x192xf32>
    %255 = vector.broadcast %254 : vector<1x192xf32> to vector<2x192xf32>
    %256 = arith.addf %253, %255 : vector<2x192xf32>
    %257 = vector.extract_strided_slice %251 {offsets = [0, 0], sizes = [2, 64], strides = [1, 1]} : vector<2x192xf32> to vector<2x64xf32>
    %258 = vector.extract_strided_slice %256 {offsets = [0, 0], sizes = [2, 64], strides = [1, 1]} : vector<2x192xf32> to vector<2x64xf32>
    %259 = arith.addf %257, %258 : vector<2x64xf32>
    %260 = arith.negf %259 : vector<2x64xf32>
    %261 = math.exp %260 : vector<2x64xf32>
    %cst_116 = arith.constant 1.000000e+00 : f32
    %262 = vector.broadcast %cst_116 : f32 to vector<2x64xf32>
    %263 = arith.addf %262, %261 : vector<2x64xf32>
    %264 = arith.divf %262, %263 : vector<2x64xf32>
    %265 = vector.extract_strided_slice %251 {offsets = [0, 64], sizes = [2, 64], strides = [1, 1]} : vector<2x192xf32> to vector<2x64xf32>
    %266 = vector.extract_strided_slice %256 {offsets = [0, 64], sizes = [2, 64], strides = [1, 1]} : vector<2x192xf32> to vector<2x64xf32>
    %267 = arith.addf %265, %266 : vector<2x64xf32>
    %268 = arith.negf %267 : vector<2x64xf32>
    %269 = math.exp %268 : vector<2x64xf32>
    %cst_117 = arith.constant 1.000000e+00 : f32
    %270 = vector.broadcast %cst_117 : f32 to vector<2x64xf32>
    %271 = arith.addf %270, %269 : vector<2x64xf32>
    %272 = arith.divf %270, %271 : vector<2x64xf32>
    %273 = vector.extract_strided_slice %251 {offsets = [0, 128], sizes = [2, 64], strides = [1, 1]} : vector<2x192xf32> to vector<2x64xf32>
    %274 = vector.extract_strided_slice %256 {offsets = [0, 128], sizes = [2, 64], strides = [1, 1]} : vector<2x192xf32> to vector<2x64xf32>
    %275 = arith.mulf %264, %274 : vector<2x64xf32>
    %276 = arith.addf %273, %275 : vector<2x64xf32>
    %277 = math.tanh %276 : vector<2x64xf32>
    %cst_118 = arith.constant 1.000000e+00 : f32
    %278 = vector.broadcast %cst_118 : f32 to vector<2x64xf32>
    %279 = arith.subf %278, %272 : vector<2x64xf32>
    %280 = arith.mulf %279, %277 : vector<2x64xf32>
    %281 = arith.mulf %272, %246 : vector<2x64xf32>
    %282 = arith.addf %280, %281 : vector<2x64xf32>
    %c0_119 = arith.constant 0 : index
    %c0_120 = arith.constant 0 : index
    %283 = vector.load %arg4[%c0_119, %c0_120] : memref<2x64xf32, #tpu.memory_space<vmem>>, vector<2x64xf32>
    tpu.vector_store %arg4[%c0_119, %c0_120], %282 {strides = array<i32>} : memref<2x64xf32, #tpu.memory_space<vmem>>, vector<2x64xf32>,
    return
  }
}

</mosaic_0001>

<llo_original>
// kernel: loco_transformer_lstm_forward.1
$region0: #{loco_transformer_lstm_forward.1}
  #allocation0 [shape = 'u32[]', space=smem, size = 0x4, offset = 0x4, fixed_abs, tag = 'smem constant byte address 0x4 - core index']
  #allocation1 [shape = 'u32[144,128]{1,0:T(1,128)}', space=vmem, size = 0x12000, scoped, tag = 'internal scratch']
  %s0 = inlined_call_operand.vmem [shape: f32[288,256], index: 0, kind: input, shape index: {}]
  %s1 = inlined_call_operand.vmem [shape: f32[8,128], index: 1, kind: input, shape index: {}]
  %s2 = inlined_call_operand.vmem [shape: f32[1736,64], index: 2, kind: input, shape index: {}]
  %s3 = inlined_call_operand.vmem [shape: f32[592,192], index: 3, kind: input, shape index: {}]
  %s4 = inlined_call_operand.vmem [shape: f32[2,64], index: 4, kind: output, shape index: {}]
  %s5 = sld [smem:[#allocation0]]
  $region26: #{loco_transformer_lstm_forward.1} parent=0
    _
  %s7 = ssub.s32 1, %s5
  %s8 = scalar_select 0, %s7, %s5
  // Predicated region
  $region2: #{loco_transformer_lstm_forward.1} parent=0 // pred_check
    _
  $region3: #{loco_transformer_lstm_forward.1} parent=0 // pred_check_branch
    %10 = sbr.rel (0) target = $region5
  $region4: #{loco_transformer_lstm_forward.1} parent=0 // pred_region
    _
  $region5: #{loco_transformer_lstm_forward.1} parent=0 // pred_fallthru
    _
  // Predicated region
  $region6: #{loco_transformer_lstm_forward.1} parent=0 // pred_check
    _
  $region7: #{loco_transformer_lstm_forward.1} parent=0 // pred_check_branch
    %12 = sbr.rel (0) target = $region9
  $region8: #{loco_transformer_lstm_forward.1} parent=0 // pred_region
    _
  $region9: #{loco_transformer_lstm_forward.1} parent=0 // pred_fallthru
    _
  // Predicated region
  $region10: #{loco_transformer_lstm_forward.1} parent=0 // pred_check
    _
  $region11: #{loco_transformer_lstm_forward.1} parent=0 // pred_check_branch
    %14 = sbr.rel (0) target = $region13
  $region12: #{loco_transformer_lstm_forward.1} parent=0 // pred_region
    _
  $region13: #{loco_transformer_lstm_forward.1} parent=0 // pred_fallthru
    _
  // Predicated region
  $region14: #{loco_transformer_lstm_forward.1} parent=0 // pred_check
    _
  $region15: #{loco_transformer_lstm_forward.1} parent=0 // pred_check_branch
    %16 = sbr.rel (0) target = $region17
  $region16: #{loco_transformer_lstm_forward.1} parent=0 // pred_region
    _
  $region17: #{loco_transformer_lstm_forward.1} parent=0 // pred_fallthru
    _
  %v17 = vld [vmem:[%s0] sm:$0xff]
  %v18 = vld [vmem:[%s0 + $0x8] sm:$0xff]
  %v19 = vld [vmem:[%s0 + $0x10] sm:$0xff]
  %v20 = vld [vmem:[%s0 + $0x18] sm:$0xff]
  %v21 = vld [vmem:[%s0 + $0x20] sm:$0xff]
  %v22 = vld [vmem:[%s0 + $0x28] sm:$0xff]
  %v23 = vld [vmem:[%s0 + $0x30] sm:$0xff]
  %v24 = vld [vmem:[%s0 + $0x38] sm:$0xff]
  %v25 = vld [vmem:[%s0 + $0x40] sm:$0xff]
  %v26 = vld [vmem:[%s0 + $0x48] sm:$0xff]
  %v27 = vld [vmem:[%s0 + $0x50] sm:$0xff]
  %v28 = vld [vmem:[%s0 + $0x58] sm:$0xff]
  %v29 = vld [vmem:[%s0 + $0x60] sm:$0xff]
  %v30 = vld [vmem:[%s0 + $0x68] sm:$0xff]
  %v31 = vld [vmem:[%s0 + $0x70] sm:$0xff]
  %v32 = vld [vmem:[%s0 + $0x78] sm:$0xff]
  %v33 = vld [vmem:[%s0 + $0x80] sm:$0xff]
  %v34 = vld [vmem:[%s0 + $0x88] sm:$0xff]
  %v35 = vld [vmem:[%s0 + $0x90] sm:$0xff]
  %v36 = vld [vmem:[%s0 + $0x98] sm:$0xff]
  %v37 = vld [vmem:[%s0 + $0xa0] sm:$0xff]
  %v38 = vld [vmem:[%s0 + $0xa8] sm:$0xff]
  %v39 = vld [vmem:[%s0 + $0xb0] sm:$0xff]
  %v40 = vld [vmem:[%s0 + $0xb8] sm:$0xff]
  %v41 = vld [vmem:[%s0 + $0xc0] sm:$0xff]
  %v42 = vld [vmem:[%s0 + $0xc8] sm:$0xff]
  %v43 = vld [vmem:[%s0 + $0xd0] sm:$0xff]
  %v44 = vld [vmem:[%s0 + $0xd8] sm:$0xff]
  %v45 = vld [vmem:[%s0 + $0xe0] sm:$0xff]
  %v46 = vld [vmem:[%s0 + $0xe8] sm:$0xff]
  %v47 = vld [vmem:[%s0 + $0xf0] sm:$0xff]
  %v48 = vld [vmem:[%s0 + $0xf8] sm:$0xff]
  %v49 = vld [vmem:[%s0 + $0x100] sm:$0xff]
  %v50 = vld [vmem:[%s0 + $0x108] sm:$0xff]
  %v51 = vld [vmem:[%s0 + $0x110] sm:$0xff]
  %v52 = vld [vmem:[%s0 + $0x118] sm:$0xff]
  %v53 = vld [vmem:[%s0 + $0x120] sm:$0xff]
  %v54 = vld [vmem:[%s0 + $0x128] sm:$0xff]
  %v55 = vld [vmem:[%s0 + $0x130] sm:$0xff]
  %v56 = vld [vmem:[%s0 + $0x138] sm:$0xff]
  %v57 = vld [vmem:[%s0 + $0x140] sm:$0xff]
  %v58 = vld [vmem:[%s0 + $0x148] sm:$0xff]
  %v59 = vld [vmem:[%s0 + $0x150] sm:$0xff]
  %v60 = vld [vmem:[%s0 + $0x158] sm:$0xff]
  %v61 = vld [vmem:[%s0 + $0x160] sm:$0xff]
  %v62 = vld [vmem:[%s0 + $0x168] sm:$0xff]
  %v63 = vld [vmem:[%s0 + $0x170] sm:$0xff]
  %v64 = vld [vmem:[%s0 + $0x178] sm:$0xff]
  %v65 = vld [vmem:[%s0 + $0x180] sm:$0xff]
  %v66 = vld [vmem:[%s0 + $0x188] sm:$0xff]
  %v67 = vld [vmem:[%s0 + $0x190] sm:$0xff]
  %v68 = vld [vmem:[%s0 + $0x198] sm:$0xff]
  %v69 = vld [vmem:[%s0 + $0x1a0] sm:$0xff]
  %v70 = vld [vmem:[%s0 + $0x1a8] sm:$0xff]
  %v71 = vld [vmem:[%s0 + $0x1b0] sm:$0xff]
  %v72 = vld [vmem:[%s0 + $0x1b8] sm:$0xff]
  %v73 = vld [vmem:[%s0 + $0x1c0] sm:$0xff]
  %v74 = vld [vmem:[%s0 + $0x1c8] sm:$0xff]
  %v75 = vld [vmem:[%s0 + $0x1d0] sm:$0xff]
  %v76 = vld [vmem:[%s0 + $0x1d8] sm:$0xff]
  %v77 = vld [vmem:[%s0 + $0x1e0] sm:$0xff]
  %v78 = vld [vmem:[%s0 + $0x1e8] sm:$0xff]
  %v79 = vld [vmem:[%s0 + $0x1f0] sm:$0xff]
  %v80 = vld [vmem:[%s0 + $0x1f8] sm:$0xff]
  %v81 = vld [vmem:[%s0 + $0x200] sm:$0xff]
  %v82 = vld [vmem:[%s0 + $0x208] sm:$0xff]
  %v83 = vld [vmem:[%s0 + $0x210] sm:$0xff]
  %v84 = vld [vmem:[%s0 + $0x218] sm:$0xff]
  %v85 = vld [vmem:[%s0 + $0x220] sm:$0xff]
  %v86 = vld [vmem:[%s0 + $0x228] sm:$0xff]
  %v87 = vld [vmem:[%s0 + $0x230] sm:$0xff]
  %v88 = vld [vmem:[%s0 + $0x238] sm:$0xff]
  %v89 = vld [vmem:[%s3] sm:$0xff]
  %v90 = vld [vmem:[%s3 + $0x10] sm:$0xff]
  %v91 = vld [vmem:[%s3 + $0x20] sm:$0xff]
  %v92 = vld [vmem:[%s3 + $0x30] sm:$0xff]
  %v93 = vld [vmem:[%s3 + $0x40] sm:$0xff]
  %v94 = vld [vmem:[%s3 + $0x50] sm:$0xff]
  %v95 = vld [vmem:[%s3 + $0x60] sm:$0xff]
  %v96 = vld [vmem:[%s3 + $0x70] sm:$0xff]
  %v97 = vld [vmem:[%s3 + $0x80] sm:$0xff]
  %v98 = vld [vmem:[%s3 + $0x90] sm:$0xff]
  %v99 = vld [vmem:[%s3 + $0xa0] sm:$0xff]
  %v100 = vld [vmem:[%s3 + $0xb0] sm:$0xff]
  %v101 = vld [vmem:[%s3 + $0xc0] sm:$0xff]
  %v102 = vld [vmem:[%s3 + $0xd0] sm:$0xff]
  %v103 = vld [vmem:[%s3 + $0xe0] sm:$0xff]
  %v104 = vld [vmem:[%s3 + $0xf0] sm:$0xff]
  %v105 = vld [vmem:[%s3 + $0x100] sm:$0xff]
  %v106 = vld [vmem:[%s3 + $0x110] sm:$0xff]
  %v107 = vld [vmem:[%s3 + $0x120] sm:$0xff]
  %v108 = vld [vmem:[%s3 + $0x130] sm:$0xff]
  %v109 = vld [vmem:[%s3 + $0x140] sm:$0xff]
  %v110 = vld [vmem:[%s3 + $0x150] sm:$0xff]
  %v111 = vld [vmem:[%s3 + $0x160] sm:$0xff]
  %v112 = vld [vmem:[%s3 + $0x170] sm:$0xff]
  %v113 = vld [vmem:[%s3 + $0x180] sm:$0xff]
  %v114 = vld [vmem:[%s3 + $0x190] sm:$0xff]
  %v115 = vld [vmem:[%s3 + $0x1a0] sm:$0xff]
  %v116 = vld [vmem:[%s3 + $0x1b0] sm:$0xff]
  %v117 = vld [vmem:[%s3 + $0x1c0] sm:$0xff]
  %v118 = vld [vmem:[%s3 + $0x1d0] sm:$0xff]
  %v119 = vld [vmem:[%s3 + $0x1e0] sm:$0xff]
  %v120 = vld [vmem:[%s3 + $0x1f0] sm:$0xff]
  %v121 = vld [vmem:[%s3 + $0x200] ss:$0 sm:$0xff]
  %122 = vmatprep.subr.mxu0 0.0
  %123 = vmatpush1.msra.mxu0 %v89
  %124 = vmatprep.subr.mxu0 0.0
  %125 = vmatpush1.msra.mxu0 %v90
  %126 = vmatprep.subr.mxu0 0.0
  %127 = vmatpush1.msra.mxu0 %v91
  %128 = vmatprep.subr.mxu0 0.0
  %129 = vmatpush1.msra.mxu0 %v92
  %130 = vmatprep.subr.mxu0 0.0
  %131 = vmatpush1.msra.mxu0 %v93
  %132 = vmatprep.subr.mxu0 0.0
  %133 = vmatpush1.msra.mxu0 %v94
  %134 = vmatprep.subr.mxu0 0.0
  %135 = vmatpush1.msra.mxu0 %v95
  %136 = vmatprep.subr.mxu0 0.0
  %137 = vmatpush1.msra.mxu0 %v96
  %138 = vmatprep.subr.mxu0 0.0
  %139 = vmatpush1.msra.mxu0 %v97
  %140 = vmatprep.subr.mxu0 0.0
  %141 = vmatpush1.msra.mxu0 %v98
  %142 = vmatprep.subr.mxu0 0.0
  %143 = vmatpush1.msra.mxu0 %v99
  %144 = vmatprep.subr.mxu0 0.0
  %145 = vmatpush1.msra.mxu0 %v100
  %146 = vmatprep.subr.mxu0 0.0
  %147 = vmatpush1.msra.mxu0 %v101
  %148 = vmatprep.subr.mxu0 0.0
  %149 = vmatpush1.msra.mxu0 %v102
  %150 = vmatprep.subr.mxu0 0.0
  %151 = vmatpush1.msra.mxu0 %v103
  %152 = vmatprep.subr.mxu0 0.0
  %153 = vmatpush1.msra.mxu0 %v104
  %154 = vmatprep.subr.mxu0 0.0
  %155 = vmatpush1.msra.mxu0 %v105
  %156 = vmatprep.subr.mxu0 0.0
  %157 = vmatpush1.msra.mxu0 %v106
  %158 = vmatprep.subr.mxu0 0.0
  %159 = vmatpush1.msra.mxu0 %v107
  %160 = vmatprep.subr.mxu0 0.0
  %161 = vmatpush1.msra.mxu0 %v108
  %162 = vmatprep.subr.mxu0 0.0
  %163 = vmatpush1.msra.mxu0 %v109
  %164 = vmatprep.subr.mxu0 0.0
  %165 = vmatpush1.msra.mxu0 %v110
  %166 = vmatprep.subr.mxu0 0.0
  %167 = vmatpush1.msra.mxu0 %v111
  %168 = vmatprep.subr.mxu0 0.0
  %169 = vmatpush1.msra.mxu0 %v112
  %170 = vmatprep.subr.mxu0 0.0
  %171 = vmatpush1.msra.mxu0 %v113
  %172 = vmatprep.subr.mxu0 0.0
  %173 = vmatpush1.msra.mxu0 %v114
  %174 = vmatprep.subr.mxu0 0.0
  %175 = vmatpush1.msra.mxu0 %v115
  %176 = vmatprep.subr.mxu0 0.0
  %177 = vmatpush1.msra.mxu0 %v116
  %178 = vmatprep.subr.mxu0 0.0
  %179 = vmatpush1.msra.mxu0 %v117
  %180 = vmatprep.subr.mxu0 0.0
  %181 = vmatpush1.msra.mxu0 %v118
  %182 = vmatprep.subr.mxu0 0.0
  %183 = vmatpush1.msra.mxu0 %v119
  %184 = vmatprep.subr.mxu0 0.0
  %185 = vmatpush1.msra.mxu0 %v120
  %186 = vmatprep.mubr.f32.mxu0 %v18
  %187 = vmatmul.mubr.f32.gmra.mrb[0].mxu0 %v17
  %v188 = vpop.f32.mrb[0].mxu0
  %v189 = vadd.f32 %v121, %v188
  %v190 = vpop.f32.mrb[0].mxu0
  %191 = vmatprep.mubr.f32.mxu0 %v20
  %192 = vmatmul.mubr.f32.gmra.mrb[0].mxu0 %v19
  %v193 = vpop.f32.mrb[0].mxu0
  %v194 = vadd.f32 %v121, %v193
  %v195 = vpop.f32.mrb[0].mxu0
  %196 = vmatprep.mubr.f32.mxu0 %v22
  %197 = vmatmul.mubr.f32.gmra.mrb[0].mxu0 %v21
  %v198 = vpop.f32.mrb[0].mxu0
  %v199 = vadd.f32 %v121, %v198
  %v200 = vpop.f32.mrb[0].mxu0
  %201 = vmatprep.mubr.f32.mxu0 %v24
  %202 = vmatmul.mubr.f32.gmra.mrb[0].mxu0 %v23
  %v203 = vpop.f32.mrb[0].mxu0
  %v204 = vadd.f32 %v121, %v203
  %v205 = vpop.f32.mrb[0].mxu0
  %206 = vmatprep.mubr.f32.mxu0 %v26
  %207 = vmatmul.mubr.f32.gmra.mrb[0].mxu0 %v25
  %v208 = vpop.f32.mrb[0].mxu0
  %v209 = vadd.f32 %v121, %v208
  %v210 = vpop.f32.mrb[0].mxu0
  %211 = vmatprep.mubr.f32.mxu0 %v28
  %212 = vmatmul.mubr.f32.gmra.mrb[0].mxu0 %v27
  %v213 = vpop.f32.mrb[0].mxu0
  %v214 = vadd.f32 %v121, %v213
  %v215 = vpop.f32.mrb[0].mxu0
  %216 = vmatprep.mubr.f32.mxu0 %v30
  %217 = vmatmul.mubr.f32.gmra.mrb[0].mxu0 %v29
  %v218 = vpop.f32.mrb[0].mxu0
  %v219 = vadd.f32 %v121, %v218
  %v220 = vpop.f32.mrb[0].mxu0
  %221 = vmatprep.mubr.f32.mxu0 %v32
  %222 = vmatmul.mubr.f32.gmra.mrb[0].mxu0 %v31
  %v223 = vpop.f32.mrb[0].mxu0
  %v224 = vadd.f32 %v121, %v223
  %v225 = vpop.f32.mrb[0].mxu0
  %226 = vmatprep.mubr.f32.mxu0 %v34
  %227 = vmatmul.mubr.f32.gmra.mrb[0].mxu0 %v33
  %v228 = vpop.f32.mrb[0].mxu0
  %v229 = vadd.f32 %v121, %v228
  %v230 = vpop.f32.mrb[0].mxu0
  %231 = vmatprep.mubr.f32.mxu0 %v36
  %232 = vmatmul.mubr.f32.gmra.mrb[0].mxu0 %v35
  %v233 = vpop.f32.mrb[0].mxu0
  %v234 = vadd.f32 %v121, %v233
  %v235 = vpop.f32.mrb[0].mxu0
  %236 = vmatprep.mubr.f32.mxu0 %v38
  %237 = vmatmul.mubr.f32.gmra.mrb[0].mxu0 %v37
  %v238 = vpop.f32.mrb[0].mxu0
  %v239 = vadd.f32 %v121, %v238
  %v240 = vpop.f32.mrb[0].mxu0
  %241 = vmatprep.mubr.f32.mxu0 %v40
  %242 = vmatmul.mubr.f32.gmra.mrb[0].mxu0 %v39
  %v243 = vpop.f32.mrb[0].mxu0
  %v244 = vadd.f32 %v121, %v243
  %v245 = vpop.f32.mrb[0].mxu0
  %246 = vmatprep.mubr.f32.mxu0 %v42
  %247 = vmatmul.mubr.f32.gmra.mrb[0].mxu0 %v41
  %v248 = vpop.f32.mrb[0].mxu0
  %v249 = vadd.f32 %v121, %v248
  %v250 = vpop.f32.mrb[0].mxu0
  %251 = vmatprep.mubr.f32.mxu0 %v44
  %252 = vmatmul.mubr.f32.gmra.mrb[0].mxu0 %v43
  %v253 = vpop.f32.mrb[0].mxu0
  %v254 = vadd.f32 %v121, %v253
  %v255 = vpop.f32.mrb[0].mxu0
  %256 = vmatprep.mubr.f32.mxu0 %v46
  %257 = vmatmul.mubr.f32.gmra.mrb[0].mxu0 %v45
  %v258 = vpop.f32.mrb[0].mxu0
  %v259 = vadd.f32 %v121, %v258
  %v260 = vpop.f32.mrb[0].mxu0
  %261 = vmatprep.mubr.f32.mxu0 %v48
  %262 = vmatmul.mubr.f32.gmra.mrb[0].mxu0 %v47
  %v263 = vpop.f32.mrb[0].mxu0
  %v264 = vadd.f32 %v121, %v263
  %v265 = vpop.f32.mrb[0].mxu0
  %266 = vmatprep.mubr.f32.mxu0 %v50
  %267 = vmatmul.mubr.f32.gmra.mrb[0].mxu0 %v49
  %v268 = vpop.f32.mrb[0].mxu0
  %v269 = vadd.f32 %v121, %v268
  %v270 = vpop.f32.mrb[0].mxu0
  %271 = vmatprep.mubr.f32.mxu0 %v52
  %272 = vmatmul.mubr.f32.gmra.mrb[0].mxu0 %v51
  %v273 = vpop.f32.mrb[0].mxu0
  %v274 = vadd.f32 %v121, %v273
  %v275 = vpop.f32.mrb[0].mxu0
  %276 = vmatprep.mubr.f32.mxu0 %v54
  %277 = vmatmul.mubr.f32.gmra.mrb[0].mxu0 %v53
  %v278 = vpop.f32.mrb[0].mxu0
  %v279 = vadd.f32 %v121, %v278
  %v280 = vpop.f32.mrb[0].mxu0
  %281 = vmatprep.mubr.f32.mxu0 %v56
  %282 = vmatmul.mubr.f32.gmra.mrb[0].mxu0 %v55
  %v283 = vpop.f32.mrb[0].mxu0
  %v284 = vadd.f32 %v121, %v283
  %v285 = vpop.f32.mrb[0].mxu0
  %286 = vmatprep.mubr.f32.mxu0 %v58
  %287 = vmatmul.mubr.f32.gmra.mrb[0].mxu0 %v57
  %v288 = vpop.f32.mrb[0].mxu0
  %v289 = vadd.f32 %v121, %v288
  %v290 = vpop.f32.mrb[0].mxu0
  %291 = vmatprep.mubr.f32.mxu0 %v60
  %292 = vmatmul.mubr.f32.gmra.mrb[0].mxu0 %v59
  %v293 = vpop.f32.mrb[0].mxu0
  %v294 = vadd.f32 %v121, %v293
  %v295 = vpop.f32.mrb[0].mxu0
  %296 = vmatprep.mubr.f32.mxu0 %v62
  %297 = vmatmul.mubr.f32.gmra.mrb[0].mxu0 %v61
  %v298 = vpop.f32.mrb[0].mxu0
  %v299 = vadd.f32 %v121, %v298
  %v300 = vpop.f32.mrb[0].mxu0
  %301 = vmatprep.mubr.f32.mxu0 %v64
  %302 = vmatmul.mubr.f32.gmra.mrb[0].mxu0 %v63
  %v303 = vpop.f32.mrb[0].mxu0
  %v304 = vadd.f32 %v121, %v303
  %v305 = vpop.f32.mrb[0].mxu0
  %306 = vmatprep.mubr.f32.mxu0 %v66
  %307 = vmatmul.mubr.f32.gmra.mrb[0].mxu0 %v65
  %v308 = vpop.f32.mrb[0].mxu0
  %v309 = vadd.f32 %v121, %v308
  %v310 = vpop.f32.mrb[0].mxu0
  %311 = vmatprep.mubr.f32.mxu0 %v68
  %312 = vmatmul.mubr.f32.gmra.mrb[0].mxu0 %v67
  %v313 = vpop.f32.mrb[0].mxu0
  %v314 = vadd.f32 %v121, %v313
  %v315 = vpop.f32.mrb[0].mxu0
  %316 = vmatprep.mubr.f32.mxu0 %v70
  %317 = vmatmul.mubr.f32.gmra.mrb[0].mxu0 %v69
  %v318 = vpop.f32.mrb[0].mxu0
  %v319 = vadd.f32 %v121, %v318
  %v320 = vpop.f32.mrb[0].mxu0
  %321 = vmatprep.mubr.f32.mxu0 %v72
  %322 = vmatmul.mubr.f32.gmra.mrb[0].mxu0 %v71
  %v323 = vpop.f32.mrb[0].mxu0
  %v324 = vadd.f32 %v121, %v323
  %v325 = vpop.f32.mrb[0].mxu0
  %326 = vmatprep.mubr.f32.mxu0 %v74
  %327 = vmatmul.mubr.f32.gmra.mrb[0].mxu0 %v73
  %v328 = vpop.f32.mrb[0].mxu0
  %v329 = vadd.f32 %v121, %v328
  %v330 = vpop.f32.mrb[0].mxu0
  %331 = vmatprep.mubr.f32.mxu0 %v76
  %332 = vmatmul.mubr.f32.gmra.mrb[0].mxu0 %v75
  %v333 = vpop.f32.mrb[0].mxu0
  %v334 = vadd.f32 %v121, %v333
  %v335 = vpop.f32.mrb[0].mxu0
  %336 = vmatprep.mubr.f32.mxu0 %v78
  %337 = vmatmul.mubr.f32.gmra.mrb[0].mxu0 %v77
  %v338 = vpop.f32.mrb[0].mxu0
  %v339 = vadd.f32 %v121, %v338
  %v340 = vpop.f32.mrb[0].mxu0
  %341 = vmatprep.mubr.f32.mxu0 %v80
  %342 = vmatmul.mubr.f32.gmra.mrb[0].mxu0 %v79
  %v343 = vpop.f32.mrb[0].mxu0
  %v344 = vadd.f32 %v121, %v343
  %v345 = vpop.f32.mrb[0].mxu0
  %346 = vmatprep.mubr.f32.mxu0 %v82
  %347 = vmatmul.mubr.f32.gmra.mrb[0].mxu0 %v81
  %v348 = vpop.f32.mrb[0].mxu0
  %v349 = vadd.f32 %v121, %v348
  %v350 = vpop.f32.mrb[0].mxu0
  %351 = vmatprep.mubr.f32.mxu0 %v84
  %352 = vmatmul.mubr.f32.gmra.mrb[0].mxu0 %v83
  %v353 = vpop.f32.mrb[0].mxu0
  %v354 = vadd.f32 %v121, %v353
  %v355 = vpop.f32.mrb[0].mxu0
  %356 = vmatprep.mubr.f32.mxu0 %v86
  %357 = vmatmul.mubr.f32.gmra.mrb[0].mxu0 %v85
  %v358 = vpop.f32.mrb[0].mxu0
  %v359 = vadd.f32 %v121, %v358
  %v360 = vpop.f32.mrb[0].mxu0
  %361 = vmatprep.mubr.f32.mxu0 %v88
  %362 = vmatmul.mubr.f32.gmra.mrb[0].mxu0 %v87
  %v363 = vpop.f32.mrb[0].mxu0
  %v364 = vadd.f32 %v121, %v363
  %v365 = vpop.f32.mrb[0].mxu0
  %366 = vdwg.mxu0
  %v367 = vmax.f32 %v189, 0.0
  %v368 = vmax.f32 %v194, 0.0
  %v369 = vmax.f32 %v199, 0.0
  %v370 = vmax.f32 %v204, 0.0
  %v371 = vmax.f32 %v209, 0.0
  %v372 = vmax.f32 %v214, 0.0
  %v373 = vmax.f32 %v219, 0.0
  %v374 = vmax.f32 %v224, 0.0
  %v375 = vmax.f32 %v229, 0.0
  %v376 = vmax.f32 %v234, 0.0
  %v377 = vmax.f32 %v239, 0.0
  %v378 = vmax.f32 %v244, 0.0
  %v379 = vmax.f32 %v249, 0.0
  %v380 = vmax.f32 %v254, 0.0
  %v381 = vmax.f32 %v259, 0.0
  %v382 = vmax.f32 %v264, 0.0
  %v383 = vmax.f32 %v269, 0.0
  %v384 = vmax.f32 %v274, 0.0
  %v385 = vmax.f32 %v279, 0.0
  %v386 = vmax.f32 %v284, 0.0
  %v387 = vmax.f32 %v289, 0.0
  %v388 = vmax.f32 %v294, 0.0
  %v389 = vmax.f32 %v299, 0.0
  %v390 = vmax.f32 %v304, 0.0
  %v391 = vmax.f32 %v309, 0.0
  %v392 = vmax.f32 %v314, 0.0
  %v393 = vmax.f32 %v319, 0.0
  %v394 = vmax.f32 %v324, 0.0
  %v395 = vmax.f32 %v329, 0.0
  %v396 = vmax.f32 %v334, 0.0
  %v397 = vmax.f32 %v339, 0.0
  %v398 = vmax.f32 %v344, 0.0
  %v399 = vmax.f32 %v349, 0.0
  %v400 = vmax.f32 %v354, 0.0
  %v401 = vmax.f32 %v359, 0.0
  %v402 = vmax.f32 %v364, 0.0
  %v403 = vld [vmem:[%s2] sm:$0x1]
  %v404 = vld [vmem:[%s2 + $0x8] sm:$0xff]
  %v405 = vld [vmem:[%s2 + $0x10] sm:$0xff]
  %v406 = vld [vmem:[%s2 + $0x18] sm:$0xff]
  %v407 = vld [vmem:[%s2 + $0x20] sm:$0xff]
  %v408 = vld [vmem:[%s2 + $0x28] sm:$0xff]
  %v409 = vld [vmem:[%s2 + $0x30] sm:$0xff]
  %v410 = vld [vmem:[%s2 + $0x38] sm:$0xff]
  %v411 = vld [vmem:[%s2 + $0x40] sm:$0xff]
  %v412 = vld [vmem:[%s2 + $0x48] sm:$0xff]
  %v413 = vld [vmem:[%s2 + $0x50] sm:$0xff]
  %v414 = vld [vmem:[%s2 + $0x58] sm:$0xff]
  %v415 = vld [vmem:[%s2 + $0x60] sm:$0xff]
  %v416 = vld [vmem:[%s2 + $0x68] sm:$0xff]
  %v417 = vld [vmem:[%s2 + $0x70] sm:$0xff]
  %v418 = vld [vmem:[%s2 + $0x78] sm:$0xff]
  %v419 = vld [vmem:[%s2 + $0x80] sm:$0xff]
  %420 = vmatprep.subr.mxu0 0.0
  %421 = vmatpush1.msra.mxu0 %v404
  %422 = vmatprep.subr.mxu0 0.0
  %423 = vmatpush1.msra.mxu0 %v405
  %424 = vmatprep.subr.mxu0 0.0
  %425 = vmatpush1.msra.mxu0 %v406
  %426 = vmatprep.subr.mxu0 0.0
  %427 = vmatpush1.msra.mxu0 %v407
  %428 = vmatprep.subr.mxu0 0.0
  %429 = vmatpush1.msra.mxu0 %v408
  %430 = vmatprep.subr.mxu0 0.0
  %431 = vmatpush1.msra.mxu0 %v409
  %432 = vmatprep.subr.mxu0 0.0
  %433 = vmatpush1.msra.mxu0 %v410
  %434 = vmatprep.subr.mxu0 0.0
  %435 = vmatpush1.msra.mxu0 %v411
  %436 = vmatprep.subr.mxu0 0.0
  %437 = vmatpush1.msra.mxu0 %v412
  %438 = vmatprep.subr.mxu0 0.0
  %439 = vmatpush1.msra.mxu0 %v413
  %440 = vmatprep.subr.mxu0 0.0
  %441 = vmatpush1.msra.mxu0 %v414
  %442 = vmatprep.subr.mxu0 0.0
  %443 = vmatpush1.msra.mxu0 %v415
  %444 = vmatprep.subr.mxu0 0.0
  %445 = vmatpush1.msra.mxu0 %v416
  %446 = vmatprep.subr.mxu0 0.0
  %447 = vmatpush1.msra.mxu0 %v417
  %448 = vmatprep.subr.mxu0 0.0
  %449 = vmatpush1.msra.mxu0 %v418
  %450 = vmatprep.subr.mxu0 0.0
  %451 = vmatpush1.msra.mxu0 %v419
  %452 = vmatprep.subr.mxu0 0.0
  %453 = vmatpush1.msra.mxu0 0.0
  %454 = vmatprep.subr.mxu0 0.0
  %455 = vmatpush1.msra.mxu0 0.0
  %456 = vmatprep.subr.mxu0 0.0
  %457 = vmatpush1.msra.mxu0 0.0
  %458 = vmatprep.subr.mxu0 0.0
  %459 = vmatpush1.msra.mxu0 0.0
  %460 = vmatprep.subr.mxu0 0.0
  %461 = vmatpush1.msra.mxu0 0.0
  %462 = vmatprep.subr.mxu0 0.0
  %463 = vmatpush1.msra.mxu0 0.0
  %464 = vmatprep.subr.mxu0 0.0
  %465 = vmatpush1.msra.mxu0 0.0
  %466 = vmatprep.subr.mxu0 0.0
  %467 = vmatpush1.msra.mxu0 0.0
  %468 = vmatprep.subr.mxu0 0.0
  %469 = vmatpush1.msra.mxu0 0.0
  %470 = vmatprep.subr.mxu0 0.0
  %471 = vmatpush1.msra.mxu0 0.0
  %472 = vmatprep.subr.mxu0 0.0
  %473 = vmatpush1.msra.mxu0 0.0
  %474 = vmatprep.subr.mxu0 0.0
  %475 = vmatpush1.msra.mxu0 0.0
  %476 = vmatprep.subr.mxu0 0.0
  %477 = vmatpush1.msra.mxu0 0.0
  %478 = vmatprep.subr.mxu0 0.0
  %479 = vmatpush1.msra.mxu0 0.0
  %480 = vmatprep.subr.mxu0 0.0
  %481 = vmatpush1.msra.mxu0 0.0
  %482 = vmatprep.subr.mxu0 0.0
  %483 = vmatpush1.msra.mxu0 0.0
  %484 = vmatprep.mubr.f32.mxu0 0.0
  %485 = vmatmul.mubr.f32.gmra.mrb[0].mxu0 %v367
  %v486 = vpop.f32.mrb[0].mxu0
  %v487 = vadd.f32 0.0, %v486
  %v488 = vpop.f32.mrb[0].mxu0
  %489 = vmatprep.mubr.f32.mxu0 0.0
  %490 = vmatmul.mubr.f32.gmra.mrb[0].mxu0 %v368
  %v491 = vpop.f32.mrb[0].mxu0
  %v492 = vadd.f32 0.0, %v491
  %v493 = vpop.f32.mrb[0].mxu0
  %494 = vmatprep.mubr.f32.mxu0 0.0
  %495 = vmatmul.mubr.f32.gmra.mrb[0].mxu0 %v369
  %v496 = vpop.f32.mrb[0].mxu0
  %v497 = vadd.f32 0.0, %v496
  %v498 = vpop.f32.mrb[0].mxu0
  %499 = vmatprep.mubr.f32.mxu0 0.0
  %500 = vmatmul.mubr.f32.gmra.mrb[0].mxu0 %v370
  %v501 = vpop.f32.mrb[0].mxu0
  %v502 = vadd.f32 0.0, %v501
  %v503 = vpop.f32.mrb[0].mxu0
  %504 = vmatprep.mubr.f32.mxu0 0.0
  %505 = vmatmul.mubr.f32.gmra.mrb[0].mxu0 %v371
  %v506 = vpop.f32.mrb[0].mxu0
  %v507 = vadd.f32 0.0, %v506
  %v508 = vpop.f32.mrb[0].mxu0
  %509 = vmatprep.mubr.f32.mxu0 0.0
  %510 = vmatmul.mubr.f32.gmra.mrb[0].mxu0 %v372
  %v511 = vpop.f32.mrb[0].mxu0
  %v512 = vadd.f32 0.0, %v511
  %v513 = vpop.f32.mrb[0].mxu0
  %514 = vmatprep.mubr.f32.mxu0 0.0
  %515 = vmatmul.mubr.f32.gmra.mrb[0].mxu0 %v373
  %v516 = vpop.f32.mrb[0].mxu0
  %v517 = vadd.f32 0.0, %v516
  %v518 = vpop.f32.mrb[0].mxu0
  %519 = vmatprep.mubr.f32.mxu0 0.0
  %520 = vmatmul.mubr.f32.gmra.mrb[0].mxu0 %v374
  %v521 = vpop.f32.mrb[0].mxu0
  %v522 = vadd.f32 0.0, %v521
  %v523 = vpop.f32.mrb[0].mxu0
  %524 = vmatprep.mubr.f32.mxu0 0.0
  %525 = vmatmul.mubr.f32.gmra.mrb[0].mxu0 %v375
  %v526 = vpop.f32.mrb[0].mxu0
  %v527 = vadd.f32 0.0, %v526
  %v528 = vpop.f32.mrb[0].mxu0
  %529 = vdwg.mxu0
  %v530 = vlaneseq
  %v531 = vshrl.u32 %v530, 7
  %v532 = vsub.s32 0, %v531
  %v533 = vrot.slane %v403, %v532
  %v534 = vadd.f32 %v533, %v487
  %v535 = vadd.f32 %v533, %v492
  %v536 = vadd.f32 %v533, %v497
  %v537 = vadd.f32 %v533, %v502
  %v538 = vadd.f32 %v533, %v507
  %v539 = vadd.f32 %v533, %v512
  %v540 = vadd.f32 %v533, %v517
  %v541 = vadd.f32 %v533, %v522
  %v542 = vadd.f32 %v533, %v527
  %v543 = vld [vmem:[%s2 + $0x88] sm:$0xff]
  %v544 = vld [vmem:[%s2 + $0x90] sm:$0xff]
  %v545 = vld [vmem:[%s2 + $0x98] sm:$0xff]
  %v546 = vld [vmem:[%s2 + $0xa0] sm:$0xff]
  %v547 = vld [vmem:[%s2 + $0xa8] sm:$0xff]
  %v548 = vld [vmem:[%s2 + $0xb0] sm:$0xff]
  %v549 = vld [vmem:[%s2 + $0xb8] sm:$0xff]
  %v550 = vld [vmem:[%s2 + $0xc0] sm:$0xff]
  %v551 = vld [vmem:[%s2 + $0xc8] sm:$0xff]
  %v552 = vld [vmem:[%s2 + $0xd0] sm:$0xff]
  %v553 = vld [vmem:[%s2 + $0xd8] sm:$0xff]
  %v554 = vld [vmem:[%s2 + $0xe0] sm:$0xff]
  %v555 = vld [vmem:[%s2 + $0xe8] sm:$0xff]
  %v556 = vld [vmem:[%s2 + $0xf0] sm:$0xff]
  %v557 = vld [vmem:[%s2 + $0xf8] sm:$0xff]
  %v558 = vld [vmem:[%s2 + $0x100] sm:$0xff]
  %559 = vmatprep.subr.mxu0 0.0
  %560 = vmatpush1.msra.mxu0 %v543
  %561 = vmatprep.subr.mxu0 0.0
  %562 = vmatpush1.msra.mxu0 %v544
  %563 = vmatprep.subr.mxu0 0.0
  %564 = vmatpush1.msra.mxu0 %v545
  %565 = vmatprep.subr.mxu0 0.0
  %566 = vmatpush1.msra.mxu0 %v546
  %567 = vmatprep.subr.mxu0 0.0
  %568 = vmatpush1.msra.mxu0 %v547
  %569 = vmatprep.subr.mxu0 0.0
  %570 = vmatpush1.msra.mxu0 %v548
  %571 = vmatprep.subr.mxu0 0.0
  %572 = vmatpush1.msra.mxu0 %v549
  %573 = vmatprep.subr.mxu0 0.0
  %574 = vmatpush1.msra.mxu0 %v550
  %575 = vmatprep.subr.mxu0 0.0
  %576 = vmatpush1.msra.mxu0 %v551
  %577 = vmatprep.subr.mxu0 0.0
  %578 = vmatpush1.msra.mxu0 %v552
  %579 = vmatprep.subr.mxu0 0.0
  %580 = vmatpush1.msra.mxu0 %v553
  %581 = vmatprep.subr.mxu0 0.0
  %582 = vmatpush1.msra.mxu0 %v554
  %583 = vmatprep.subr.mxu0 0.0
  %584 = vmatpush1.msra.mxu0 %v555
  %585 = vmatprep.subr.mxu0 0.0
  %586 = vmatpush1.msra.mxu0 %v556
  %587 = vmatprep.subr.mxu0 0.0
  %588 = vmatpush1.msra.mxu0 %v557
  %589 = vmatprep.subr.mxu0 0.0
  %590 = vmatpush1.msra.mxu0 %v558
  %591 = vmatprep.subr.mxu0 0.0
  %592 = vmatpush1.msra.mxu0 0.0
  %593 = vmatprep.subr.mxu0 0.0
  %594 = vmatpush1.msra.mxu0 0.0
  %595 = vmatprep.subr.mxu0 0.0
  %596 = vmatpush1.msra.mxu0 0.0
  %597 = vmatprep.subr.mxu0 0.0
  %598 = vmatpush1.msra.mxu0 0.0
  %599 = vmatprep.subr.mxu0 0.0
  %600 = vmatpush1.msra.mxu0 0.0
  %601 = vmatprep.subr.mxu0 0.0
  %602 = vmatpush1.msra.mxu0 0.0
  %603 = vmatprep.subr.mxu0 0.0
  %604 = vmatpush1.msra.mxu0 0.0
  %605 = vmatprep.subr.mxu0 0.0
  %606 = vmatpush1.msra.mxu0 0.0
  %607 = vmatprep.subr.mxu0 0.0
  %608 = vmatpush1.msra.mxu0 0.0
  %609 = vmatprep.subr.mxu0 0.0
  %610 = vmatpush1.msra.mxu0 0.0
  %611 = vmatprep.subr.mxu0 0.0
  %612 = vmatpush1.msra.mxu0 0.0
  %613 = vmatprep.subr.mxu0 0.0
  %614 = vmatpush1.msra.mxu0 0.0
  %615 = vmatprep.subr.mxu0 0.0
  %616 = vmatpush1.msra.mxu0 0.0
  %617 = vmatprep.subr.mxu0 0.0
  %618 = vmatpush1.msra.mxu0 0.0
  %619 = vmatprep.subr.mxu0 0.0
  %620 = vmatpush1.msra.mxu0 0.0
  %621 = vmatprep.subr.mxu0 0.0
  %622 = vmatpush1.msra.mxu0 0.0
  %623 = vmatprep.mubr.f32.mxu0 0.0
  %624 = vmatmul.mubr.f32.gmra.mrb[0].mxu0 %v376
  %v625 = vpop.f32.mrb[0].mxu0
  %v626 = vadd.f32 0.0, %v625
  %v627 = vpop.f32.mrb[0].mxu0
  %628 = vmatprep.mubr.f32.mxu0 0.0
  %629 = vmatmul.mubr.f32.gmra.mrb[0].mxu0 %v377
  %v630 = vpop.f32.mrb[0].mxu0
  %v631 = vadd.f32 0.0, %v630
  %v632 = vpop.f32.mrb[0].mxu0
  %633 = vmatprep.mubr.f32.mxu0 0.0
  %634 = vmatmul.mubr.f32.gmra.mrb[0].mxu0 %v378
  %v635 = vpop.f32.mrb[0].mxu0
  %v636 = vadd.f32 0.0, %v635
  %v637 = vpop.f32.mrb[0].mxu0
  %638 = vmatprep.mubr.f32.mxu0 0.0
  %639 = vmatmul.mubr.f32.gmra.mrb[0].mxu0 %v379
  %v640 = vpop.f32.mrb[0].mxu0
  %v641 = vadd.f32 0.0, %v640
  %v642 = vpop.f32.mrb[0].mxu0
  %643 = vmatprep.mubr.f32.mxu0 0.0
  %644 = vmatmul.mubr.f32.gmra.mrb[0].mxu0 %v380
  %v645 = vpop.f32.mrb[0].mxu0
  %v646 = vadd.f32 0.0, %v645
  %v647 = vpop.f32.mrb[0].mxu0
  %648 = vmatprep.mubr.f32.mxu0 0.0
  %649 = vmatmul.mubr.f32.gmra.mrb[0].mxu0 %v381
  %v650 = vpop.f32.mrb[0].mxu0
  %v651 = vadd.f32 0.0, %v650
  %v652 = vpop.f32.mrb[0].mxu0
  %653 = vmatprep.mubr.f32.mxu0 0.0
  %654 = vmatmul.mubr.f32.gmra.mrb[0].mxu0 %v382
  %v655 = vpop.f32.mrb[0].mxu0
  %v656 = vadd.f32 0.0, %v655
  %v657 = vpop.f32.mrb[0].mxu0
  %658 = vmatprep.mubr.f32.mxu0 0.0
  %659 = vmatmul.mubr.f32.gmra.mrb[0].mxu0 %v383
  %v660 = vpop.f32.mrb[0].mxu0
  %v661 = vadd.f32 0.0, %v660
  %v662 = vpop.f32.mrb[0].mxu0
  %663 = vmatprep.mubr.f32.mxu0 0.0
  %664 = vmatmul.mubr.f32.gmra.mrb[0].mxu0 %v384
  %v665 = vpop.f32.mrb[0].mxu0
  %v666 = vadd.f32 0.0, %v665
  %v667 = vpop.f32.mrb[0].mxu0
  %668 = vdwg.mxu0
  %v669 = vadd.f32 %v534, %v626
  %v670 = vadd.f32 %v535, %v631
  %v671 = vadd.f32 %v536, %v636
  %v672 = vadd.f32 %v537, %v641
  %v673 = vadd.f32 %v538, %v646
  %v674 = vadd.f32 %v539, %v651
  %v675 = vadd.f32 %v540, %v656
  %v676 = vadd.f32 %v541, %v661
  %v677 = vadd.f32 %v542, %v666
  %v678 = vld [vmem:[%s2 + $0x108] sm:$0xff]
  %v679 = vld [vmem:[%s2 + $0x110] sm:$0xff]
  %v680 = vld [vmem:[%s2 + $0x118] sm:$0xff]
  %v681 = vld [vmem:[%s2 + $0x120] sm:$0xff]
  %v682 = vld [vmem:[%s2 + $0x128] sm:$0xff]
  %v683 = vld [vmem:[%s2 + $0x130] sm:$0xff]
  %v684 = vld [vmem:[%s2 + $0x138] sm:$0xff]
  %v685 = vld [vmem:[%s2 + $0x140] sm:$0xff]
  %v686 = vld [vmem:[%s2 + $0x148] sm:$0xff]
  %v687 = vld [vmem:[%s2 + $0x150] sm:$0xff]
  %v688 = vld [vmem:[%s2 + $0x158] sm:$0xff]
  %v689 = vld [vmem:[%s2 + $0x160] sm:$0xff]
  %v690 = vld [vmem:[%s2 + $0x168] sm:$0xff]
  %v691 = vld [vmem:[%s2 + $0x170] sm:$0xff]
  %v692 = vld [vmem:[%s2 + $0x178] sm:$0xff]
  %v693 = vld [vmem:[%s2 + $0x180] sm:$0xff]
  %694 = vmatprep.subr.mxu0 0.0
  %695 = vmatpush1.msra.mxu0 %v678
  %696 = vmatprep.subr.mxu0 0.0
  %697 = vmatpush1.msra.mxu0 %v679
  %698 = vmatprep.subr.mxu0 0.0
  %699 = vmatpush1.msra.mxu0 %v680
  %700 = vmatprep.subr.mxu0 0.0
  %701 = vmatpush1.msra.mxu0 %v681
  %702 = vmatprep.subr.mxu0 0.0
  %703 = vmatpush1.msra.mxu0 %v682
  %704 = vmatprep.subr.mxu0 0.0
  %705 = vmatpush1.msra.mxu0 %v683
  %706 = vmatprep.subr.mxu0 0.0
  %707 = vmatpush1.msra.mxu0 %v684
  %708 = vmatprep.subr.mxu0 0.0
  %709 = vmatpush1.msra.mxu0 %v685
  %710 = vmatprep.subr.mxu0 0.0
  %711 = vmatpush1.msra.mxu0 %v686
  %712 = vmatprep.subr.mxu0 0.0
  %713 = vmatpush1.msra.mxu0 %v687
  %714 = vmatprep.subr.mxu0 0.0
  %715 = vmatpush1.msra.mxu0 %v688
  %716 = vmatprep.subr.mxu0 0.0
  %717 = vmatpush1.msra.mxu0 %v689
  %718 = vmatprep.subr.mxu0 0.0
  %719 = vmatpush1.msra.mxu0 %v690
  %720 = vmatprep.subr.mxu0 0.0
  %721 = vmatpush1.msra.mxu0 %v691
  %722 = vmatprep.subr.mxu0 0.0
  %723 = vmatpush1.msra.mxu0 %v692
  %724 = vmatprep.subr.mxu0 0.0
  %725 = vmatpush1.msra.mxu0 %v693
  %726 = vmatprep.subr.mxu0 0.0
  %727 = vmatpush1.msra.mxu0 0.0
  %728 = vmatprep.subr.mxu0 0.0
  %729 = vmatpush1.msra.mxu0 0.0
  %730 = vmatprep.subr.mxu0 0.0
  %731 = vmatpush1.msra.mxu0 0.0
  %732 = vmatprep.subr.mxu0 0.0
  %733 = vmatpush1.msra.mxu0 0.0
  %734 = vmatprep.subr.mxu0 0.0
  %735 = vmatpush1.msra.mxu0 0.0
  %736 = vmatprep.subr.mxu0 0.0
  %737 = vmatpush1.msra.mxu0 0.0
  %738 = vmatprep.subr.mxu0 0.0
  %739 = vmatpush1.msra.mxu0 0.0
  %740 = vmatprep.subr.mxu0 0.0
  %741 = vmatpush1.msra.mxu0 0.0
  %742 = vmatprep.subr.mxu0 0.0
  %743 = vmatpush1.msra.mxu0 0.0
  %744 = vmatprep.subr.mxu0 0.0
  %745 = vmatpush1.msra.mxu0 0.0
  %746 = vmatprep.subr.mxu0 0.0
  %747 = vmatpush1.msra.mxu0 0.0
  %748 = vmatprep.subr.mxu0 0.0
  %749 = vmatpush1.msra.mxu0 0.0
  %750 = vmatprep.subr.mxu0 0.0
  %751 = vmatpush1.msra.mxu0 0.0
  %752 = vmatprep.subr.mxu0 0.0
  %753 = vmatpush1.msra.mxu0 0.0
  %754 = vmatprep.subr.mxu0 0.0
  %755 = vmatpush1.msra.mxu0 0.0
  %756 = vmatprep.subr.mxu0 0.0
  %757 = vmatpush1.msra.mxu0 0.0
  %758 = vmatprep.mubr.f32.mxu0 0.0
  %759 = vmatmul.mubr.f32.gmra.mrb[0].mxu0 %v385
  %v760 = vpop.f32.mrb[0].mxu0
  %v761 = vadd.f32 0.0, %v760
  %v762 = vpop.f32.mrb[0].mxu0
  %763 = vmatprep.mubr.f32.mxu0 0.0
  %764 = vmatmul.mubr.f32.gmra.mrb[0].mxu0 %v386
  %v765 = vpop.f32.mrb[0].mxu0
  %v766 = vadd.f32 0.0, %v765
  %v767 = vpop.f32.mrb[0].mxu0
  %768 = vmatprep.mubr.f32.mxu0 0.0
  %769 = vmatmul.mubr.f32.gmra.mrb[0].mxu0 %v387
  %v770 = vpop.f32.mrb[0].mxu0
  %v771 = vadd.f32 0.0, %v770
  %v772 = vpop.f32.mrb[0].mxu0
  %773 = vmatprep.mubr.f32.mxu0 0.0
  %774 = vmatmul.mubr.f32.gmra.mrb[0].mxu0 %v388
  %v775 = vpop.f32.mrb[0].mxu0
  %v776 = vadd.f32 0.0, %v775
  %v777 = vpop.f32.mrb[0].mxu0
  %778 = vmatprep.mubr.f32.mxu0 0.0
  %779 = vmatmul.mubr.f32.gmra.mrb[0].mxu0 %v389
  %v780 = vpop.f32.mrb[0].mxu0
  %v781 = vadd.f32 0.0, %v780
  %v782 = vpop.f32.mrb[0].mxu0
  %783 = vmatprep.mubr.f32.mxu0 0.0
  %784 = vmatmul.mubr.f32.gmra.mrb[0].mxu0 %v390
  %v785 = vpop.f32.mrb[0].mxu0
  %v786 = vadd.f32 0.0, %v785
  %v787 = vpop.f32.mrb[0].mxu0
  %788 = vmatprep.mubr.f32.mxu0 0.0
  %789 = vmatmul.mubr.f32.gmra.mrb[0].mxu0 %v391
  %v790 = vpop.f32.mrb[0].mxu0
  %v791 = vadd.f32 0.0, %v790
  %v792 = vpop.f32.mrb[0].mxu0
  %793 = vmatprep.mubr.f32.mxu0 0.0
  %794 = vmatmul.mubr.f32.gmra.mrb[0].mxu0 %v392
  %v795 = vpop.f32.mrb[0].mxu0
  %v796 = vadd.f32 0.0, %v795
  %v797 = vpop.f32.mrb[0].mxu0
  %798 = vmatprep.mubr.f32.mxu0 0.0
  %799 = vmatmul.mubr.f32.gmra.mrb[0].mxu0 %v393
  %v800 = vpop.f32.mrb[0].mxu0
  %v801 = vadd.f32 0.0, %v800
  %v802 = vpop.f32.mrb[0].mxu0
  %803 = vdwg.mxu0
  %v804 = vadd.f32 %v669, %v761
  %v805 = vadd.f32 %v670, %v766
  %v806 = vadd.f32 %v671, %v771
  %v807 = vadd.f32 %v672, %v776
  %v808 = vadd.f32 %v673, %v781
  %v809 = vadd.f32 %v674, %v786
  %v810 = vadd.f32 %v675, %v791
  %v811 = vadd.f32 %v676, %v796
  %v812 = vadd.f32 %v677, %v801
  %v813 = vld [vmem:[%s2 + $0x188] sm:$0xff]
  %v814 = vld [vmem:[%s2 + $0x190] sm:$0xff]
  %v815 = vld [vmem:[%s2 + $0x198] sm:$0xff]
  %v816 = vld [vmem:[%s2 + $0x1a0] sm:$0xff]
  %v817 = vld [vmem:[%s2 + $0x1a8] sm:$0xff]
  %v818 = vld [vmem:[%s2 + $0x1b0] sm:$0xff]
  %v819 = vld [vmem:[%s2 + $0x1b8] sm:$0xff]
  %v820 = vld [vmem:[%s2 + $0x1c0] sm:$0xff]
  %v821 = vld [vmem:[%s2 + $0x1c8] sm:$0xff]
  %v822 = vld [vmem:[%s2 + $0x1d0] sm:$0xff]
  %v823 = vld [vmem:[%s2 + $0x1d8] sm:$0xff]
  %v824 = vld [vmem:[%s2 + $0x1e0] sm:$0xff]
  %v825 = vld [vmem:[%s2 + $0x1e8] sm:$0xff]
  %v826 = vld [vmem:[%s2 + $0x1f0] sm:$0xff]
  %v827 = vld [vmem:[%s2 + $0x1f8] sm:$0xff]
  %v828 = vld [vmem:[%s2 + $0x200] sm:$0xff]
  %829 = vmatprep.subr.mxu0 0.0
  %830 = vmatpush1.msra.mxu0 %v813
  %831 = vmatprep.subr.mxu0 0.0
  %832 = vmatpush1.msra.mxu0 %v814
  %833 = vmatprep.subr.mxu0 0.0
  %834 = vmatpush1.msra.mxu0 %v815
  %835 = vmatprep.subr.mxu0 0.0
  %836 = vmatpush1.msra.mxu0 %v816
  %837 = vmatprep.subr.mxu0 0.0
  %838 = vmatpush1.msra.mxu0 %v817
  %839 = vmatprep.subr.mxu0 0.0
  %840 = vmatpush1.msra.mxu0 %v818
  %841 = vmatprep.subr.mxu0 0.0
  %842 = vmatpush1.msra.mxu0 %v819
  %843 = vmatprep.subr.mxu0 0.0
  %844 = vmatpush1.msra.mxu0 %v820
  %845 = vmatprep.subr.mxu0 0.0
  %846 = vmatpush1.msra.mxu0 %v821
  %847 = vmatprep.subr.mxu0 0.0
  %848 = vmatpush1.msra.mxu0 %v822
  %849 = vmatprep.subr.mxu0 0.0
  %850 = vmatpush1.msra.mxu0 %v823
  %851 = vmatprep.subr.mxu0 0.0
  %852 = vmatpush1.msra.mxu0 %v824
  %853 = vmatprep.subr.mxu0 0.0
  %854 = vmatpush1.msra.mxu0 %v825
  %855 = vmatprep.subr.mxu0 0.0
  %856 = vmatpush1.msra.mxu0 %v826
  %857 = vmatprep.subr.mxu0 0.0
  %858 = vmatpush1.msra.mxu0 %v827
  %859 = vmatprep.subr.mxu0 0.0
  %860 = vmatpush1.msra.mxu0 %v828
  %861 = vmatprep.subr.mxu0 0.0
  %862 = vmatpush1.msra.mxu0 0.0
  %863 = vmatprep.subr.mxu0 0.0
  %864 = vmatpush1.msra.mxu0 0.0
  %865 = vmatprep.subr.mxu0 0.0
  %866 = vmatpush1.msra.mxu0 0.0
  %867 = vmatprep.subr.mxu0 0.0
  %868 = vmatpush1.msra.mxu0 0.0
  %869 = vmatprep.subr.mxu0 0.0
  %870 = vmatpush1.msra.mxu0 0.0
  %871 = vmatprep.subr.mxu0 0.0
  %872 = vmatpush1.msra.mxu0 0.0
  %873 = vmatprep.subr.mxu0 0.0
  %874 = vmatpush1.msra.mxu0 0.0
  %875 = vmatprep.subr.mxu0 0.0
  %876 = vmatpush1.msra.mxu0 0.0
  %877 = vmatprep.subr.mxu0 0.0
  %878 = vmatpush1.msra.mxu0 0.0
  %879 = vmatprep.subr.mxu0 0.0
  %880 = vmatpush1.msra.mxu0 0.0
  %881 = vmatprep.subr.mxu0 0.0
  %882 = vmatpush1.msra.mxu0 0.0
  %883 = vmatprep.subr.mxu0 0.0
  %884 = vmatpush1.msra.mxu0 0.0
  %885 = vmatprep.subr.mxu0 0.0
  %886 = vmatpush1.msra.mxu0 0.0
  %887 = vmatprep.subr.mxu0 0.0
  %888 = vmatpush1.msra.mxu0 0.0
  %889 = vmatprep.subr.mxu0 0.0
  %890 = vmatpush1.msra.mxu0 0.0
  %891 = vmatprep.subr.mxu0 0.0
  %892 = vmatpush1.msra.mxu0 0.0
  %893 = vmatprep.mubr.f32.mxu0 0.0
  %894 = vmatmul.mubr.f32.gmra.mrb[0].mxu0 %v394
  %v895 = vpop.f32.mrb[0].mxu0
  %v896 = vadd.f32 0.0, %v895
  %v897 = vpop.f32.mrb[0].mxu0
  %898 = vmatprep.mubr.f32.mxu0 0.0
  %899 = vmatmul.mubr.f32.gmra.mrb[0].mxu0 %v395
  %v900 = vpop.f32.mrb[0].mxu0
  %v901 = vadd.f32 0.0, %v900
  %v902 = vpop.f32.mrb[0].mxu0
  %903 = vmatprep.mubr.f32.mxu0 0.0
  %904 = vmatmul.mubr.f32.gmra.mrb[0].mxu0 %v396
  %v905 = vpop.f32.mrb[0].mxu0
  %v906 = vadd.f32 0.0, %v905
  %v907 = vpop.f32.mrb[0].mxu0
  %908 = vmatprep.mubr.f32.mxu0 0.0
  %909 = vmatmul.mubr.f32.gmra.mrb[0].mxu0 %v397
  %v910 = vpop.f32.mrb[0].mxu0
  %v911 = vadd.f32 0.0, %v910
  %v912 = vpop.f32.mrb[0].mxu0
  %913 = vmatprep.mubr.f32.mxu0 0.0
  %914 = vmatmul.mubr.f32.gmra.mrb[0].mxu0 %v398
  %v915 = vpop.f32.mrb[0].mxu0
  %v916 = vadd.f32 0.0, %v915
  %v917 = vpop.f32.mrb[0].mxu0
  %918 = vmatprep.mubr.f32.mxu0 0.0
  %919 = vmatmul.mubr.f32.gmra.mrb[0].mxu0 %v399
  %v920 = vpop.f32.mrb[0].mxu0
  %v921 = vadd.f32 0.0, %v920
  %v922 = vpop.f32.mrb[0].mxu0
  %923 = vmatprep.mubr.f32.mxu0 0.0
  %924 = vmatmul.mubr.f32.gmra.mrb[0].mxu0 %v400
  %v925 = vpop.f32.mrb[0].mxu0
  %v926 = vadd.f32 0.0, %v925
  %v927 = vpop.f32.mrb[0].mxu0
  %928 = vmatprep.mubr.f32.mxu0 0.0
  %929 = vmatmul.mubr.f32.gmra.mrb[0].mxu0 %v401
  %v930 = vpop.f32.mrb[0].mxu0
  %v931 = vadd.f32 0.0, %v930
  %v932 = vpop.f32.mrb[0].mxu0
  %933 = vmatprep.mubr.f32.mxu0 0.0
  %934 = vmatmul.mubr.f32.gmra.mrb[0].mxu0 %v402
  %v935 = vpop.f32.mrb[0].mxu0
  %v936 = vadd.f32 0.0, %v935
  %v937 = vpop.f32.mrb[0].mxu0
  %938 = vdwg.mxu0
  %v939 = vadd.f32 %v804, %v896
  %v940 = vadd.f32 %v805, %v901
  %v941 = vadd.f32 %v806, %v906
  %v942 = vadd.f32 %v807, %v911
  %v943 = vadd.f32 %v808, %v916
  %v944 = vadd.f32 %v809, %v921
  %v945 = vadd.f32 %v810, %v926
  %v946 = vadd.f32 %v811, %v931
  %v947 = vadd.f32 %v812, %v936
  %v948 = vmax.f32 %v939, 0.0
  %v949 = vmax.f32 %v940, 0.0
  %v950 = vmax.f32 %v941, 0.0
  %v951 = vmax.f32 %v942, 0.0
  %v952 = vmax.f32 %v943, 0.0
  %v953 = vmax.f32 %v944, 0.0
  %v954 = vmax.f32 %v945, 0.0
  %v955 = vmax.f32 %v946, 0.0
  %v956 = vmax.f32 %v947, 0.0
  %v957 = vld [vmem:[%s2 + $0x208] sm:$0x1]
  %v958 = vld [vmem:[%s2 + $0x210] sm:$0xff]
  %v959 = vld [vmem:[%s2 + $0x218] sm:$0xff]
  %v960 = vld [vmem:[%s2 + $0x220] sm:$0xff]
  %v961 = vld [vmem:[%s2 + $0x228] sm:$0xff]
  %v962 = vld [vmem:[%s2 + $0x230] sm:$0xff]
  %v963 = vld [vmem:[%s2 + $0x238] sm:$0xff]
  %v964 = vld [vmem:[%s2 + $0x240] sm:$0xff]
  %v965 = vld [vmem:[%s2 + $0x248] sm:$0xff]
  %vm966 = vcmask 523264
  %v968 = vsel %vm966, %v948, 0
  %v971 = vsel %vm966, %v949, 0
  %v974 = vsel %vm966, %v950, 0
  %v977 = vsel %vm966, %v951, 0
  %v980 = vsel %vm966, %v952, 0
  %v983 = vsel %vm966, %v953, 0
  %v986 = vsel %vm966, %v954, 0
  %v989 = vsel %vm966, %v955, 0
  %v992 = vsel %vm966, %v956, 0
  %994 = vmatprep.subr.mxu0 0.0
  %995 = vmatpush1.msra.mxu0 %v958
  %996 = vmatprep.subr.mxu0 0.0
  %997 = vmatpush1.msra.mxu0 %v959
  %998 = vmatprep.subr.mxu0 0.0
  %999 = vmatpush1.msra.mxu0 %v960
  %1000 = vmatprep.subr.mxu0 0.0
  %1001 = vmatpush1.msra.mxu0 %v961
  %1002 = vmatprep.subr.mxu0 0.0
  %1003 = vmatpush1.msra.mxu0 %v962
  %1004 = vmatprep.subr.mxu0 0.0
  %1005 = vmatpush1.msra.mxu0 %v963
  %1006 = vmatprep.subr.mxu0 0.0
  %1007 = vmatpush1.msra.mxu0 %v964
  %1008 = vmatprep.subr.mxu0 0.0
  %1009 = vmatpush1.msra.mxu0 %v965
  %1010 = vmatprep.subr.mxu0 0.0
  %1011 = vmatpush1.msra.mxu0 0.0
  %1012 = vmatprep.subr.mxu0 0.0
  %1013 = vmatpush1.msra.mxu0 0.0
  %1014 = vmatprep.subr.mxu0 0.0
  %1015 = vmatpush1.msra.mxu0 0.0
  %1016 = vmatprep.subr.mxu0 0.0
  %1017 = vmatpush1.msra.mxu0 0.0
  %1018 = vmatprep.subr.mxu0 0.0
  %1019 = vmatpush1.msra.mxu0 0.0
  %1020 = vmatprep.subr.mxu0 0.0
  %1021 = vmatpush1.msra.mxu0 0.0
  %1022 = vmatprep.subr.mxu0 0.0
  %1023 = vmatpush1.msra.mxu0 0.0
  %1024 = vmatprep.subr.mxu0 0.0
  %1025 = vmatpush1.msra.mxu0 0.0
  %1026 = vmatprep.subr.mxu0 0.0
  %1027 = vmatpush1.msra.mxu0 0.0
  %1028 = vmatprep.subr.mxu0 0.0
  %1029 = vmatpush1.msra.mxu0 0.0
  %1030 = vmatprep.subr.mxu0 0.0
  %1031 = vmatpush1.msra.mxu0 0.0
  %1032 = vmatprep.subr.mxu0 0.0
  %1033 = vmatpush1.msra.mxu0 0.0
  %1034 = vmatprep.subr.mxu0 0.0
  %1035 = vmatpush1.msra.mxu0 0.0
  %1036 = vmatprep.subr.mxu0 0.0
  %1037 = vmatpush1.msra.mxu0 0.0
  %1038 = vmatprep.subr.mxu0 0.0
  %1039 = vmatpush1.msra.mxu0 0.0
  %1040 = vmatprep.subr.mxu0 0.0
  %1041 = vmatpush1.msra.mxu0 0.0
  %1042 = vmatprep.subr.mxu0 0.0
  %1043 = vmatpush1.msra.mxu0 0.0
  %1044 = vmatprep.subr.mxu0 0.0
  %1045 = vmatpush1.msra.mxu0 0.0
  %1046 = vmatprep.subr.mxu0 0.0
  %1047 = vmatpush1.msra.mxu0 0.0
  %1048 = vmatprep.subr.mxu0 0.0
  %1049 = vmatpush1.msra.mxu0 0.0
  %1050 = vmatprep.subr.mxu0 0.0
  %1051 = vmatpush1.msra.mxu0 0.0
  %1052 = vmatprep.subr.mxu0 0.0
  %1053 = vmatpush1.msra.mxu0 0.0
  %1054 = vmatprep.subr.mxu0 0.0
  %1055 = vmatpush1.msra.mxu0 0.0
  %1056 = vmatprep.subr.mxu0 0.0
  %1057 = vmatpush1.msra.mxu0 0.0
  %1058 = vmatprep.mubr.f32.mxu0 0.0
  %1059 = vmatmul.mubr.f32.gmra.mrb[0].mxu0 %v968
  %v1060 = vpop.f32.mrb[0].mxu0
  %v1061 = vadd.f32 0.0, %v1060
  %v1062 = vpop.f32.mrb[0].mxu0
  %1063 = vmatprep.mubr.f32.mxu0 0.0
  %1064 = vmatmul.mubr.f32.gmra.mrb[0].mxu0 %v971
  %v1065 = vpop.f32.mrb[0].mxu0
  %v1066 = vadd.f32 0.0, %v1065
  %v1067 = vpop.f32.mrb[0].mxu0
  %1068 = vmatprep.mubr.f32.mxu0 0.0
  %1069 = vmatmul.mubr.f32.gmra.mrb[0].mxu0 %v974
  %v1070 = vpop.f32.mrb[0].mxu0
  %v1071 = vadd.f32 0.0, %v1070
  %v1072 = vpop.f32.mrb[0].mxu0
  %1073 = vmatprep.mubr.f32.mxu0 0.0
  %1074 = vmatmul.mubr.f32.gmra.mrb[0].mxu0 %v977
  %v1075 = vpop.f32.mrb[0].mxu0
  %v1076 = vadd.f32 0.0, %v1075
  %v1077 = vpop.f32.mrb[0].mxu0
  %1078 = vmatprep.mubr.f32.mxu0 0.0
  %1079 = vmatmul.mubr.f32.gmra.mrb[0].mxu0 %v980
  %v1080 = vpop.f32.mrb[0].mxu0
  %v1081 = vadd.f32 0.0, %v1080
  %v1082 = vpop.f32.mrb[0].mxu0
  %1083 = vmatprep.mubr.f32.mxu0 0.0
  %1084 = vmatmul.mubr.f32.gmra.mrb[0].mxu0 %v983
  %v1085 = vpop.f32.mrb[0].mxu0
  %v1086 = vadd.f32 0.0, %v1085
  %v1087 = vpop.f32.mrb[0].mxu0
  %1088 = vmatprep.mubr.f32.mxu0 0.0
  %1089 = vmatmul.mubr.f32.gmra.mrb[0].mxu0 %v986
  %v1090 = vpop.f32.mrb[0].mxu0
  %v1091 = vadd.f32 0.0, %v1090
  %v1092 = vpop.f32.mrb[0].mxu0
  %1093 = vmatprep.mubr.f32.mxu0 0.0
  %1094 = vmatmul.mubr.f32.gmra.mrb[0].mxu0 %v989
  %v1095 = vpop.f32.mrb[0].mxu0
  %v1096 = vadd.f32 0.0, %v1095
  %v1097 = vpop.f32.mrb[0].mxu0
  %1098 = vmatprep.mubr.f32.mxu0 0.0
  %1099 = vmatmul.mubr.f32.gmra.mrb[0].mxu0 %v992
  %v1100 = vpop.f32.mrb[0].mxu0
  %v1101 = vadd.f32 0.0, %v1100
  %v1102 = vpop.f32.mrb[0].mxu0
  %1103 = vdwg.mxu0
  %v1104 = vlaneseq
  %v1105 = vshrl.u32 %v1104, 7
  %v1106 = vsub.s32 0, %v1105
  %v1107 = vrot.slane %v957, %v1106
  %v1108 = vadd.f32 %v1107, %v1061
  %v1109 = vadd.f32 %v1107, %v1066
  %v1110 = vadd.f32 %v1107, %v1071
  %v1111 = vadd.f32 %v1107, %v1076
  %v1112 = vadd.f32 %v1107, %v1081
  %v1113 = vadd.f32 %v1107, %v1086
  %v1114 = vadd.f32 %v1107, %v1091
  %v1115 = vadd.f32 %v1107, %v1096
  %v1116 = vadd.f32 %v1107, %v1101
  %v1117 = vrot.slane %v948, 1
  %v1118 = vrot.slane %v949, 1
  %v1119 = vrot.slane %v950, 1
  %v1120 = vrot.slane %v951, 1
  %v1121 = vrot.slane %v952, 1
  %v1122 = vrot.slane %v953, 1
  %v1123 = vrot.slane %v954, 1
  %v1124 = vrot.slane %v955, 1
  %v1125 = vrot.slane %v956, 1
  %v1126 = vlaneseq
  %v1127 = vshrl.u32 %v1126, 7
  %vm1128 = vcmp.lt.s32.totalorder %v1127, 7
  %v1129 = vsel %vm1128, %v1124, %v1125
  %v1130 = vsel %vm1128, %v1123, %v1124
  %v1131 = vsel %vm1128, %v1122, %v1123
  %v1132 = vsel %vm1128, %v1121, %v1122
  %v1133 = vsel %vm1128, %v1120, %v1121
  %v1134 = vsel %vm1128, %v1119, %v1120
  %v1135 = vsel %vm1128, %v1118, %v1119
  %v1136 = vsel %vm1128, %v1117, %v1118
  %v1137 = vsel %vm1128, %v1125, %v1117
  %v1138 = vld [vmem:[%s2 + $0x250] sm:$0xff]
  %v1139 = vld [vmem:[%s2 + $0x258] sm:$0xff]
  %v1140 = vld [vmem:[%s2 + $0x260] sm:$0xff]
  %v1141 = vld [vmem:[%s2 + $0x268] sm:$0xff]
  %v1142 = vld [vmem:[%s2 + $0x270] sm:$0xff]
  %v1143 = vld [vmem:[%s2 + $0x278] sm:$0xff]
  %v1144 = vld [vmem:[%s2 + $0x280] sm:$0xff]
  %v1145 = vld [vmem:[%s2 + $0x288] sm:$0xff]
  %v1147 = vsel %vm966, %v1136, 0
  %v1150 = vsel %vm966, %v1135, 0
  %v1153 = vsel %vm966, %v1134, 0
  %v1156 = vsel %vm966, %v1133, 0
  %v1159 = vsel %vm966, %v1132, 0
  %v1162 = vsel %vm966, %v1131, 0
  %v1165 = vsel %vm966, %v1130, 0
  %v1168 = vsel %vm966, %v1129, 0
  %v1171 = vsel %vm966, %v1137, 0
  %1173 = vmatprep.subr.mxu0 0.0
  %1174 = vmatpush1.msra.mxu0 %v1138
  %1175 = vmatprep.subr.mxu0 0.0
  %1176 = vmatpush1.msra.mxu0 %v1139
  %1177 = vmatprep.subr.mxu0 0.0
  %1178 = vmatpush1.msra.mxu0 %v1140
  %1179 = vmatprep.subr.mxu0 0.0
  %1180 = vmatpush1.msra.mxu0 %v1141
  %1181 = vmatprep.subr.mxu0 0.0
  %1182 = vmatpush1.msra.mxu0 %v1142
  %1183 = vmatprep.subr.mxu0 0.0
  %1184 = vmatpush1.msra.mxu0 %v1143
  %1185 = vmatprep.subr.mxu0 0.0
  %1186 = vmatpush1.msra.mxu0 %v1144
  %1187 = vmatprep.subr.mxu0 0.0
  %1188 = vmatpush1.msra.mxu0 %v1145
  %1189 = vmatprep.subr.mxu0 0.0
  %1190 = vmatpush1.msra.mxu0 0.0
  %1191 = vmatprep.subr.mxu0 0.0
  %1192 = vmatpush1.msra.mxu0 0.0
  %1193 = vmatprep.subr.mxu0 0.0
  %1194 = vmatpush1.msra.mxu0 0.0
  %1195 = vmatprep.subr.mxu0 0.0
  %1196 = vmatpush1.msra.mxu0 0.0
  %1197 = vmatprep.subr.mxu0 0.0
  %1198 = vmatpush1.msra.mxu0 0.0
  %1199 = vmatprep.subr.mxu0 0.0
  %1200 = vmatpush1.msra.mxu0 0.0
  %1201 = vmatprep.subr.mxu0 0.0
  %1202 = vmatpush1.msra.mxu0 0.0
  %1203 = vmatprep.subr.mxu0 0.0
  %1204 = vmatpush1.msra.mxu0 0.0
  %1205 = vmatprep.subr.mxu0 0.0
  %1206 = vmatpush1.msra.mxu0 0.0
  %1207 = vmatprep.subr.mxu0 0.0
  %1208 = vmatpush1.msra.mxu0 0.0
  %1209 = vmatprep.subr.mxu0 0.0
  %1210 = vmatpush1.msra.mxu0 0.0
  %1211 = vmatprep.subr.mxu0 0.0
  %1212 = vmatpush1.msra.mxu0 0.0
  %1213 = vmatprep.subr.mxu0 0.0
  %1214 = vmatpush1.msra.mxu0 0.0
  %1215 = vmatprep.subr.mxu0 0.0
  %1216 = vmatpush1.msra.mxu0 0.0
  %1217 = vmatprep.subr.mxu0 0.0
  %1218 = vmatpush1.msra.mxu0 0.0
  %1219 = vmatprep.subr.mxu0 0.0
  %1220 = vmatpush1.msra.mxu0 0.0
  %1221 = vmatprep.subr.mxu0 0.0
  %1222 = vmatpush1.msra.mxu0 0.0
  %1223 = vmatprep.subr.mxu0 0.0
  %1224 = vmatpush1.msra.mxu0 0.0
  %1225 = vmatprep.subr.mxu0 0.0
  %1226 = vmatpush1.msra.mxu0 0.0
  %1227 = vmatprep.subr.mxu0 0.0
  %1228 = vmatpush1.msra.mxu0 0.0
  %1229 = vmatprep.subr.mxu0 0.0
  %1230 = vmatpush1.msra.mxu0 0.0
  %1231 = vmatprep.subr.mxu0 0.0
  %1232 = vmatpush1.msra.mxu0 0.0
  %1233 = vmatprep.subr.mxu0 0.0
  %1234 = vmatpush1.msra.mxu0 0.0
  %1235 = vmatprep.subr.mxu0 0.0
  %1236 = vmatpush1.msra.mxu0 0.0
  %1237 = vmatprep.mubr.f32.mxu0 0.0
  %1238 = vmatmul.mubr.f32.gmra.mrb[0].mxu0 %v1147
  %v1239 = vpop.f32.mrb[0].mxu0
  %v1240 = vadd.f32 0.0, %v1239
  %v1241 = vpop.f32.mrb[0].mxu0
  %1242 = vmatprep.mubr.f32.mxu0 0.0
  %1243 = vmatmul.mubr.f32.gmra.mrb[0].mxu0 %v1150
  %v1244 = vpop.f32.mrb[0].mxu0
  %v1245 = vadd.f32 0.0, %v1244
  %v1246 = vpop.f32.mrb[0].mxu0
  %1247 = vmatprep.mubr.f32.mxu0 0.0
  %1248 = vmatmul.mubr.f32.gmra.mrb[0].mxu0 %v1153
  %v1249 = vpop.f32.mrb[0].mxu0
  %v1250 = vadd.f32 0.0, %v1249
  %v1251 = vpop.f32.mrb[0].mxu0
  %1252 = vmatprep.mubr.f32.mxu0 0.0
  %1253 = vmatmul.mubr.f32.gmra.mrb[0].mxu0 %v1156
  %v1254 = vpop.f32.mrb[0].mxu0
  %v1255 = vadd.f32 0.0, %v1254
  %v1256 = vpop.f32.mrb[0].mxu0
  %1257 = vmatprep.mubr.f32.mxu0 0.0
  %1258 = vmatmul.mubr.f32.gmra.mrb[0].mxu0 %v1159
  %v1259 = vpop.f32.mrb[0].mxu0
  %v1260 = vadd.f32 0.0, %v1259
  %v1261 = vpop.f32.mrb[0].mxu0
  %1262 = vmatprep.mubr.f32.mxu0 0.0
  %1263 = vmatmul.mubr.f32.gmra.mrb[0].mxu0 %v1162
  %v1264 = vpop.f32.mrb[0].mxu0
  %v1265 = vadd.f32 0.0, %v1264
  %v1266 = vpop.f32.mrb[0].mxu0
  %1267 = vmatprep.mubr.f32.mxu0 0.0
  %1268 = vmatmul.mubr.f32.gmra.mrb[0].mxu0 %v1165
  %v1269 = vpop.f32.mrb[0].mxu0
  %v1270 = vadd.f32 0.0, %v1269
  %v1271 = vpop.f32.mrb[0].mxu0
  %1272 = vmatprep.mubr.f32.mxu0 0.0
  %1273 = vmatmul.mubr.f32.gmra.mrb[0].mxu0 %v1168
  %v1274 = vpop.f32.mrb[0].mxu0
  %v1275 = vadd.f32 0.0, %v1274
  %v1276 = vpop.f32.mrb[0].mxu0
  %1277 = vmatprep.mubr.f32.mxu0 0.0
  %1278 = vmatmul.mubr.f32.gmra.mrb[0].mxu0 %v1171
  %v1279 = vpop.f32.mrb[0].mxu0
  %v1280 = vadd.f32 0.0, %v1279
  %v1281 = vpop.f32.mrb[0].mxu0
  %1282 = vdwg.mxu0
  %v1283 = vadd.f32 %v1108, %v1240
  %v1284 = vadd.f32 %v1109, %v1245
  %v1285 = vadd.f32 %v1110, %v1250
  %v1286 = vadd.f32 %v1111, %v1255
  %v1287 = vadd.f32 %v1112, %v1260
  %v1288 = vadd.f32 %v1113, %v1265
  %v1289 = vadd.f32 %v1114, %v1270
  %v1290 = vadd.f32 %v1115, %v1275
  %v1291 = vadd.f32 %v1116, %v1280
  %v1292 = vrot.slane %v948, 2
  %v1293 = vrot.slane %v949, 2
  %v1294 = vrot.slane %v950, 2
  %v1295 = vrot.slane %v951, 2
  %v1296 = vrot.slane %v952, 2
  %v1297 = vrot.slane %v953, 2
  %v1298 = vrot.slane %v954, 2
  %v1299 = vrot.slane %v955, 2
  %v1300 = vrot.slane %v956, 2
  %vm1301 = vcmp.lt.s32.totalorder %v1127, 6
  %v1302 = vsel %vm1301, %v1299, %v1300
  %v1303 = vsel %vm1301, %v1298, %v1299
  %v1304 = vsel %vm1301, %v1297, %v1298
  %v1305 = vsel %vm1301, %v1296, %v1297
  %v1306 = vsel %vm1301, %v1295, %v1296
  %v1307 = vsel %vm1301, %v1294, %v1295
  %v1308 = vsel %vm1301, %v1293, %v1294
  %v1309 = vsel %vm1301, %v1292, %v1293
  %v1310 = vsel %vm1301, %v1300, %v1292
  %v1311 = vld [vmem:[%s2 + $0x290] sm:$0xff]
  %v1312 = vld [vmem:[%s2 + $0x298] sm:$0xff]
  %v1313 = vld [vmem:[%s2 + $0x2a0] sm:$0xff]
  %v1314 = vld [vmem:[%s2 + $0x2a8] sm:$0xff]
  %v1315 = vld [vmem:[%s2 + $0x2b0] sm:$0xff]
  %v1316 = vld [vmem:[%s2 + $0x2b8] sm:$0xff]
  %v1317 = vld [vmem:[%s2 + $0x2c0] sm:$0xff]
  %v1318 = vld [vmem:[%s2 + $0x2c8] sm:$0xff]
  %v1320 = vsel %vm966, %v1309, 0
  %v1323 = vsel %vm966, %v1308, 0
  %v1326 = vsel %vm966, %v1307, 0
  %v1329 = vsel %vm966, %v1306, 0
  %v1332 = vsel %vm966, %v1305, 0
  %v1335 = vsel %vm966, %v1304, 0
  %v1338 = vsel %vm966, %v1303, 0
  %v1341 = vsel %vm966, %v1302, 0
  %v1344 = vsel %vm966, %v1310, 0
  %1346 = vmatprep.subr.mxu0 0.0
  %1347 = vmatpush1.msra.mxu0 %v1311
  %1348 = vmatprep.subr.mxu0 0.0
  %1349 = vmatpush1.msra.mxu0 %v1312
  %1350 = vmatprep.subr.mxu0 0.0
  %1351 = vmatpush1.msra.mxu0 %v1313
  %1352 = vmatprep.subr.mxu0 0.0
  %1353 = vmatpush1.msra.mxu0 %v1314
  %1354 = vmatprep.subr.mxu0 0.0
  %1355 = vmatpush1.msra.mxu0 %v1315
  %1356 = vmatprep.subr.mxu0 0.0
  %1357 = vmatpush1.msra.mxu0 %v1316
  %1358 = vmatprep.subr.mxu0 0.0
  %1359 = vmatpush1.msra.mxu0 %v1317
  %1360 = vmatprep.subr.mxu0 0.0
  %1361 = vmatpush1.msra.mxu0 %v1318
  %1362 = vmatprep.subr.mxu0 0.0
  %1363 = vmatpush1.msra.mxu0 0.0
  %1364 = vmatprep.subr.mxu0 0.0
  %1365 = vmatpush1.msra.mxu0 0.0
  %1366 = vmatprep.subr.mxu0 0.0
  %1367 = vmatpush1.msra.mxu0 0.0
  %1368 = vmatprep.subr.mxu0 0.0
  %1369 = vmatpush1.msra.mxu0 0.0
  %1370 = vmatprep.subr.mxu0 0.0
  %1371 = vmatpush1.msra.mxu0 0.0
  %1372 = vmatprep.subr.mxu0 0.0
  %1373 = vmatpush1.msra.mxu0 0.0
  %1374 = vmatprep.subr.mxu0 0.0
  %1375 = vmatpush1.msra.mxu0 0.0
  %1376 = vmatprep.subr.mxu0 0.0
  %1377 = vmatpush1.msra.mxu0 0.0
  %1378 = vmatprep.subr.mxu0 0.0
  %1379 = vmatpush1.msra.mxu0 0.0
  %1380 = vmatprep.subr.mxu0 0.0
  %1381 = vmatpush1.msra.mxu0 0.0
  %1382 = vmatprep.subr.mxu0 0.0
  %1383 = vmatpush1.msra.mxu0 0.0
  %1384 = vmatprep.subr.mxu0 0.0
  %1385 = vmatpush1.msra.mxu0 0.0
  %1386 = vmatprep.subr.mxu0 0.0
  %1387 = vmatpush1.msra.mxu0 0.0
  %1388 = vmatprep.subr.mxu0 0.0
  %1389 = vmatpush1.msra.mxu0 0.0
  %1390 = vmatprep.subr.mxu0 0.0
  %1391 = vmatpush1.msra.mxu0 0.0
  %1392 = vmatprep.subr.mxu0 0.0
  %1393 = vmatpush1.msra.mxu0 0.0
  %1394 = vmatprep.subr.mxu0 0.0
  %1395 = vmatpush1.msra.mxu0 0.0
  %1396 = vmatprep.subr.mxu0 0.0
  %1397 = vmatpush1.msra.mxu0 0.0
  %1398 = vmatprep.subr.mxu0 0.0
  %1399 = vmatpush1.msra.mxu0 0.0
  %1400 = vmatprep.subr.mxu0 0.0
  %1401 = vmatpush1.msra.mxu0 0.0
  %1402 = vmatprep.subr.mxu0 0.0
  %1403 = vmatpush1.msra.mxu0 0.0
  %1404 = vmatprep.subr.mxu0 0.0
  %1405 = vmatpush1.msra.mxu0 0.0
  %1406 = vmatprep.subr.mxu0 0.0
  %1407 = vmatpush1.msra.mxu0 0.0
  %1408 = vmatprep.subr.mxu0 0.0
  %1409 = vmatpush1.msra.mxu0 0.0
  %1410 = vmatprep.mubr.f32.mxu0 0.0
  %1411 = vmatmul.mubr.f32.gmra.mrb[0].mxu0 %v1320
  %v1412 = vpop.f32.mrb[0].mxu0
  %v1413 = vadd.f32 0.0, %v1412
  %v1414 = vpop.f32.mrb[0].mxu0
  %1415 = vmatprep.mubr.f32.mxu0 0.0
  %1416 = vmatmul.mubr.f32.gmra.mrb[0].mxu0 %v1323
  %v1417 = vpop.f32.mrb[0].mxu0
  %v1418 = vadd.f32 0.0, %v1417
  %v1419 = vpop.f32.mrb[0].mxu0
  %1420 = vmatprep.mubr.f32.mxu0 0.0
  %1421 = vmatmul.mubr.f32.gmra.mrb[0].mxu0 %v1326
  %v1422 = vpop.f32.mrb[0].mxu0
  %v1423 = vadd.f32 0.0, %v1422
  %v1424 = vpop.f32.mrb[0].mxu0
  %1425 = vmatprep.mubr.f32.mxu0 0.0
  %1426 = vmatmul.mubr.f32.gmra.mrb[0].mxu0 %v1329
  %v1427 = vpop.f32.mrb[0].mxu0
  %v1428 = vadd.f32 0.0, %v1427
  %v1429 = vpop.f32.mrb[0].mxu0
  %1430 = vmatprep.mubr.f32.mxu0 0.0
  %1431 = vmatmul.mubr.f32.gmra.mrb[0].mxu0 %v1332
  %v1432 = vpop.f32.mrb[0].mxu0
  %v1433 = vadd.f32 0.0, %v1432
  %v1434 = vpop.f32.mrb[0].mxu0
  %1435 = vmatprep.mubr.f32.mxu0 0.0
  %1436 = vmatmul.mubr.f32.gmra.mrb[0].mxu0 %v1335
  %v1437 = vpop.f32.mrb[0].mxu0
  %v1438 = vadd.f32 0.0, %v1437
  %v1439 = vpop.f32.mrb[0].mxu0
  %1440 = vmatprep.mubr.f32.mxu0 0.0
  %1441 = vmatmul.mubr.f32.gmra.mrb[0].mxu0 %v1338
  %v1442 = vpop.f32.mrb[0].mxu0
  %v1443 = vadd.f32 0.0, %v1442
  %v1444 = vpop.f32.mrb[0].mxu0
  %1445 = vmatprep.mubr.f32.mxu0 0.0
  %1446 = vmatmul.mubr.f32.gmra.mrb[0].mxu0 %v1341
  %v1447 = vpop.f32.mrb[0].mxu0
  %v1448 = vadd.f32 0.0, %v1447
  %v1449 = vpop.f32.mrb[0].mxu0
  %1450 = vmatprep.mubr.f32.mxu0 0.0
  %1451 = vmatmul.mubr.f32.gmra.mrb[0].mxu0 %v1344
  %v1452 = vpop.f32.mrb[0].mxu0
  %v1453 = vadd.f32 0.0, %v1452
  %v1454 = vpop.f32.mrb[0].mxu0
  %1455 = vdwg.mxu0
  %v1456 = vadd.f32 %v1283, %v1413
  %v1457 = vadd.f32 %v1284, %v1418
  %v1458 = vadd.f32 %v1285, %v1423
  %v1459 = vadd.f32 %v1286, %v1428
  %v1460 = vadd.f32 %v1287, %v1433
  %v1461 = vadd.f32 %v1288, %v1438
  %v1462 = vadd.f32 %v1289, %v1443
  %v1463 = vadd.f32 %v1290, %v1448
  %v1464 = vadd.f32 %v1291, %v1453
  %v1465 = vrot.slane %v948, 6
  %v1466 = vrot.slane %v949, 6
  %v1467 = vrot.slane %v950, 6
  %v1468 = vrot.slane %v951, 6
  %v1469 = vrot.slane %v952, 6
  %v1470 = vrot.slane %v953, 6
  %v1471 = vrot.slane %v954, 6
  %v1472 = vrot.slane %v955, 6
  %v1473 = vrot.slane %v956, 6
  %vm1474 = vcmp.lt.s32.totalorder %v1127, 2
  %v1475 = vsel %vm1474, %v1472, %v1473
  %v1476 = vsel %vm1474, %v1471, %v1472
  %v1477 = vsel %vm1474, %v1470, %v1471
  %v1478 = vsel %vm1474, %v1469, %v1470
  %v1479 = vsel %vm1474, %v1468, %v1469
  %v1480 = vsel %vm1474, %v1467, %v1468
  %v1481 = vsel %vm1474, %v1466, %v1467
  %v1482 = vsel %vm1474, %v1465, %v1466
  %v1483 = vsel %vm1474, %v1473, %v1465
  %v1484 = vld [vmem:[%s2 + $0x2d0] sm:$0xff]
  %v1485 = vld [vmem:[%s2 + $0x2d8] sm:$0xff]
  %v1486 = vld [vmem:[%s2 + $0x2e0] sm:$0xff]
  %v1487 = vld [vmem:[%s2 + $0x2e8] sm:$0xff]
  %v1488 = vld [vmem:[%s2 + $0x2f0] sm:$0xff]
  %v1489 = vld [vmem:[%s2 + $0x2f8] sm:$0xff]
  %v1490 = vld [vmem:[%s2 + $0x300] sm:$0xff]
  %v1491 = vld [vmem:[%s2 + $0x308] sm:$0xff]
  %v1493 = vsel %vm966, %v1482, 0
  %v1496 = vsel %vm966, %v1481, 0
  %v1499 = vsel %vm966, %v1480, 0
  %v1502 = vsel %vm966, %v1479, 0
  %v1505 = vsel %vm966, %v1478, 0
  %v1508 = vsel %vm966, %v1477, 0
  %v1511 = vsel %vm966, %v1476, 0
  %v1514 = vsel %vm966, %v1475, 0
  %v1517 = vsel %vm966, %v1483, 0
  %1519 = vmatprep.subr.mxu0 0.0
  %1520 = vmatpush1.msra.mxu0 %v1484
  %1521 = vmatprep.subr.mxu0 0.0
  %1522 = vmatpush1.msra.mxu0 %v1485
  %1523 = vmatprep.subr.mxu0 0.0
  %1524 = vmatpush1.msra.mxu0 %v1486
  %1525 = vmatprep.subr.mxu0 0.0
  %1526 = vmatpush1.msra.mxu0 %v1487
  %1527 = vmatprep.subr.mxu0 0.0
  %1528 = vmatpush1.msra.mxu0 %v1488
  %1529 = vmatprep.subr.mxu0 0.0
  %1530 = vmatpush1.msra.mxu0 %v1489
  %1531 = vmatprep.subr.mxu0 0.0
  %1532 = vmatpush1.msra.mxu0 %v1490
  %1533 = vmatprep.subr.mxu0 0.0
  %1534 = vmatpush1.msra.mxu0 %v1491
  %1535 = vmatprep.subr.mxu0 0.0
  %1536 = vmatpush1.msra.mxu0 0.0
  %1537 = vmatprep.subr.mxu0 0.0
  %1538 = vmatpush1.msra.mxu0 0.0
  %1539 = vmatprep.subr.mxu0 0.0
  %1540 = vmatpush1.msra.mxu0 0.0
  %1541 = vmatprep.subr.mxu0 0.0
  %1542 = vmatpush1.msra.mxu0 0.0
  %1543 = vmatprep.subr.mxu0 0.0
  %1544 = vmatpush1.msra.mxu0 0.0
  %1545 = vmatprep.subr.mxu0 0.0
  %1546 = vmatpush1.msra.mxu0 0.0
  %1547 = vmatprep.subr.mxu0 0.0
  %1548 = vmatpush1.msra.mxu0 0.0
  %1549 = vmatprep.subr.mxu0 0.0
  %1550 = vmatpush1.msra.mxu0 0.0
  %1551 = vmatprep.subr.mxu0 0.0
  %1552 = vmatpush1.msra.mxu0 0.0
  %1553 = vmatprep.subr.mxu0 0.0
  %1554 = vmatpush1.msra.mxu0 0.0
  %1555 = vmatprep.subr.mxu0 0.0
  %1556 = vmatpush1.msra.mxu0 0.0
  %1557 = vmatprep.subr.mxu0 0.0
  %1558 = vmatpush1.msra.mxu0 0.0
  %1559 = vmatprep.subr.mxu0 0.0
  %1560 = vmatpush1.msra.mxu0 0.0
  %1561 = vmatprep.subr.mxu0 0.0
  %1562 = vmatpush1.msra.mxu0 0.0
  %1563 = vmatprep.subr.mxu0 0.0
  %1564 = vmatpush1.msra.mxu0 0.0
  %1565 = vmatprep.subr.mxu0 0.0
  %1566 = vmatpush1.msra.mxu0 0.0
  %1567 = vmatprep.subr.mxu0 0.0
  %1568 = vmatpush1.msra.mxu0 0.0
  %1569 = vmatprep.subr.mxu0 0.0
  %1570 = vmatpush1.msra.mxu0 0.0
  %1571 = vmatprep.subr.mxu0 0.0
  %1572 = vmatpush1.msra.mxu0 0.0
  %1573 = vmatprep.subr.mxu0 0.0
  %1574 = vmatpush1.msra.mxu0 0.0
  %1575 = vmatprep.subr.mxu0 0.0
  %1576 = vmatpush1.msra.mxu0 0.0
  %1577 = vmatprep.subr.mxu0 0.0
  %1578 = vmatpush1.msra.mxu0 0.0
  %1579 = vmatprep.subr.mxu0 0.0
  %1580 = vmatpush1.msra.mxu0 0.0
  %1581 = vmatprep.subr.mxu0 0.0
  %1582 = vmatpush1.msra.mxu0 0.0
  %1583 = vmatprep.mubr.f32.mxu0 0.0
  %1584 = vmatmul.mubr.f32.gmra.mrb[0].mxu0 %v1493
  %v1585 = vpop.f32.mrb[0].mxu0
  %v1586 = vadd.f32 0.0, %v1585
  %v1587 = vpop.f32.mrb[0].mxu0
  %1588 = vmatprep.mubr.f32.mxu0 0.0
  %1589 = vmatmul.mubr.f32.gmra.mrb[0].mxu0 %v1496
  %v1590 = vpop.f32.mrb[0].mxu0
  %v1591 = vadd.f32 0.0, %v1590
  %v1592 = vpop.f32.mrb[0].mxu0
  %1593 = vmatprep.mubr.f32.mxu0 0.0
  %1594 = vmatmul.mubr.f32.gmra.mrb[0].mxu0 %v1499
  %v1595 = vpop.f32.mrb[0].mxu0
  %v1596 = vadd.f32 0.0, %v1595
  %v1597 = vpop.f32.mrb[0].mxu0
  %1598 = vmatprep.mubr.f32.mxu0 0.0
  %1599 = vmatmul.mubr.f32.gmra.mrb[0].mxu0 %v1502
  %v1600 = vpop.f32.mrb[0].mxu0
  %v1601 = vadd.f32 0.0, %v1600
  %v1602 = vpop.f32.mrb[0].mxu0
  %1603 = vmatprep.mubr.f32.mxu0 0.0
  %1604 = vmatmul.mubr.f32.gmra.mrb[0].mxu0 %v1505
  %v1605 = vpop.f32.mrb[0].mxu0
  %v1606 = vadd.f32 0.0, %v1605
  %v1607 = vpop.f32.mrb[0].mxu0
  %1608 = vmatprep.mubr.f32.mxu0 0.0
  %1609 = vmatmul.mubr.f32.gmra.mrb[0].mxu0 %v1508
  %v1610 = vpop.f32.mrb[0].mxu0
  %v1611 = vadd.f32 0.0, %v1610
  %v1612 = vpop.f32.mrb[0].mxu0
  %1613 = vmatprep.mubr.f32.mxu0 0.0
  %1614 = vmatmul.mubr.f32.gmra.mrb[0].mxu0 %v1511
  %v1615 = vpop.f32.mrb[0].mxu0
  %v1616 = vadd.f32 0.0, %v1615
  %v1617 = vpop.f32.mrb[0].mxu0
  %1618 = vmatprep.mubr.f32.mxu0 0.0
  %1619 = vmatmul.mubr.f32.gmra.mrb[0].mxu0 %v1514
  %v1620 = vpop.f32.mrb[0].mxu0
  %v1621 = vadd.f32 0.0, %v1620
  %v1622 = vpop.f32.mrb[0].mxu0
  %1623 = vmatprep.mubr.f32.mxu0 0.0
  %1624 = vmatmul.mubr.f32.gmra.mrb[0].mxu0 %v1517
  %v1625 = vpop.f32.mrb[0].mxu0
  %v1626 = vadd.f32 0.0, %v1625
  %v1627 = vpop.f32.mrb[0].mxu0
  %1628 = vdwg.mxu0
  %v1629 = vadd.f32 %v1456, %v1586
  %v1630 = vadd.f32 %v1457, %v1591
  %v1631 = vadd.f32 %v1458, %v1596
  %v1632 = vadd.f32 %v1459, %v1601
  %v1633 = vadd.f32 %v1460, %v1606
  %v1634 = vadd.f32 %v1461, %v1611
  %v1635 = vadd.f32 %v1462, %v1616
  %v1636 = vadd.f32 %v1463, %v1621
  %v1637 = vadd.f32 %v1464, %v1626
  %v1638 = vrot.slane %v948, 7
  %v1639 = vrot.slane %v949, 7
  %v1640 = vrot.slane %v950, 7
  %v1641 = vrot.slane %v951, 7
  %v1642 = vrot.slane %v952, 7
  %v1643 = vrot.slane %v953, 7
  %v1644 = vrot.slane %v954, 7
  %v1645 = vrot.slane %v955, 7
  %v1646 = vrot.slane %v956, 7
  %vm1647 = vcmp.lt.s32.totalorder %v1127, 1
  %v1648 = vsel %vm1647, %v1645, %v1646
  %v1649 = vsel %vm1647, %v1644, %v1645
  %v1650 = vsel %vm1647, %v1643, %v1644
  %v1651 = vsel %vm1647, %v1642, %v1643
  %v1652 = vsel %vm1647, %v1641, %v1642
  %v1653 = vsel %vm1647, %v1640, %v1641
  %v1654 = vsel %vm1647, %v1639, %v1640
  %v1655 = vsel %vm1647, %v1638, %v1639
  %v1656 = vsel %vm1647, %v1646, %v1638
  %v1657 = vld [vmem:[%s2 + $0x310] sm:$0xff]
  %v1658 = vld [vmem:[%s2 + $0x318] sm:$0xff]
  %v1659 = vld [vmem:[%s2 + $0x320] sm:$0xff]
  %v1660 = vld [vmem:[%s2 + $0x328] sm:$0xff]
  %v1661 = vld [vmem:[%s2 + $0x330] sm:$0xff]
  %v1662 = vld [vmem:[%s2 + $0x338] sm:$0xff]
  %v1663 = vld [vmem:[%s2 + $0x340] sm:$0xff]
  %v1664 = vld [vmem:[%s2 + $0x348] sm:$0xff]
  %v1666 = vsel %vm966, %v1655, 0
  %v1669 = vsel %vm966, %v1654, 0
  %v1672 = vsel %vm966, %v1653, 0
  %v1675 = vsel %vm966, %v1652, 0
  %v1678 = vsel %vm966, %v1651, 0
  %v1681 = vsel %vm966, %v1650, 0
  %v1684 = vsel %vm966, %v1649, 0
  %v1687 = vsel %vm966, %v1648, 0
  %v1690 = vsel %vm966, %v1656, 0
  %1692 = vmatprep.subr.mxu0 0.0
  %1693 = vmatpush1.msra.mxu0 %v1657
  %1694 = vmatprep.subr.mxu0 0.0
  %1695 = vmatpush1.msra.mxu0 %v1658
  %1696 = vmatprep.subr.mxu0 0.0
  %1697 = vmatpush1.msra.mxu0 %v1659
  %1698 = vmatprep.subr.mxu0 0.0
  %1699 = vmatpush1.msra.mxu0 %v1660
  %1700 = vmatprep.subr.mxu0 0.0
  %1701 = vmatpush1.msra.mxu0 %v1661
  %1702 = vmatprep.subr.mxu0 0.0
  %1703 = vmatpush1.msra.mxu0 %v1662
  %1704 = vmatprep.subr.mxu0 0.0
  %1705 = vmatpush1.msra.mxu0 %v1663
  %1706 = vmatprep.subr.mxu0 0.0
  %1707 = vmatpush1.msra.mxu0 %v1664
  %1708 = vmatprep.subr.mxu0 0.0
  %1709 = vmatpush1.msra.mxu0 0.0
  %1710 = vmatprep.subr.mxu0 0.0
  %1711 = vmatpush1.msra.mxu0 0.0
  %1712 = vmatprep.subr.mxu0 0.0
  %1713 = vmatpush1.msra.mxu0 0.0
  %1714 = vmatprep.subr.mxu0 0.0
  %1715 = vmatpush1.msra.mxu0 0.0
  %1716 = vmatprep.subr.mxu0 0.0
  %1717 = vmatpush1.msra.mxu0 0.0
  %1718 = vmatprep.subr.mxu0 0.0
  %1719 = vmatpush1.msra.mxu0 0.0
  %1720 = vmatprep.subr.mxu0 0.0
  %1721 = vmatpush1.msra.mxu0 0.0
  %1722 = vmatprep.subr.mxu0 0.0
  %1723 = vmatpush1.msra.mxu0 0.0
  %1724 = vmatprep.subr.mxu0 0.0
  %1725 = vmatpush1.msra.mxu0 0.0
  %1726 = vmatprep.subr.mxu0 0.0
  %1727 = vmatpush1.msra.mxu0 0.0
  %1728 = vmatprep.subr.mxu0 0.0
  %1729 = vmatpush1.msra.mxu0 0.0
  %1730 = vmatprep.subr.mxu0 0.0
  %1731 = vmatpush1.msra.mxu0 0.0
  %1732 = vmatprep.subr.mxu0 0.0
  %1733 = vmatpush1.msra.mxu0 0.0
  %1734 = vmatprep.subr.mxu0 0.0
  %1735 = vmatpush1.msra.mxu0 0.0
  %1736 = vmatprep.subr.mxu0 0.0
  %1737 = vmatpush1.msra.mxu0 0.0
  %1738 = vmatprep.subr.mxu0 0.0
  %1739 = vmatpush1.msra.mxu0 0.0
  %1740 = vmatprep.subr.mxu0 0.0
  %1741 = vmatpush1.msra.mxu0 0.0
  %1742 = vmatprep.subr.mxu0 0.0
  %1743 = vmatpush1.msra.mxu0 0.0
  %1744 = vmatprep.subr.mxu0 0.0
  %1745 = vmatpush1.msra.mxu0 0.0
  %1746 = vmatprep.subr.mxu0 0.0
  %1747 = vmatpush1.msra.mxu0 0.0
  %1748 = vmatprep.subr.mxu0 0.0
  %1749 = vmatpush1.msra.mxu0 0.0
  %1750 = vmatprep.subr.mxu0 0.0
  %1751 = vmatpush1.msra.mxu0 0.0
  %1752 = vmatprep.subr.mxu0 0.0
  %1753 = vmatpush1.msra.mxu0 0.0
  %1754 = vmatprep.subr.mxu0 0.0
  %1755 = vmatpush1.msra.mxu0 0.0
  %1756 = vmatprep.mubr.f32.mxu0 0.0
  %1757 = vmatmul.mubr.f32.gmra.mrb[0].mxu0 %v1666
  %v1758 = vpop.f32.mrb[0].mxu0
  %v1759 = vadd.f32 0.0, %v1758
  %v1760 = vpop.f32.mrb[0].mxu0
  %1761 = vmatprep.mubr.f32.mxu0 0.0
  %1762 = vmatmul.mubr.f32.gmra.mrb[0].mxu0 %v1669
  %v1763 = vpop.f32.mrb[0].mxu0
  %v1764 = vadd.f32 0.0, %v1763
  %v1765 = vpop.f32.mrb[0].mxu0
  %1766 = vmatprep.mubr.f32.mxu0 0.0
  %1767 = vmatmul.mubr.f32.gmra.mrb[0].mxu0 %v1672
  %v1768 = vpop.f32.mrb[0].mxu0
  %v1769 = vadd.f32 0.0, %v1768
  %v1770 = vpop.f32.mrb[0].mxu0
  %1771 = vmatprep.mubr.f32.mxu0 0.0
  %1772 = vmatmul.mubr.f32.gmra.mrb[0].mxu0 %v1675
  %v1773 = vpop.f32.mrb[0].mxu0
  %v1774 = vadd.f32 0.0, %v1773
  %v1775 = vpop.f32.mrb[0].mxu0
  %1776 = vmatprep.mubr.f32.mxu0 0.0
  %1777 = vmatmul.mubr.f32.gmra.mrb[0].mxu0 %v1678
  %v1778 = vpop.f32.mrb[0].mxu0
  %v1779 = vadd.f32 0.0, %v1778
  %v1780 = vpop.f32.mrb[0].mxu0
  %1781 = vmatprep.mubr.f32.mxu0 0.0
  %1782 = vmatmul.mubr.f32.gmra.mrb[0].mxu0 %v1681
  %v1783 = vpop.f32.mrb[0].mxu0
  %v1784 = vadd.f32 0.0, %v1783
  %v1785 = vpop.f32.mrb[0].mxu0
  %1786 = vmatprep.mubr.f32.mxu0 0.0
  %1787 = vmatmul.mubr.f32.gmra.mrb[0].mxu0 %v1684
  %v1788 = vpop.f32.mrb[0].mxu0
  %v1789 = vadd.f32 0.0, %v1788
  %v1790 = vpop.f32.mrb[0].mxu0
  %1791 = vmatprep.mubr.f32.mxu0 0.0
  %1792 = vmatmul.mubr.f32.gmra.mrb[0].mxu0 %v1687
  %v1793 = vpop.f32.mrb[0].mxu0
  %v1794 = vadd.f32 0.0, %v1793
  %v1795 = vpop.f32.mrb[0].mxu0
  %1796 = vmatprep.mubr.f32.mxu0 0.0
  %1797 = vmatmul.mubr.f32.gmra.mrb[0].mxu0 %v1690
  %v1798 = vpop.f32.mrb[0].mxu0
  %v1799 = vadd.f32 0.0, %v1798
  %v1800 = vpop.f32.mrb[0].mxu0
  %1801 = vdwg.mxu0
  %v1802 = vadd.f32 %v1629, %v1759
  %v1803 = vadd.f32 %v1630, %v1764
  %v1804 = vadd.f32 %v1631, %v1769
  %v1805 = vadd.f32 %v1632, %v1774
  %v1806 = vadd.f32 %v1633, %v1779
  %v1807 = vadd.f32 %v1634, %v1784
  %v1808 = vadd.f32 %v1635, %v1789
  %v1809 = vadd.f32 %v1636, %v1794
  %v1810 = vadd.f32 %v1637, %v1799
  %v1811 = vld [vmem:[%s2 + $0x350] sm:$0xff]
  %v1812 = vld [vmem:[%s2 + $0x358] sm:$0xff]
  %v1813 = vld [vmem:[%s2 + $0x360] sm:$0xff]
  %v1814 = vld [vmem:[%s2 + $0x368] sm:$0xff]
  %v1815 = vld [vmem:[%s2 + $0x370] sm:$0xff]
  %v1816 = vld [vmem:[%s2 + $0x378] sm:$0xff]
  %v1817 = vld [vmem:[%s2 + $0x380] sm:$0xff]
  %v1818 = vld [vmem:[%s2 + $0x388] sm:$0xff]
  %1819 = vmatprep.subr.mxu0 0.0
  %1820 = vmatpush1.msra.mxu0 %v1811
  %1821 = vmatprep.subr.mxu0 0.0
  %1822 = vmatpush1.msra.mxu0 %v1812
  %1823 = vmatprep.subr.mxu0 0.0
  %1824 = vmatpush1.msra.mxu0 %v1813
  %1825 = vmatprep.subr.mxu0 0.0
  %1826 = vmatpush1.msra.mxu0 %v1814
  %1827 = vmatprep.subr.mxu0 0.0
  %1828 = vmatpush1.msra.mxu0 %v1815
  %1829 = vmatprep.subr.mxu0 0.0
  %1830 = vmatpush1.msra.mxu0 %v1816
  %1831 = vmatprep.subr.mxu0 0.0
  %1832 = vmatpush1.msra.mxu0 %v1817
  %1833 = vmatprep.subr.mxu0 0.0
  %1834 = vmatpush1.msra.mxu0 %v1818
  %1835 = vmatprep.subr.mxu0 0.0
  %1836 = vmatpush1.msra.mxu0 0.0
  %1837 = vmatprep.subr.mxu0 0.0
  %1838 = vmatpush1.msra.mxu0 0.0
  %1839 = vmatprep.subr.mxu0 0.0
  %1840 = vmatpush1.msra.mxu0 0.0
  %1841 = vmatprep.subr.mxu0 0.0
  %1842 = vmatpush1.msra.mxu0 0.0
  %1843 = vmatprep.subr.mxu0 0.0
  %1844 = vmatpush1.msra.mxu0 0.0
  %1845 = vmatprep.subr.mxu0 0.0
  %1846 = vmatpush1.msra.mxu0 0.0
  %1847 = vmatprep.subr.mxu0 0.0
  %1848 = vmatpush1.msra.mxu0 0.0
  %1849 = vmatprep.subr.mxu0 0.0
  %1850 = vmatpush1.msra.mxu0 0.0
  %1851 = vmatprep.subr.mxu0 0.0
  %1852 = vmatpush1.msra.mxu0 0.0
  %1853 = vmatprep.subr.mxu0 0.0
  %1854 = vmatpush1.msra.mxu0 0.0
  %1855 = vmatprep.subr.mxu0 0.0
  %1856 = vmatpush1.msra.mxu0 0.0
  %1857 = vmatprep.subr.mxu0 0.0
  %1858 = vmatpush1.msra.mxu0 0.0
  %1859 = vmatprep.subr.mxu0 0.0
  %1860 = vmatpush1.msra.mxu0 0.0
  %1861 = vmatprep.subr.mxu0 0.0
  %1862 = vmatpush1.msra.mxu0 0.0
  %1863 = vmatprep.subr.mxu0 0.0
  %1864 = vmatpush1.msra.mxu0 0.0
  %1865 = vmatprep.subr.mxu0 0.0
  %1866 = vmatpush1.msra.mxu0 0.0
  %1867 = vmatprep.subr.mxu0 0.0
  %1868 = vmatpush1.msra.mxu0 0.0
  %1869 = vmatprep.subr.mxu0 0.0
  %1870 = vmatpush1.msra.mxu0 0.0
  %1871 = vmatprep.subr.mxu0 0.0
  %1872 = vmatpush1.msra.mxu0 0.0
  %1873 = vmatprep.subr.mxu0 0.0
  %1874 = vmatpush1.msra.mxu0 0.0
  %1875 = vmatprep.subr.mxu0 0.0
  %1876 = vmatpush1.msra.mxu0 0.0
  %1877 = vmatprep.subr.mxu0 0.0
  %1878 = vmatpush1.msra.mxu0 0.0
  %1879 = vmatprep.subr.mxu0 0.0
  %1880 = vmatpush1.msra.mxu0 0.0
  %1881 = vmatprep.subr.mxu0 0.0
  %1882 = vmatpush1.msra.mxu0 0.0
  %1883 = vmatprep.mubr.f32.mxu0 0.0
  %1884 = vmatmul.mubr.f32.gmra.mrb[0].mxu0 %v971
  %v1885 = vpop.f32.mrb[0].mxu0
  %v1886 = vadd.f32 0.0, %v1885
  %v1887 = vpop.f32.mrb[0].mxu0
  %1888 = vmatprep.mubr.f32.mxu0 0.0
  %1889 = vmatmul.mubr.f32.gmra.mrb[0].mxu0 %v974
  %v1890 = vpop.f32.mrb[0].mxu0
  %v1891 = vadd.f32 0.0, %v1890
  %v1892 = vpop.f32.mrb[0].mxu0
  %1893 = vmatprep.mubr.f32.mxu0 0.0
  %1894 = vmatmul.mubr.f32.gmra.mrb[0].mxu0 %v977
  %v1895 = vpop.f32.mrb[0].mxu0
  %v1896 = vadd.f32 0.0, %v1895
  %v1897 = vpop.f32.mrb[0].mxu0
  %1898 = vmatprep.mubr.f32.mxu0 0.0
  %1899 = vmatmul.mubr.f32.gmra.mrb[0].mxu0 %v980
  %v1900 = vpop.f32.mrb[0].mxu0
  %v1901 = vadd.f32 0.0, %v1900
  %v1902 = vpop.f32.mrb[0].mxu0
  %1903 = vmatprep.mubr.f32.mxu0 0.0
  %1904 = vmatmul.mubr.f32.gmra.mrb[0].mxu0 %v983
  %v1905 = vpop.f32.mrb[0].mxu0
  %v1906 = vadd.f32 0.0, %v1905
  %v1907 = vpop.f32.mrb[0].mxu0
  %1908 = vmatprep.mubr.f32.mxu0 0.0
  %1909 = vmatmul.mubr.f32.gmra.mrb[0].mxu0 %v986
  %v1910 = vpop.f32.mrb[0].mxu0
  %v1911 = vadd.f32 0.0, %v1910
  %v1912 = vpop.f32.mrb[0].mxu0
  %1913 = vmatprep.mubr.f32.mxu0 0.0
  %1914 = vmatmul.mubr.f32.gmra.mrb[0].mxu0 %v989
  %v1915 = vpop.f32.mrb[0].mxu0
  %v1916 = vadd.f32 0.0, %v1915
  %v1917 = vpop.f32.mrb[0].mxu0
  %1918 = vmatprep.mubr.f32.mxu0 0.0
  %1919 = vmatmul.mubr.f32.gmra.mrb[0].mxu0 %v992
  %v1920 = vpop.f32.mrb[0].mxu0
  %v1921 = vadd.f32 0.0, %v1920
  %v1922 = vpop.f32.mrb[0].mxu0
  %1923 = vmatprep.mubr.f32.mxu0 0.0
  %1924 = vmatmul.mubr.f32.gmra.mrb[0].mxu0 %v968
  %v1925 = vpop.f32.mrb[0].mxu0
  %v1926 = vadd.f32 0.0, %v1925
  %v1927 = vpop.f32.mrb[0].mxu0
  %1928 = vdwg.mxu0
  %v1929 = vadd.f32 %v1802, %v1886
  %v1930 = vadd.f32 %v1803, %v1891
  %v1931 = vadd.f32 %v1804, %v1896
  %v1932 = vadd.f32 %v1805, %v1901
  %v1933 = vadd.f32 %v1806, %v1906
  %v1934 = vadd.f32 %v1807, %v1911
  %v1935 = vadd.f32 %v1808, %v1916
  %v1936 = vadd.f32 %v1809, %v1921
  %v1937 = vadd.f32 %v1810, %v1926
  %v1938 = vrot.slane %v948, 4
  %v1939 = vrot.slane %v949, 4
  %v1940 = vrot.slane %v950, 4
  %v1941 = vrot.slane %v951, 4
  %v1942 = vrot.slane %v952, 4
  %v1943 = vrot.slane %v953, 4
  %v1944 = vrot.slane %v954, 4
  %v1945 = vrot.slane %v955, 4
  %v1946 = vrot.slane %v956, 4
  %vm1947 = vcmp.lt.s32.totalorder %v1127, 4
  %v1948 = vsel %vm1947, %v1945, %v1946
  %v1949 = vsel %vm1947, %v1944, %v1945
  %v1950 = vsel %vm1947, %v1943, %v1944
  %v1951 = vsel %vm1947, %v1942, %v1943
  %v1952 = vsel %vm1947, %v1941, %v1942
  %v1953 = vsel %vm1947, %v1940, %v1941
  %v1954 = vsel %vm1947, %v1939, %v1940
  %v1955 = vsel %vm1947, %v1938, %v1939
  %v1956 = vsel %vm1947, %v1946, %v1938
  %v1957 = vld [vmem:[%s2 + $0x390] sm:$0xff]
  %v1958 = vld [vmem:[%s2 + $0x398] sm:$0xff]
  %v1959 = vld [vmem:[%s2 + $0x3a0] sm:$0xff]
  %v1960 = vld [vmem:[%s2 + $0x3a8] sm:$0xff]
  %v1961 = vld [vmem:[%s2 + $0x3b0] sm:$0xff]
  %v1962 = vld [vmem:[%s2 + $0x3b8] sm:$0xff]
  %v1963 = vld [vmem:[%s2 + $0x3c0] sm:$0xff]
  %v1964 = vld [vmem:[%s2 + $0x3c8] sm:$0xff]
  %v1966 = vsel %vm966, %v1954, 0
  %v1969 = vsel %vm966, %v1953, 0
  %v1972 = vsel %vm966, %v1952, 0
  %v1975 = vsel %vm966, %v1951, 0
  %v1978 = vsel %vm966, %v1950, 0
  %v1981 = vsel %vm966, %v1949, 0
  %v1984 = vsel %vm966, %v1948, 0
  %v1987 = vsel %vm966, %v1956, 0
  %v1990 = vsel %vm966, %v1955, 0
  %1992 = vmatprep.subr.mxu0 0.0
  %1993 = vmatpush1.msra.mxu0 %v1957
  %1994 = vmatprep.subr.mxu0 0.0
  %1995 = vmatpush1.msra.mxu0 %v1958
  %1996 = vmatprep.subr.mxu0 0.0
  %1997 = vmatpush1.msra.mxu0 %v1959
  %1998 = vmatprep.subr.mxu0 0.0
  %1999 = vmatpush1.msra.mxu0 %v1960
  %2000 = vmatprep.subr.mxu0 0.0
  %2001 = vmatpush1.msra.mxu0 %v1961
  %2002 = vmatprep.subr.mxu0 0.0
  %2003 = vmatpush1.msra.mxu0 %v1962
  %2004 = vmatprep.subr.mxu0 0.0
  %2005 = vmatpush1.msra.mxu0 %v1963
  %2006 = vmatprep.subr.mxu0 0.0
  %2007 = vmatpush1.msra.mxu0 %v1964
  %2008 = vmatprep.subr.mxu0 0.0
  %2009 = vmatpush1.msra.mxu0 0.0
  %2010 = vmatprep.subr.mxu0 0.0
  %2011 = vmatpush1.msra.mxu0 0.0
  %2012 = vmatprep.subr.mxu0 0.0
  %2013 = vmatpush1.msra.mxu0 0.0
  %2014 = vmatprep.subr.mxu0 0.0
  %2015 = vmatpush1.msra.mxu0 0.0
  %2016 = vmatprep.subr.mxu0 0.0
  %2017 = vmatpush1.msra.mxu0 0.0
  %2018 = vmatprep.subr.mxu0 0.0
  %2019 = vmatpush1.msra.mxu0 0.0
  %2020 = vmatprep.subr.mxu0 0.0
  %2021 = vmatpush1.msra.mxu0 0.0
  %2022 = vmatprep.subr.mxu0 0.0
  %2023 = vmatpush1.msra.mxu0 0.0
  %2024 = vmatprep.subr.mxu0 0.0
  %2025 = vmatpush1.msra.mxu0 0.0
  %2026 = vmatprep.subr.mxu0 0.0
  %2027 = vmatpush1.msra.mxu0 0.0
  %2028 = vmatprep.subr.mxu0 0.0
  %2029 = vmatpush1.msra.mxu0 0.0
  %2030 = vmatprep.subr.mxu0 0.0
  %2031 = vmatpush1.msra.mxu0 0.0
  %2032 = vmatprep.subr.mxu0 0.0
  %2033 = vmatpush1.msra.mxu0 0.0
  %2034 = vmatprep.subr.mxu0 0.0
  %2035 = vmatpush1.msra.mxu0 0.0
  %2036 = vmatprep.subr.mxu0 0.0
  %2037 = vmatpush1.msra.mxu0 0.0
  %2038 = vmatprep.subr.mxu0 0.0
  %2039 = vmatpush1.msra.mxu0 0.0
  %2040 = vmatprep.subr.mxu0 0.0
  %2041 = vmatpush1.msra.mxu0 0.0
  %2042 = vmatprep.subr.mxu0 0.0
  %2043 = vmatpush1.msra.mxu0 0.0
  %2044 = vmatprep.subr.mxu0 0.0
  %2045 = vmatpush1.msra.mxu0 0.0
  %2046 = vmatprep.subr.mxu0 0.0
  %2047 = vmatpush1.msra.mxu0 0.0
  %2048 = vmatprep.subr.mxu0 0.0
  %2049 = vmatpush1.msra.mxu0 0.0
  %2050 = vmatprep.subr.mxu0 0.0
  %2051 = vmatpush1.msra.mxu0 0.0
  %2052 = vmatprep.subr.mxu0 0.0
  %2053 = vmatpush1.msra.mxu0 0.0
  %2054 = vmatprep.subr.mxu0 0.0
  %2055 = vmatpush1.msra.mxu0 0.0
  %2056 = vmatprep.mubr.f32.mxu0 0.0
  %2057 = vmatmul.mubr.f32.gmra.mrb[0].mxu0 %v1966
  %v2058 = vpop.f32.mrb[0].mxu0
  %v2059 = vadd.f32 0.0, %v2058
  %v2060 = vpop.f32.mrb[0].mxu0
  %2061 = vmatprep.mubr.f32.mxu0 0.0
  %2062 = vmatmul.mubr.f32.gmra.mrb[0].mxu0 %v1969
  %v2063 = vpop.f32.mrb[0].mxu0
  %v2064 = vadd.f32 0.0, %v2063
  %v2065 = vpop.f32.mrb[0].mxu0
  %2066 = vmatprep.mubr.f32.mxu0 0.0
  %2067 = vmatmul.mubr.f32.gmra.mrb[0].mxu0 %v1972
  %v2068 = vpop.f32.mrb[0].mxu0
  %v2069 = vadd.f32 0.0, %v2068
  %v2070 = vpop.f32.mrb[0].mxu0
  %2071 = vmatprep.mubr.f32.mxu0 0.0
  %2072 = vmatmul.mubr.f32.gmra.mrb[0].mxu0 %v1975
  %v2073 = vpop.f32.mrb[0].mxu0
  %v2074 = vadd.f32 0.0, %v2073
  %v2075 = vpop.f32.mrb[0].mxu0
  %2076 = vmatprep.mubr.f32.mxu0 0.0
  %2077 = vmatmul.mubr.f32.gmra.mrb[0].mxu0 %v1978
  %v2078 = vpop.f32.mrb[0].mxu0
  %v2079 = vadd.f32 0.0, %v2078
  %v2080 = vpop.f32.mrb[0].mxu0
  %2081 = vmatprep.mubr.f32.mxu0 0.0
  %2082 = vmatmul.mubr.f32.gmra.mrb[0].mxu0 %v1981
  %v2083 = vpop.f32.mrb[0].mxu0
  %v2084 = vadd.f32 0.0, %v2083
  %v2085 = vpop.f32.mrb[0].mxu0
  %2086 = vmatprep.mubr.f32.mxu0 0.0
  %2087 = vmatmul.mubr.f32.gmra.mrb[0].mxu0 %v1984
  %v2088 = vpop.f32.mrb[0].mxu0
  %v2089 = vadd.f32 0.0, %v2088
  %v2090 = vpop.f32.mrb[0].mxu0
  %2091 = vmatprep.mubr.f32.mxu0 0.0
  %2092 = vmatmul.mubr.f32.gmra.mrb[0].mxu0 %v1987
  %v2093 = vpop.f32.mrb[0].mxu0
  %v2094 = vadd.f32 0.0, %v2093
  %v2095 = vpop.f32.mrb[0].mxu0
  %2096 = vmatprep.mubr.f32.mxu0 0.0
  %2097 = vmatmul.mubr.f32.gmra.mrb[0].mxu0 %v1990
  %v2098 = vpop.f32.mrb[0].mxu0
  %v2099 = vadd.f32 0.0, %v2098
  %v2100 = vpop.f32.mrb[0].mxu0
  %2101 = vdwg.mxu0
  %v2102 = vadd.f32 %v1929, %v2059
  %v2103 = vadd.f32 %v1930, %v2064
  %v2104 = vadd.f32 %v1931, %v2069
  %v2105 = vadd.f32 %v1932, %v2074
  %v2106 = vadd.f32 %v1933, %v2079
  %v2107 = vadd.f32 %v1934, %v2084
  %v2108 = vadd.f32 %v1935, %v2089
  %v2109 = vadd.f32 %v1936, %v2094
  %v2110 = vadd.f32 %v1937, %v2099
  %v2111 = vrot.slane %v948, 5
  %v2112 = vrot.slane %v949, 5
  %v2113 = vrot.slane %v950, 5
  %v2114 = vrot.slane %v951, 5
  %v2115 = vrot.slane %v952, 5
  %v2116 = vrot.slane %v953, 5
  %v2117 = vrot.slane %v954, 5
  %v2118 = vrot.slane %v955, 5
  %v2119 = vrot.slane %v956, 5
  %vm2120 = vcmp.lt.s32.totalorder %v1127, 3
  %v2121 = vsel %vm2120, %v2118, %v2119
  %v2122 = vsel %vm2120, %v2117, %v2118
  %v2123 = vsel %vm2120, %v2116, %v2117
  %v2124 = vsel %vm2120, %v2115, %v2116
  %v2125 = vsel %vm2120, %v2114, %v2115
  %v2126 = vsel %vm2120, %v2113, %v2114
  %v2127 = vsel %vm2120, %v2112, %v2113
  %v2128 = vsel %vm2120, %v2111, %v2112
  %v2129 = vsel %vm2120, %v2119, %v2111
  %v2130 = vld [vmem:[%s2 + $0x3d0] sm:$0xff]
  %v2131 = vld [vmem:[%s2 + $0x3d8] sm:$0xff]
  %v2132 = vld [vmem:[%s2 + $0x3e0] sm:$0xff]
  %v2133 = vld [vmem:[%s2 + $0x3e8] sm:$0xff]
  %v2134 = vld [vmem:[%s2 + $0x3f0] sm:$0xff]
  %v2135 = vld [vmem:[%s2 + $0x3f8] sm:$0xff]
  %v2136 = vld [vmem:[%s2 + $0x400] sm:$0xff]
  %v2137 = vld [vmem:[%s2 + $0x408] sm:$0xff]
  %v2139 = vsel %vm966, %v2127, 0
  %v2142 = vsel %vm966, %v2126, 0
  %v2145 = vsel %vm966, %v2125, 0
  %v2148 = vsel %vm966, %v2124, 0
  %v2151 = vsel %vm966, %v2123, 0
  %v2154 = vsel %vm966, %v2122, 0
  %v2157 = vsel %vm966, %v2121, 0
  %v2160 = vsel %vm966, %v2129, 0
  %v2163 = vsel %vm966, %v2128, 0
  %2165 = vmatprep.subr.mxu0 0.0
  %2166 = vmatpush1.msra.mxu0 %v2130
  %2167 = vmatprep.subr.mxu0 0.0
  %2168 = vmatpush1.msra.mxu0 %v2131
  %2169 = vmatprep.subr.mxu0 0.0
  %2170 = vmatpush1.msra.mxu0 %v2132
  %2171 = vmatprep.subr.mxu0 0.0
  %2172 = vmatpush1.msra.mxu0 %v2133
  %2173 = vmatprep.subr.mxu0 0.0
  %2174 = vmatpush1.msra.mxu0 %v2134
  %2175 = vmatprep.subr.mxu0 0.0
  %2176 = vmatpush1.msra.mxu0 %v2135
  %2177 = vmatprep.subr.mxu0 0.0
  %2178 = vmatpush1.msra.mxu0 %v2136
  %2179 = vmatprep.subr.mxu0 0.0
  %2180 = vmatpush1.msra.mxu0 %v2137
  %2181 = vmatprep.subr.mxu0 0.0
  %2182 = vmatpush1.msra.mxu0 0.0
  %2183 = vmatprep.subr.mxu0 0.0
  %2184 = vmatpush1.msra.mxu0 0.0
  %2185 = vmatprep.subr.mxu0 0.0
  %2186 = vmatpush1.msra.mxu0 0.0
  %2187 = vmatprep.subr.mxu0 0.0
  %2188 = vmatpush1.msra.mxu0 0.0
  %2189 = vmatprep.subr.mxu0 0.0
  %2190 = vmatpush1.msra.mxu0 0.0
  %2191 = vmatprep.subr.mxu0 0.0
  %2192 = vmatpush1.msra.mxu0 0.0
  %2193 = vmatprep.subr.mxu0 0.0
  %2194 = vmatpush1.msra.mxu0 0.0
  %2195 = vmatprep.subr.mxu0 0.0
  %2196 = vmatpush1.msra.mxu0 0.0
  %2197 = vmatprep.subr.mxu0 0.0
  %2198 = vmatpush1.msra.mxu0 0.0
  %2199 = vmatprep.subr.mxu0 0.0
  %2200 = vmatpush1.msra.mxu0 0.0
  %2201 = vmatprep.subr.mxu0 0.0
  %2202 = vmatpush1.msra.mxu0 0.0
  %2203 = vmatprep.subr.mxu0 0.0
  %2204 = vmatpush1.msra.mxu0 0.0
  %2205 = vmatprep.subr.mxu0 0.0
  %2206 = vmatpush1.msra.mxu0 0.0
  %2207 = vmatprep.subr.mxu0 0.0
  %2208 = vmatpush1.msra.mxu0 0.0
  %2209 = vmatprep.subr.mxu0 0.0
  %2210 = vmatpush1.msra.mxu0 0.0
  %2211 = vmatprep.subr.mxu0 0.0
  %2212 = vmatpush1.msra.mxu0 0.0
  %2213 = vmatprep.subr.mxu0 0.0
  %2214 = vmatpush1.msra.mxu0 0.0
  %2215 = vmatprep.subr.mxu0 0.0
  %2216 = vmatpush1.msra.mxu0 0.0
  %2217 = vmatprep.subr.mxu0 0.0
  %2218 = vmatpush1.msra.mxu0 0.0
  %2219 = vmatprep.subr.mxu0 0.0
  %2220 = vmatpush1.msra.mxu0 0.0
  %2221 = vmatprep.subr.mxu0 0.0
  %2222 = vmatpush1.msra.mxu0 0.0
  %2223 = vmatprep.subr.mxu0 0.0
  %2224 = vmatpush1.msra.mxu0 0.0
  %2225 = vmatprep.subr.mxu0 0.0
  %2226 = vmatpush1.msra.mxu0 0.0
  %2227 = vmatprep.subr.mxu0 0.0
  %2228 = vmatpush1.msra.mxu0 0.0
  %2229 = vmatprep.mubr.f32.mxu0 0.0
  %2230 = vmatmul.mubr.f32.gmra.mrb[0].mxu0 %v2139
  %v2231 = vpop.f32.mrb[0].mxu0
  %v2232 = vadd.f32 0.0, %v2231
  %v2233 = vpop.f32.mrb[0].mxu0
  %2234 = vmatprep.mubr.f32.mxu0 0.0
  %2235 = vmatmul.mubr.f32.gmra.mrb[0].mxu0 %v2142
  %v2236 = vpop.f32.mrb[0].mxu0
  %v2237 = vadd.f32 0.0, %v2236
  %v2238 = vpop.f32.mrb[0].mxu0
  %2239 = vmatprep.mubr.f32.mxu0 0.0
  %2240 = vmatmul.mubr.f32.gmra.mrb[0].mxu0 %v2145
  %v2241 = vpop.f32.mrb[0].mxu0
  %v2242 = vadd.f32 0.0, %v2241
  %v2243 = vpop.f32.mrb[0].mxu0
  %2244 = vmatprep.mubr.f32.mxu0 0.0
  %2245 = vmatmul.mubr.f32.gmra.mrb[0].mxu0 %v2148
  %v2246 = vpop.f32.mrb[0].mxu0
  %v2247 = vadd.f32 0.0, %v2246
  %v2248 = vpop.f32.mrb[0].mxu0
  %2249 = vmatprep.mubr.f32.mxu0 0.0
  %2250 = vmatmul.mubr.f32.gmra.mrb[0].mxu0 %v2151
  %v2251 = vpop.f32.mrb[0].mxu0
  %v2252 = vadd.f32 0.0, %v2251
  %v2253 = vpop.f32.mrb[0].mxu0
  %2254 = vmatprep.mubr.f32.mxu0 0.0
  %2255 = vmatmul.mubr.f32.gmra.mrb[0].mxu0 %v2154
  %v2256 = vpop.f32.mrb[0].mxu0
  %v2257 = vadd.f32 0.0, %v2256
  %v2258 = vpop.f32.mrb[0].mxu0
  %2259 = vmatprep.mubr.f32.mxu0 0.0
  %2260 = vmatmul.mubr.f32.gmra.mrb[0].mxu0 %v2157
  %v2261 = vpop.f32.mrb[0].mxu0
  %v2262 = vadd.f32 0.0, %v2261
  %v2263 = vpop.f32.mrb[0].mxu0
  %2264 = vmatprep.mubr.f32.mxu0 0.0
  %2265 = vmatmul.mubr.f32.gmra.mrb[0].mxu0 %v2160
  %v2266 = vpop.f32.mrb[0].mxu0
  %v2267 = vadd.f32 0.0, %v2266
  %v2268 = vpop.f32.mrb[0].mxu0
  %2269 = vmatprep.mubr.f32.mxu0 0.0
  %2270 = vmatmul.mubr.f32.gmra.mrb[0].mxu0 %v2163
  %v2271 = vpop.f32.mrb[0].mxu0
  %v2272 = vadd.f32 0.0, %v2271
  %v2273 = vpop.f32.mrb[0].mxu0
  %2274 = vdwg.mxu0
  %v2275 = vadd.f32 %v2102, %v2232
  %v2276 = vadd.f32 %v2103, %v2237
  %v2277 = vadd.f32 %v2104, %v2242
  %v2278 = vadd.f32 %v2105, %v2247
  %v2279 = vadd.f32 %v2106, %v2252
  %v2280 = vadd.f32 %v2107, %v2257
  %v2281 = vadd.f32 %v2108, %v2262
  %v2282 = vadd.f32 %v2109, %v2267
  %v2283 = vadd.f32 %v2110, %v2272
  %v2284 = vld [vmem:[%s2 + $0x410] sm:$0xff]
  %v2285 = vld [vmem:[%s2 + $0x418] sm:$0xff]
  %v2286 = vld [vmem:[%s2 + $0x420] sm:$0xff]
  %v2287 = vld [vmem:[%s2 + $0x428] sm:$0xff]
  %v2288 = vld [vmem:[%s2 + $0x430] sm:$0xff]
  %v2289 = vld [vmem:[%s2 + $0x438] sm:$0xff]
  %v2290 = vld [vmem:[%s2 + $0x440] sm:$0xff]
  %v2291 = vld [vmem:[%s2 + $0x448] sm:$0xff]
  %2292 = vmatprep.subr.mxu0 0.0
  %2293 = vmatpush1.msra.mxu0 %v2284
  %2294 = vmatprep.subr.mxu0 0.0
  %2295 = vmatpush1.msra.mxu0 %v2285
  %2296 = vmatprep.subr.mxu0 0.0
  %2297 = vmatpush1.msra.mxu0 %v2286
  %2298 = vmatprep.subr.mxu0 0.0
  %2299 = vmatpush1.msra.mxu0 %v2287
  %2300 = vmatprep.subr.mxu0 0.0
  %2301 = vmatpush1.msra.mxu0 %v2288
  %2302 = vmatprep.subr.mxu0 0.0
  %2303 = vmatpush1.msra.mxu0 %v2289
  %2304 = vmatprep.subr.mxu0 0.0
  %2305 = vmatpush1.msra.mxu0 %v2290
  %2306 = vmatprep.subr.mxu0 0.0
  %2307 = vmatpush1.msra.mxu0 %v2291
  %2308 = vmatprep.subr.mxu0 0.0
  %2309 = vmatpush1.msra.mxu0 0.0
  %2310 = vmatprep.subr.mxu0 0.0
  %2311 = vmatpush1.msra.mxu0 0.0
  %2312 = vmatprep.subr.mxu0 0.0
  %2313 = vmatpush1.msra.mxu0 0.0
  %2314 = vmatprep.subr.mxu0 0.0
  %2315 = vmatpush1.msra.mxu0 0.0
  %2316 = vmatprep.subr.mxu0 0.0
  %2317 = vmatpush1.msra.mxu0 0.0
  %2318 = vmatprep.subr.mxu0 0.0
  %2319 = vmatpush1.msra.mxu0 0.0
  %2320 = vmatprep.subr.mxu0 0.0
  %2321 = vmatpush1.msra.mxu0 0.0
  %2322 = vmatprep.subr.mxu0 0.0
  %2323 = vmatpush1.msra.mxu0 0.0
  %2324 = vmatprep.subr.mxu0 0.0
  %2325 = vmatpush1.msra.mxu0 0.0
  %2326 = vmatprep.subr.mxu0 0.0
  %2327 = vmatpush1.msra.mxu0 0.0
  %2328 = vmatprep.subr.mxu0 0.0
  %2329 = vmatpush1.msra.mxu0 0.0
  %2330 = vmatprep.subr.mxu0 0.0
  %2331 = vmatpush1.msra.mxu0 0.0
  %2332 = vmatprep.subr.mxu0 0.0
  %2333 = vmatpush1.msra.mxu0 0.0
  %2334 = vmatprep.subr.mxu0 0.0
  %2335 = vmatpush1.msra.mxu0 0.0
  %2336 = vmatprep.subr.mxu0 0.0
  %2337 = vmatpush1.msra.mxu0 0.0
  %2338 = vmatprep.subr.mxu0 0.0
  %2339 = vmatpush1.msra.mxu0 0.0
  %2340 = vmatprep.subr.mxu0 0.0
  %2341 = vmatpush1.msra.mxu0 0.0
  %2342 = vmatprep.subr.mxu0 0.0
  %2343 = vmatpush1.msra.mxu0 0.0
  %2344 = vmatprep.subr.mxu0 0.0
  %2345 = vmatpush1.msra.mxu0 0.0
  %2346 = vmatprep.subr.mxu0 0.0
  %2347 = vmatpush1.msra.mxu0 0.0
  %2348 = vmatprep.subr.mxu0 0.0
  %2349 = vmatpush1.msra.mxu0 0.0
  %2350 = vmatprep.subr.mxu0 0.0
  %2351 = vmatpush1.msra.mxu0 0.0
  %2352 = vmatprep.subr.mxu0 0.0
  %2353 = vmatpush1.msra.mxu0 0.0
  %2354 = vmatprep.subr.mxu0 0.0
  %2355 = vmatpush1.msra.mxu0 0.0
  %2356 = vmatprep.mubr.f32.mxu0 0.0
  %2357 = vmatmul.mubr.f32.gmra.mrb[0].mxu0 %v1496
  %v2358 = vpop.f32.mrb[0].mxu0
  %v2359 = vadd.f32 0.0, %v2358
  %v2360 = vpop.f32.mrb[0].mxu0
  %2361 = vmatprep.mubr.f32.mxu0 0.0
  %2362 = vmatmul.mubr.f32.gmra.mrb[0].mxu0 %v1499
  %v2363 = vpop.f32.mrb[0].mxu0
  %v2364 = vadd.f32 0.0, %v2363
  %v2365 = vpop.f32.mrb[0].mxu0
  %2366 = vmatprep.mubr.f32.mxu0 0.0
  %2367 = vmatmul.mubr.f32.gmra.mrb[0].mxu0 %v1502
  %v2368 = vpop.f32.mrb[0].mxu0
  %v2369 = vadd.f32 0.0, %v2368
  %v2370 = vpop.f32.mrb[0].mxu0
  %2371 = vmatprep.mubr.f32.mxu0 0.0
  %2372 = vmatmul.mubr.f32.gmra.mrb[0].mxu0 %v1505
  %v2373 = vpop.f32.mrb[0].mxu0
  %v2374 = vadd.f32 0.0, %v2373
  %v2375 = vpop.f32.mrb[0].mxu0
  %2376 = vmatprep.mubr.f32.mxu0 0.0
  %2377 = vmatmul.mubr.f32.gmra.mrb[0].mxu0 %v1508
  %v2378 = vpop.f32.mrb[0].mxu0
  %v2379 = vadd.f32 0.0, %v2378
  %v2380 = vpop.f32.mrb[0].mxu0
  %2381 = vmatprep.mubr.f32.mxu0 0.0
  %2382 = vmatmul.mubr.f32.gmra.mrb[0].mxu0 %v1511
  %v2383 = vpop.f32.mrb[0].mxu0
  %v2384 = vadd.f32 0.0, %v2383
  %v2385 = vpop.f32.mrb[0].mxu0
  %2386 = vmatprep.mubr.f32.mxu0 0.0
  %2387 = vmatmul.mubr.f32.gmra.mrb[0].mxu0 %v1514
  %v2388 = vpop.f32.mrb[0].mxu0
  %v2389 = vadd.f32 0.0, %v2388
  %v2390 = vpop.f32.mrb[0].mxu0
  %2391 = vmatprep.mubr.f32.mxu0 0.0
  %2392 = vmatmul.mubr.f32.gmra.mrb[0].mxu0 %v1517
  %v2393 = vpop.f32.mrb[0].mxu0
  %v2394 = vadd.f32 0.0, %v2393
  %v2395 = vpop.f32.mrb[0].mxu0
  %2396 = vmatprep.mubr.f32.mxu0 0.0
  %2397 = vmatmul.mubr.f32.gmra.mrb[0].mxu0 %v1493
  %v2398 = vpop.f32.mrb[0].mxu0
  %v2399 = vadd.f32 0.0, %v2398
  %v2400 = vpop.f32.mrb[0].mxu0
  %2401 = vdwg.mxu0
  %v2402 = vadd.f32 %v2275, %v2359
  %v2403 = vadd.f32 %v2276, %v2364
  %v2404 = vadd.f32 %v2277, %v2369
  %v2405 = vadd.f32 %v2278, %v2374
  %v2406 = vadd.f32 %v2279, %v2379
  %v2407 = vadd.f32 %v2280, %v2384
  %v2408 = vadd.f32 %v2281, %v2389
  %v2409 = vadd.f32 %v2282, %v2394
  %v2410 = vadd.f32 %v2283, %v2399
  %v2411 = vmax.f32 %v2402, 0.0
  %v2412 = vmax.f32 %v2403, 0.0
  %v2413 = vmax.f32 %v2404, 0.0
  %v2414 = vmax.f32 %v2405, 0.0
  %v2415 = vmax.f32 %v2406, 0.0
  %v2416 = vmax.f32 %v2407, 0.0
  %v2417 = vmax.f32 %v2408, 0.0
  %v2418 = vmax.f32 %v2409, 0.0
  %v2419 = vmax.f32 %v2410, 0.0
  %v2420 = vld [vmem:[%s2 + $0x450] sm:$0xff]
  %v2421 = vld [vmem:[%s2 + $0x458] sm:$0xff]
  %v2422 = vld [vmem:[%s2 + $0x460] sm:$0xff]
  %v2423 = vld [vmem:[%s2 + $0x468] sm:$0xff]
  %v2424 = vld [vmem:[%s2 + $0x470] sm:$0xff]
  %v2425 = vld [vmem:[%s2 + $0x478] sm:$0xff]
  %v2426 = vld [vmem:[%s2 + $0x480] sm:$0xff]
  %v2427 = vld [vmem:[%s2 + $0x488] sm:$0xff]
  %v2428 = vld [vmem:[%s2 + $0x490] sm:$0x1]
  %v2429 = vlaneseq
  %v2430 = vshrl.u32 %v2429, 7
  %v2431 = vsub.s32 0, %v2430
  %v2432 = vrot.slane %v2428, %v2431
  %v2434 = vsel %vm966, %v2411, 0
  %v2437 = vsel %vm966, %v2412, 0
  %v2440 = vsel %vm966, %v2413, 0
  %v2443 = vsel %vm966, %v2414, 0
  %v2446 = vsel %vm966, %v2415, 0
  %v2449 = vsel %vm966, %v2416, 0
  %v2452 = vsel %vm966, %v2417, 0
  %v2455 = vsel %vm966, %v2418, 0
  %v2458 = vsel %vm966, %v2419, 0
  %2460 = vmatprep.subr.mxu0 0.0
  %2461 = vmatpush1.msra.mxu0 %v2420
  %2462 = vmatprep.subr.mxu0 0.0
  %2463 = vmatpush1.msra.mxu0 %v2421
  %2464 = vmatprep.subr.mxu0 0.0
  %2465 = vmatpush1.msra.mxu0 %v2422
  %2466 = vmatprep.subr.mxu0 0.0
  %2467 = vmatpush1.msra.mxu0 %v2423
  %2468 = vmatprep.subr.mxu0 0.0
  %2469 = vmatpush1.msra.mxu0 %v2424
  %2470 = vmatprep.subr.mxu0 0.0
  %2471 = vmatpush1.msra.mxu0 %v2425
  %2472 = vmatprep.subr.mxu0 0.0
  %2473 = vmatpush1.msra.mxu0 %v2426
  %2474 = vmatprep.subr.mxu0 0.0
  %2475 = vmatpush1.msra.mxu0 %v2427
  %2476 = vmatprep.subr.mxu0 0.0
  %2477 = vmatpush1.msra.mxu0 0.0
  %2478 = vmatprep.subr.mxu0 0.0
  %2479 = vmatpush1.msra.mxu0 0.0
  %2480 = vmatprep.subr.mxu0 0.0
  %2481 = vmatpush1.msra.mxu0 0.0
  %2482 = vmatprep.subr.mxu0 0.0
  %2483 = vmatpush1.msra.mxu0 0.0
  %2484 = vmatprep.subr.mxu0 0.0
  %2485 = vmatpush1.msra.mxu0 0.0
  %2486 = vmatprep.subr.mxu0 0.0
  %2487 = vmatpush1.msra.mxu0 0.0
  %2488 = vmatprep.subr.mxu0 0.0
  %2489 = vmatpush1.msra.mxu0 0.0
  %2490 = vmatprep.subr.mxu0 0.0
  %2491 = vmatpush1.msra.mxu0 0.0
  %2492 = vmatprep.subr.mxu0 0.0
  %2493 = vmatpush1.msra.mxu0 0.0
  %2494 = vmatprep.subr.mxu0 0.0
  %2495 = vmatpush1.msra.mxu0 0.0
  %2496 = vmatprep.subr.mxu0 0.0
  %2497 = vmatpush1.msra.mxu0 0.0
  %2498 = vmatprep.subr.mxu0 0.0
  %2499 = vmatpush1.msra.mxu0 0.0
  %2500 = vmatprep.subr.mxu0 0.0
  %2501 = vmatpush1.msra.mxu0 0.0
  %2502 = vmatprep.subr.mxu0 0.0
  %2503 = vmatpush1.msra.mxu0 0.0
  %2504 = vmatprep.subr.mxu0 0.0
  %2505 = vmatpush1.msra.mxu0 0.0
  %2506 = vmatprep.subr.mxu0 0.0
  %2507 = vmatpush1.msra.mxu0 0.0
  %2508 = vmatprep.subr.mxu0 0.0
  %2509 = vmatpush1.msra.mxu0 0.0
  %2510 = vmatprep.subr.mxu0 0.0
  %2511 = vmatpush1.msra.mxu0 0.0
  %2512 = vmatprep.subr.mxu0 0.0
  %2513 = vmatpush1.msra.mxu0 0.0
  %2514 = vmatprep.subr.mxu0 0.0
  %2515 = vmatpush1.msra.mxu0 0.0
  %2516 = vmatprep.subr.mxu0 0.0
  %2517 = vmatpush1.msra.mxu0 0.0
  %2518 = vmatprep.subr.mxu0 0.0
  %2519 = vmatpush1.msra.mxu0 0.0
  %2520 = vmatprep.subr.mxu0 0.0
  %2521 = vmatpush1.msra.mxu0 0.0
  %2522 = vmatprep.subr.mxu0 0.0
  %2523 = vmatpush1.msra.mxu0 0.0
  %2524 = vmatprep.mubr.f32.mxu0 0.0
  %2525 = vmatmul.mubr.f32.gmra.mrb[0].mxu0 %v2434
  %v2526 = vpop.f32.mrb[0].mxu0
  %v2527 = vadd.f32 %v2432, %v2526
  %v2528 = vpop.f32.mrb[0].mxu0
  %2529 = vmatprep.mubr.f32.mxu0 0.0
  %2530 = vmatmul.mubr.f32.gmra.mrb[0].mxu0 %v2437
  %v2531 = vpop.f32.mrb[0].mxu0
  %v2532 = vadd.f32 %v2432, %v2531
  %v2533 = vpop.f32.mrb[0].mxu0
  %2534 = vmatprep.mubr.f32.mxu0 0.0
  %2535 = vmatmul.mubr.f32.gmra.mrb[0].mxu0 %v2440
  %v2536 = vpop.f32.mrb[0].mxu0
  %v2537 = vadd.f32 %v2432, %v2536
  %v2538 = vpop.f32.mrb[0].mxu0
  %2539 = vmatprep.mubr.f32.mxu0 0.0
  %2540 = vmatmul.mubr.f32.gmra.mrb[0].mxu0 %v2443
  %v2541 = vpop.f32.mrb[0].mxu0
  %v2542 = vadd.f32 %v2432, %v2541
  %v2543 = vpop.f32.mrb[0].mxu0
  %2544 = vmatprep.mubr.f32.mxu0 0.0
  %2545 = vmatmul.mubr.f32.gmra.mrb[0].mxu0 %v2446
  %v2546 = vpop.f32.mrb[0].mxu0
  %v2547 = vadd.f32 %v2432, %v2546
  %v2548 = vpop.f32.mrb[0].mxu0
  %2549 = vmatprep.mubr.f32.mxu0 0.0
  %2550 = vmatmul.mubr.f32.gmra.mrb[0].mxu0 %v2449
  %v2551 = vpop.f32.mrb[0].mxu0
  %v2552 = vadd.f32 %v2432, %v2551
  %v2553 = vpop.f32.mrb[0].mxu0
  %2554 = vmatprep.mubr.f32.mxu0 0.0
  %2555 = vmatmul.mubr.f32.gmra.mrb[0].mxu0 %v2452
  %v2556 = vpop.f32.mrb[0].mxu0
  %v2557 = vadd.f32 %v2432, %v2556
  %v2558 = vpop.f32.mrb[0].mxu0
  %2559 = vmatprep.mubr.f32.mxu0 0.0
  %2560 = vmatmul.mubr.f32.gmra.mrb[0].mxu0 %v2455
  %v2561 = vpop.f32.mrb[0].mxu0
  %v2562 = vadd.f32 %v2432, %v2561
  %v2563 = vpop.f32.mrb[0].mxu0
  %2564 = vmatprep.mubr.f32.mxu0 0.0
  %2565 = vmatmul.mubr.f32.gmra.mrb[0].mxu0 %v2458
  %v2566 = vpop.f32.mrb[0].mxu0
  %v2567 = vadd.f32 %v2432, %v2566
  %v2568 = vpop.f32.mrb[0].mxu0
  %2569 = vdwg.mxu0
  %v2570 = vld [vmem:[%s1] sm:$0xff]
  %v2571 = vld [vmem:[%s2 + $0x498] sm:$0xff]
  %v2572 = vld [vmem:[%s2 + $0x4a0] sm:$0xff]
  %v2573 = vld [vmem:[%s2 + $0x4a8] sm:$0x1]
  %v2574 = vlaneseq
  %v2575 = vshrl.u32 %v2574, 7
  %v2576 = vsub.s32 0, %v2575
  %v2577 = vrot.slane %v2573, %v2576
  %vm2578 = vcmask 130048
  %v2580 = vsel %vm2578, %v2570, 0
  %2582 = vmatprep.subr.mxu0 0.0
  %2583 = vmatpush1.msra.mxu0 %v2571
  %2584 = vmatprep.subr.mxu0 0.0
  %2585 = vmatpush1.msra.mxu0 %v2572
  %2586 = vmatprep.subr.mxu0 0.0
  %2587 = vmatpush1.msra.mxu0 0.0
  %2588 = vmatprep.subr.mxu0 0.0
  %2589 = vmatpush1.msra.mxu0 0.0
  %2590 = vmatprep.subr.mxu0 0.0
  %2591 = vmatpush1.msra.mxu0 0.0
  %2592 = vmatprep.subr.mxu0 0.0
  %2593 = vmatpush1.msra.mxu0 0.0
  %2594 = vmatprep.subr.mxu0 0.0
  %2595 = vmatpush1.msra.mxu0 0.0
  %2596 = vmatprep.subr.mxu0 0.0
  %2597 = vmatpush1.msra.mxu0 0.0
  %2598 = vmatprep.subr.mxu0 0.0
  %2599 = vmatpush1.msra.mxu0 0.0
  %2600 = vmatprep.subr.mxu0 0.0
  %2601 = vmatpush1.msra.mxu0 0.0
  %2602 = vmatprep.subr.mxu0 0.0
  %2603 = vmatpush1.msra.mxu0 0.0
  %2604 = vmatprep.subr.mxu0 0.0
  %2605 = vmatpush1.msra.mxu0 0.0
  %2606 = vmatprep.subr.mxu0 0.0
  %2607 = vmatpush1.msra.mxu0 0.0
  %2608 = vmatprep.subr.mxu0 0.0
  %2609 = vmatpush1.msra.mxu0 0.0
  %2610 = vmatprep.subr.mxu0 0.0
  %2611 = vmatpush1.msra.mxu0 0.0
  %2612 = vmatprep.subr.mxu0 0.0
  %2613 = vmatpush1.msra.mxu0 0.0
  %2614 = vmatprep.subr.mxu0 0.0
  %2615 = vmatpush1.msra.mxu0 0.0
  %2616 = vmatprep.subr.mxu0 0.0
  %2617 = vmatpush1.msra.mxu0 0.0
  %2618 = vmatprep.subr.mxu0 0.0
  %2619 = vmatpush1.msra.mxu0 0.0
  %2620 = vmatprep.subr.mxu0 0.0
  %2621 = vmatpush1.msra.mxu0 0.0
  %2622 = vmatprep.subr.mxu0 0.0
  %2623 = vmatpush1.msra.mxu0 0.0
  %2624 = vmatprep.subr.mxu0 0.0
  %2625 = vmatpush1.msra.mxu0 0.0
  %2626 = vmatprep.subr.mxu0 0.0
  %2627 = vmatpush1.msra.mxu0 0.0
  %2628 = vmatprep.subr.mxu0 0.0
  %2629 = vmatpush1.msra.mxu0 0.0
  %2630 = vmatprep.subr.mxu0 0.0
  %2631 = vmatpush1.msra.mxu0 0.0
  %2632 = vmatprep.subr.mxu0 0.0
  %2633 = vmatpush1.msra.mxu0 0.0
  %2634 = vmatprep.subr.mxu0 0.0
  %2635 = vmatpush1.msra.mxu0 0.0
  %2636 = vmatprep.subr.mxu0 0.0
  %2637 = vmatpush1.msra.mxu0 0.0
  %2638 = vmatprep.subr.mxu0 0.0
  %2639 = vmatpush1.msra.mxu0 0.0
  %2640 = vmatprep.subr.mxu0 0.0
  %2641 = vmatpush1.msra.mxu0 0.0
  %2642 = vmatprep.subr.mxu0 0.0
  %2643 = vmatpush1.msra.mxu0 0.0
  %2644 = vmatprep.subr.mxu0 0.0
  %2645 = vmatpush1.msra.mxu0 0.0
  %2646 = vmatprep.mubr.f32.mxu0 0.0
  %2647 = vmatmul.mubr.f32.gmra.mrb[0].mxu0 %v2580
  %v2648 = vpop.f32.mrb[0].mxu0
  %v2649 = vadd.f32 %v2577, %v2648
  %v2650 = vpop.f32.mrb[0].mxu0
  %2651 = vdwg.mxu0
  %v2652 = vmax.f32 %v2649, 0.0
  %v2653 = vld [vmem:[%s2 + $0x4b0] sm:$0xff]
  %v2654 = vld [vmem:[%s2 + $0x4b8] sm:$0xff]
  %v2655 = vld [vmem:[%s2 + $0x4c0] sm:$0xff]
  %v2656 = vld [vmem:[%s2 + $0x4c8] sm:$0xff]
  %v2657 = vld [vmem:[%s2 + $0x4d0] sm:$0x1]
  %v2658 = vlaneseq
  %v2659 = vshrl.u32 %v2658, 7
  %v2660 = vsub.s32 0, %v2659
  %v2661 = vrot.slane %v2657, %v2660
  %vm2662 = vcmask 261120
  %v2664 = vsel %vm2662, %v2652, 0
  %2666 = vmatprep.subr.mxu0 0.0
  %2667 = vmatpush1.msra.mxu0 %v2653
  %2668 = vmatprep.subr.mxu0 0.0
  %2669 = vmatpush1.msra.mxu0 %v2654
  %2670 = vmatprep.subr.mxu0 0.0
  %2671 = vmatpush1.msra.mxu0 %v2655
  %2672 = vmatprep.subr.mxu0 0.0
  %2673 = vmatpush1.msra.mxu0 %v2656
  %2674 = vmatprep.subr.mxu0 0.0
  %2675 = vmatpush1.msra.mxu0 0.0
  %2676 = vmatprep.subr.mxu0 0.0
  %2677 = vmatpush1.msra.mxu0 0.0
  %2678 = vmatprep.subr.mxu0 0.0
  %2679 = vmatpush1.msra.mxu0 0.0
  %2680 = vmatprep.subr.mxu0 0.0
  %2681 = vmatpush1.msra.mxu0 0.0
  %2682 = vmatprep.subr.mxu0 0.0
  %2683 = vmatpush1.msra.mxu0 0.0
  %2684 = vmatprep.subr.mxu0 0.0
  %2685 = vmatpush1.msra.mxu0 0.0
  %2686 = vmatprep.subr.mxu0 0.0
  %2687 = vmatpush1.msra.mxu0 0.0
  %2688 = vmatprep.subr.mxu0 0.0
  %2689 = vmatpush1.msra.mxu0 0.0
  %2690 = vmatprep.subr.mxu0 0.0
  %2691 = vmatpush1.msra.mxu0 0.0
  %2692 = vmatprep.subr.mxu0 0.0
  %2693 = vmatpush1.msra.mxu0 0.0
  %2694 = vmatprep.subr.mxu0 0.0
  %2695 = vmatpush1.msra.mxu0 0.0
  %2696 = vmatprep.subr.mxu0 0.0
  %2697 = vmatpush1.msra.mxu0 0.0
  %2698 = vmatprep.subr.mxu0 0.0
  %2699 = vmatpush1.msra.mxu0 0.0
  %2700 = vmatprep.subr.mxu0 0.0
  %2701 = vmatpush1.msra.mxu0 0.0
  %2702 = vmatprep.subr.mxu0 0.0
  %2703 = vmatpush1.msra.mxu0 0.0
  %2704 = vmatprep.subr.mxu0 0.0
  %2705 = vmatpush1.msra.mxu0 0.0
  %2706 = vmatprep.subr.mxu0 0.0
  %2707 = vmatpush1.msra.mxu0 0.0
  %2708 = vmatprep.subr.mxu0 0.0
  %2709 = vmatpush1.msra.mxu0 0.0
  %2710 = vmatprep.subr.mxu0 0.0
  %2711 = vmatpush1.msra.mxu0 0.0
  %2712 = vmatprep.subr.mxu0 0.0
  %2713 = vmatpush1.msra.mxu0 0.0
  %2714 = vmatprep.subr.mxu0 0.0
  %2715 = vmatpush1.msra.mxu0 0.0
  %2716 = vmatprep.subr.mxu0 0.0
  %2717 = vmatpush1.msra.mxu0 0.0
  %2718 = vmatprep.subr.mxu0 0.0
  %2719 = vmatpush1.msra.mxu0 0.0
  %2720 = vmatprep.subr.mxu0 0.0
  %2721 = vmatpush1.msra.mxu0 0.0
  %2722 = vmatprep.subr.mxu0 0.0
  %2723 = vmatpush1.msra.mxu0 0.0
  %2724 = vmatprep.subr.mxu0 0.0
  %2725 = vmatpush1.msra.mxu0 0.0
  %2726 = vmatprep.subr.mxu0 0.0
  %2727 = vmatpush1.msra.mxu0 0.0
  %2728 = vmatprep.subr.mxu0 0.0
  %2729 = vmatpush1.msra.mxu0 0.0
  %2730 = vmatprep.mubr.f32.mxu0 0.0
  %2731 = vmatmul.mubr.f32.gmra.mrb[0].mxu0 %v2664
  %v2732 = vpop.f32.mrb[0].mxu0
  %v2733 = vadd.f32 %v2661, %v2732
  %v2734 = vpop.f32.mrb[0].mxu0
  %2735 = vdwg.mxu0
  %v2736 = vmax.f32 %v2733, 0.0
  %v2737 = vld [vmem:[%s2 + $0x4d8] sm:$0xff]
  %v2738 = vld [vmem:[%s2 + $0x4e0] sm:$0xff]
  %v2739 = vld [vmem:[%s2 + $0x4e8] sm:$0xff]
  %v2740 = vld [vmem:[%s2 + $0x4f0] sm:$0xff]
  %v2741 = vld [vmem:[%s2 + $0x4f8] sm:$0x1]
  %v2742 = vlaneseq
  %v2743 = vshrl.u32 %v2742, 7
  %v2744 = vsub.s32 0, %v2743
  %v2745 = vrot.slane %v2741, %v2744
  %v2747 = vsel %vm2662, %v2736, 0
  %2749 = vmatprep.subr.mxu0 0.0
  %2750 = vmatpush1.msra.mxu0 %v2737
  %2751 = vmatprep.subr.mxu0 0.0
  %2752 = vmatpush1.msra.mxu0 %v2738
  %2753 = vmatprep.subr.mxu0 0.0
  %2754 = vmatpush1.msra.mxu0 %v2739
  %2755 = vmatprep.subr.mxu0 0.0
  %2756 = vmatpush1.msra.mxu0 %v2740
  %2757 = vmatprep.subr.mxu0 0.0
  %2758 = vmatpush1.msra.mxu0 0.0
  %2759 = vmatprep.subr.mxu0 0.0
  %2760 = vmatpush1.msra.mxu0 0.0
  %2761 = vmatprep.subr.mxu0 0.0
  %2762 = vmatpush1.msra.mxu0 0.0
  %2763 = vmatprep.subr.mxu0 0.0
  %2764 = vmatpush1.msra.mxu0 0.0
  %2765 = vmatprep.subr.mxu0 0.0
  %2766 = vmatpush1.msra.mxu0 0.0
  %2767 = vmatprep.subr.mxu0 0.0
  %2768 = vmatpush1.msra.mxu0 0.0
  %2769 = vmatprep.subr.mxu0 0.0
  %2770 = vmatpush1.msra.mxu0 0.0
  %2771 = vmatprep.subr.mxu0 0.0
  %2772 = vmatpush1.msra.mxu0 0.0
  %2773 = vmatprep.subr.mxu0 0.0
  %2774 = vmatpush1.msra.mxu0 0.0
  %2775 = vmatprep.subr.mxu0 0.0
  %2776 = vmatpush1.msra.mxu0 0.0
  %2777 = vmatprep.subr.mxu0 0.0
  %2778 = vmatpush1.msra.mxu0 0.0
  %2779 = vmatprep.subr.mxu0 0.0
  %2780 = vmatpush1.msra.mxu0 0.0
  %2781 = vmatprep.subr.mxu0 0.0
  %2782 = vmatpush1.msra.mxu0 0.0
  %2783 = vmatprep.subr.mxu0 0.0
  %2784 = vmatpush1.msra.mxu0 0.0
  %2785 = vmatprep.subr.mxu0 0.0
  %2786 = vmatpush1.msra.mxu0 0.0
  %2787 = vmatprep.subr.mxu0 0.0
  %2788 = vmatpush1.msra.mxu0 0.0
  %2789 = vmatprep.subr.mxu0 0.0
  %2790 = vmatpush1.msra.mxu0 0.0
  %2791 = vmatprep.subr.mxu0 0.0
  %2792 = vmatpush1.msra.mxu0 0.0
  %2793 = vmatprep.subr.mxu0 0.0
  %2794 = vmatpush1.msra.mxu0 0.0
  %2795 = vmatprep.subr.mxu0 0.0
  %2796 = vmatpush1.msra.mxu0 0.0
  %2797 = vmatprep.subr.mxu0 0.0
  %2798 = vmatpush1.msra.mxu0 0.0
  %2799 = vmatprep.subr.mxu0 0.0
  %2800 = vmatpush1.msra.mxu0 0.0
  %2801 = vmatprep.subr.mxu0 0.0
  %2802 = vmatpush1.msra.mxu0 0.0
  %2803 = vmatprep.subr.mxu0 0.0
  %2804 = vmatpush1.msra.mxu0 0.0
  %2805 = vmatprep.subr.mxu0 0.0
  %2806 = vmatpush1.msra.mxu0 0.0
  %2807 = vmatprep.subr.mxu0 0.0
  %2808 = vmatpush1.msra.mxu0 0.0
  %2809 = vmatprep.subr.mxu0 0.0
  %2810 = vmatpush1.msra.mxu0 0.0
  %2811 = vmatprep.subr.mxu0 0.0
  %2812 = vmatpush1.msra.mxu0 0.0
  %2813 = vmatprep.mubr.f32.mxu0 0.0
  %2814 = vmatmul.mubr.f32.gmra.mrb[0].mxu0 %v2747
  %v2815 = vpop.f32.mrb[0].mxu0
  %v2816 = vadd.f32 %v2745, %v2815
  %v2817 = vpop.f32.mrb[0].mxu0
  %2818 = vdwg.mxu0
  %v2819 = vmax.f32 %v2816, 0.0
  %v2820 = vld [vmem:[%s3 + $0x210] sm:$0xff]
  %v2821 = vld [vmem:[%s3 + $0x220] sm:$0xff]
  %v2822 = vld [vmem:[%s3 + $0x230] sm:$0xff]
  %v2823 = vld [vmem:[%s3 + $0x240] sm:$0xff]
  %v2824 = vld [vmem:[%s3 + $0x250] sm:$0xff]
  %v2825 = vld [vmem:[%s3 + $0x260] sm:$0xff]
  %v2826 = vld [vmem:[%s2 + $0x500] sm:$0xff]
  %v2827 = vld [vmem:[%s2 + $0x508] sm:$0xff]
  %v2828 = vld [vmem:[%s2 + $0x510] sm:$0xff]
  %v2829 = vld [vmem:[%s2 + $0x518] sm:$0xff]
  %v2830 = vld [vmem:[%s2 + $0x520] sm:$0xff]
  %v2831 = vld [vmem:[%s2 + $0x528] sm:$0xff]
  %vm2832 = vcmask 64512
  %v2834 = vsel %vm2832, %v2826, 0
  %v2837 = vsel %vm2832, %v2827, 0
  %v2840 = vsel %vm2832, %v2828, 0
  %v2843 = vsel %vm2832, %v2829, 0
  %v2846 = vsel %vm2832, %v2830, 0
  %v2849 = vsel %vm2832, %v2831, 0
  %2851 = vmatprep.subr.mxu0 0.0
  %2852 = vmatpush1.msra.mxu0 %v2819
  %2853 = vmatprep.subr.mxu0 0.0
  %2854 = vmatpush1.msra.mxu0 0.0
  %2855 = vmatprep.subr.mxu0 0.0
  %2856 = vmatpush1.msra.mxu0 0.0
  %2857 = vmatprep.subr.mxu0 0.0
  %2858 = vmatpush1.msra.mxu0 0.0
  %2859 = vmatprep.subr.mxu0 0.0
  %2860 = vmatpush1.msra.mxu0 0.0
  %2861 = vmatprep.subr.mxu0 0.0
  %2862 = vmatpush1.msra.mxu0 0.0
  %2863 = vmatprep.subr.mxu0 0.0
  %2864 = vmatpush1.msra.mxu0 0.0
  %2865 = vmatprep.subr.mxu0 0.0
  %2866 = vmatpush1.msra.mxu0 0.0
  %2867 = vmatprep.subr.mxu0 0.0
  %2868 = vmatpush1.msra.mxu0 0.0
  %2869 = vmatprep.subr.mxu0 0.0
  %2870 = vmatpush1.msra.mxu0 0.0
  %2871 = vmatprep.subr.mxu0 0.0
  %2872 = vmatpush1.msra.mxu0 0.0
  %2873 = vmatprep.subr.mxu0 0.0
  %2874 = vmatpush1.msra.mxu0 0.0
  %2875 = vmatprep.subr.mxu0 0.0
  %2876 = vmatpush1.msra.mxu0 0.0
  %2877 = vmatprep.subr.mxu0 0.0
  %2878 = vmatpush1.msra.mxu0 0.0
  %2879 = vmatprep.subr.mxu0 0.0
  %2880 = vmatpush1.msra.mxu0 0.0
  %2881 = vmatprep.subr.mxu0 0.0
  %2882 = vmatpush1.msra.mxu0 0.0
  %2883 = vmatprep.subr.mxu0 0.0
  %2884 = vmatpush1.msra.mxu0 0.0
  %2885 = vmatprep.subr.mxu0 0.0
  %2886 = vmatpush1.msra.mxu0 0.0
  %2887 = vmatprep.subr.mxu0 0.0
  %2888 = vmatpush1.msra.mxu0 0.0
  %2889 = vmatprep.subr.mxu0 0.0
  %2890 = vmatpush1.msra.mxu0 0.0
  %2891 = vmatprep.subr.mxu0 0.0
  %2892 = vmatpush1.msra.mxu0 0.0
  %2893 = vmatprep.subr.mxu0 0.0
  %2894 = vmatpush1.msra.mxu0 0.0
  %2895 = vmatprep.subr.mxu0 0.0
  %2896 = vmatpush1.msra.mxu0 0.0
  %2897 = vmatprep.subr.mxu0 0.0
  %2898 = vmatpush1.msra.mxu0 0.0
  %2899 = vmatprep.subr.mxu0 0.0
  %2900 = vmatpush1.msra.mxu0 0.0
  %2901 = vmatprep.subr.mxu0 0.0
  %2902 = vmatpush1.msra.mxu0 0.0
  %2903 = vmatprep.subr.mxu0 0.0
  %2904 = vmatpush1.msra.mxu0 0.0
  %2905 = vmatprep.subr.mxu0 0.0
  %2906 = vmatpush1.msra.mxu0 0.0
  %2907 = vmatprep.subr.mxu0 0.0
  %2908 = vmatpush1.msra.mxu0 0.0
  %2909 = vmatprep.subr.mxu0 0.0
  %2910 = vmatpush1.msra.mxu0 0.0
  %2911 = vmatprep.subr.mxu0 0.0
  %2912 = vmatpush1.msra.mxu0 0.0
  %2913 = vmatprep.subr.mxu0 0.0
  %2914 = vmatpush1.msra.mxu0 0.0
  %2915 = vmatprep.mubr.f32.mxu0 0.0
  %2916 = vmatmul.mubr.f32.gmra.mrb[0].mxu0 %v2834
  %v2917 = vpop.f32.mrb[0].mxu0
  %v2918 = vadd.f32 0.0, %v2917
  %v2919 = vpop.f32.mrb[0].mxu0
  %2920 = vmatprep.mubr.f32.mxu0 0.0
  %2921 = vmatmul.mubr.f32.gmra.mrb[0].mxu0 %v2837
  %v2922 = vpop.f32.mrb[0].mxu0
  %v2923 = vadd.f32 0.0, %v2922
  %v2924 = vpop.f32.mrb[0].mxu0
  %2925 = vmatprep.mubr.f32.mxu0 0.0
  %2926 = vmatmul.mubr.f32.gmra.mrb[0].mxu0 %v2840
  %v2927 = vpop.f32.mrb[0].mxu0
  %v2928 = vadd.f32 0.0, %v2927
  %v2929 = vpop.f32.mrb[0].mxu0
  %2930 = vmatprep.mubr.f32.mxu0 0.0
  %2931 = vmatmul.mubr.f32.gmra.mrb[0].mxu0 %v2843
  %v2932 = vpop.f32.mrb[0].mxu0
  %v2933 = vadd.f32 0.0, %v2932
  %v2934 = vpop.f32.mrb[0].mxu0
  %2935 = vmatprep.mubr.f32.mxu0 0.0
  %2936 = vmatmul.mubr.f32.gmra.mrb[0].mxu0 %v2846
  %v2937 = vpop.f32.mrb[0].mxu0
  %v2938 = vadd.f32 0.0, %v2937
  %v2939 = vpop.f32.mrb[0].mxu0
  %2940 = vmatprep.mubr.f32.mxu0 0.0
  %2941 = vmatmul.mubr.f32.gmra.mrb[0].mxu0 %v2849
  %v2942 = vpop.f32.mrb[0].mxu0
  %v2943 = vadd.f32 0.0, %v2942
  %v2944 = vpop.f32.mrb[0].mxu0
  %2945 = vdwg.mxu0
  %vm2946 = vcmask 588800
  %v2948 = vsel %vm2946, %v2820, 0
  %v2951 = vsel %vm2946, %v2821, 0
  %v2954 = vsel %vm2946, %v2822, 0
  %v2957 = vsel %vm2946, %v2823, 0
  %v2960 = vsel %vm2946, %v2824, 0
  %v2963 = vsel %vm2946, %v2825, 0
  %2965 = vmatprep.subr.mxu0 0.0
  %2966 = vmatpush1.msra.mxu0 %v2527
  %2967 = vmatprep.subr.mxu0 0.0
  %2968 = vmatpush1.msra.mxu0 %v2532
  %2969 = vmatprep.subr.mxu0 0.0
  %2970 = vmatpush1.msra.mxu0 %v2537
  %2971 = vmatprep.subr.mxu0 0.0
  %2972 = vmatpush1.msra.mxu0 %v2542
  %2973 = vmatprep.subr.mxu0 0.0
  %2974 = vmatpush1.msra.mxu0 %v2547
  %2975 = vmatprep.subr.mxu0 0.0
  %2976 = vmatpush1.msra.mxu0 %v2552
  %2977 = vmatprep.subr.mxu0 0.0
  %2978 = vmatpush1.msra.mxu0 %v2557
  %2979 = vmatprep.subr.mxu0 0.0
  %2980 = vmatpush1.msra.mxu0 %v2562
  %2981 = vmatprep.subr.mxu0 0.0
  %2982 = vmatpush1.msra.mxu0 %v2567
  %2983 = vmatprep.subr.mxu0 0.0
  %2984 = vmatpush1.msra.mxu0 0.0
  %2985 = vmatprep.subr.mxu0 0.0
  %2986 = vmatpush1.msra.mxu0 0.0
  %2987 = vmatprep.subr.mxu0 0.0
  %2988 = vmatpush1.msra.mxu0 0.0
  %2989 = vmatprep.subr.mxu0 0.0
  %2990 = vmatpush1.msra.mxu0 0.0
  %2991 = vmatprep.subr.mxu0 0.0
  %2992 = vmatpush1.msra.mxu0 0.0
  %2993 = vmatprep.subr.mxu0 0.0
  %2994 = vmatpush1.msra.mxu0 0.0
  %2995 = vmatprep.subr.mxu0 0.0
  %2996 = vmatpush1.msra.mxu0 0.0
  %2997 = vmatprep.subr.mxu0 0.0
  %2998 = vmatpush1.msra.mxu0 0.0
  %2999 = vmatprep.subr.mxu0 0.0
  %3000 = vmatpush1.msra.mxu0 0.0
  %3001 = vmatprep.subr.mxu0 0.0
  %3002 = vmatpush1.msra.mxu0 0.0
  %3003 = vmatprep.subr.mxu0 0.0
  %3004 = vmatpush1.msra.mxu0 0.0
  %3005 = vmatprep.subr.mxu0 0.0
  %3006 = vmatpush1.msra.mxu0 0.0
  %3007 = vmatprep.subr.mxu0 0.0
  %3008 = vmatpush1.msra.mxu0 0.0
  %3009 = vmatprep.subr.mxu0 0.0
  %3010 = vmatpush1.msra.mxu0 0.0
  %3011 = vmatprep.subr.mxu0 0.0
  %3012 = vmatpush1.msra.mxu0 0.0
  %3013 = vmatprep.subr.mxu0 0.0
  %3014 = vmatpush1.msra.mxu0 0.0
  %3015 = vmatprep.subr.mxu0 0.0
  %3016 = vmatpush1.msra.mxu0 0.0
  %3017 = vmatprep.subr.mxu0 0.0
  %3018 = vmatpush1.msra.mxu0 0.0
  %3019 = vmatprep.subr.mxu0 0.0
  %3020 = vmatpush1.msra.mxu0 0.0
  %3021 = vmatprep.subr.mxu0 0.0
  %3022 = vmatpush1.msra.mxu0 0.0
  %3023 = vmatprep.subr.mxu0 0.0
  %3024 = vmatpush1.msra.mxu0 0.0
  %3025 = vmatprep.subr.mxu0 0.0
  %3026 = vmatpush1.msra.mxu0 0.0
  %3027 = vmatprep.subr.mxu0 0.0
  %3028 = vmatpush1.msra.mxu0 0.0
  %3029 = vmatprep.mubr.f32.mxu0 0.0
  %3030 = vmatmul.mubr.f32.gmra.mrb[0].mxu0 %v2948
  %v3031 = vpop.f32.mrb[0].mxu0
  %v3032 = vadd.f32 %v2918, %v3031
  %v3033 = vpop.f32.mrb[0].mxu0
  %3034 = vmatprep.mubr.f32.mxu0 0.0
  %3035 = vmatmul.mubr.f32.gmra.mrb[0].mxu0 %v2951
  %v3036 = vpop.f32.mrb[0].mxu0
  %v3037 = vadd.f32 %v2923, %v3036
  %v3038 = vpop.f32.mrb[0].mxu0
  %3039 = vmatprep.mubr.f32.mxu0 0.0
  %3040 = vmatmul.mubr.f32.gmra.mrb[0].mxu0 %v2954
  %v3041 = vpop.f32.mrb[0].mxu0
  %v3042 = vadd.f32 %v2928, %v3041
  %v3043 = vpop.f32.mrb[0].mxu0
  %3044 = vmatprep.mubr.f32.mxu0 0.0
  %3045 = vmatmul.mubr.f32.gmra.mrb[0].mxu0 %v2957
  %v3046 = vpop.f32.mrb[0].mxu0
  %v3047 = vadd.f32 %v2933, %v3046
  %v3048 = vpop.f32.mrb[0].mxu0
  %3049 = vmatprep.mubr.f32.mxu0 0.0
  %3050 = vmatmul.mubr.f32.gmra.mrb[0].mxu0 %v2960
  %v3051 = vpop.f32.mrb[0].mxu0
  %v3052 = vadd.f32 %v2938, %v3051
  %v3053 = vpop.f32.mrb[0].mxu0
  %3054 = vmatprep.mubr.f32.mxu0 0.0
  %3055 = vmatmul.mubr.f32.gmra.mrb[0].mxu0 %v2963
  %v3056 = vpop.f32.mrb[0].mxu0
  %v3057 = vadd.f32 %v2943, %v3056
  %v3058 = vpop.f32.mrb[0].mxu0
  %3059 = vdwg.mxu0
  %v3060 = vld [vmem:[%s2 + $0x530] sm:$0xff]
  %v3061 = vld [vmem:[%s2 + $0x538] sm:$0xff]
  %v3062 = vld [vmem:[%s2 + $0x540] sm:$0xff]
  %v3063 = vld [vmem:[%s2 + $0x548] sm:$0xff]
  %v3064 = vld [vmem:[%s2 + $0x550] sm:$0xff]
  %v3065 = vld [vmem:[%s2 + $0x558] sm:$0xff]
  %v3066 = vadd.f32 %v3032, %v3060
  %v3067 = vadd.f32 %v3037, %v3061
  %v3068 = vadd.f32 %v3042, %v3062
  %v3069 = vadd.f32 %v3047, %v3063
  %v3070 = vadd.f32 %v3052, %v3064
  %v3071 = vadd.f32 %v3057, %v3065
  %v3072 = vld [vmem:[%s2 + $0x560] sm:$0x1]
  %v3073 = vld [vmem:[%s2 + $0x568] sm:$0x1]
  %v3074 = vsel %vm966, %v3066, 0.0
  %3075 = vadd.xlane.f32.xlu0 %v3074
  %v3076 = vpop.xlane.xlu0 %3075
  %v3077 = vsel %vm966, %v3067, 0.0
  %3078 = vadd.xlane.f32.xlu0 %v3077
  %v3079 = vpop.xlane.xlu0 %3078
  %v3080 = vsel %vm966, %v3068, 0.0
  %3081 = vadd.xlane.f32.xlu0 %v3080
  %v3082 = vpop.xlane.xlu0 %3081
  %v3083 = vsel %vm966, %v3069, 0.0
  %3084 = vadd.xlane.f32.xlu0 %v3083
  %v3085 = vpop.xlane.xlu0 %3084
  %v3086 = vsel %vm966, %v3070, 0.0
  %3087 = vadd.xlane.f32.xlu0 %v3086
  %v3088 = vpop.xlane.xlu0 %3087
  %v3089 = vsel %vm966, %v3071, 0.0
  %3090 = vadd.xlane.f32.xlu0 %v3089
  %v3091 = vpop.xlane.xlu0 %3090
  %v3092 = vrcp.pop 64.0
  %v3093 = vmul.f32 %v3076, %v3092
  %v3094 = vmul.f32 %v3079, %v3092
  %v3095 = vmul.f32 %v3082, %v3092
  %v3096 = vmul.f32 %v3085, %v3092
  %v3097 = vmul.f32 %v3088, %v3092
  %v3098 = vmul.f32 %v3091, %v3092
  %v3099 = vsub.f32 %v3066, %v3093
  %v3100 = vsub.f32 %v3067, %v3094
  %v3101 = vsub.f32 %v3068, %v3095
  %v3102 = vsub.f32 %v3069, %v3096
  %v3103 = vsub.f32 %v3070, %v3097
  %v3104 = vsub.f32 %v3071, %v3098
  %v3105 = vmul.f32 %v3099, %v3099
  %v3106 = vmul.f32 %v3100, %v3100
  %v3107 = vmul.f32 %v3101, %v3101
  %v3108 = vmul.f32 %v3102, %v3102
  %v3109 = vmul.f32 %v3103, %v3103
  %v3110 = vmul.f32 %v3104, %v3104
  %v3111 = vsel %vm966, %v3105, 0.0
  %3112 = vadd.xlane.f32.xlu0 %v3111
  %v3113 = vpop.xlane.xlu0 %3112
  %v3114 = vsel %vm966, %v3106, 0.0
  %3115 = vadd.xlane.f32.xlu0 %v3114
  %v3116 = vpop.xlane.xlu0 %3115
  %v3117 = vsel %vm966, %v3107, 0.0
  %3118 = vadd.xlane.f32.xlu0 %v3117
  %v3119 = vpop.xlane.xlu0 %3118
  %v3120 = vsel %vm966, %v3108, 0.0
  %3121 = vadd.xlane.f32.xlu0 %v3120
  %v3122 = vpop.xlane.xlu0 %3121
  %v3123 = vsel %vm966, %v3109, 0.0
  %3124 = vadd.xlane.f32.xlu0 %v3123
  %v3125 = vpop.xlane.xlu0 %3124
  %v3126 = vsel %vm966, %v3110, 0.0
  %3127 = vadd.xlane.f32.xlu0 %v3126
  %v3128 = vpop.xlane.xlu0 %3127
  %v3129 = vmul.f32 %v3113, %v3092
  %v3130 = vmul.f32 %v3116, %v3092
  %v3131 = vmul.f32 %v3119, %v3092
  %v3132 = vmul.f32 %v3122, %v3092
  %v3133 = vmul.f32 %v3125, %v3092
  %v3134 = vmul.f32 %v3128, %v3092
  %v3135 = vadd.f32 %v3129, 1e-05
  %v3136 = vadd.f32 %v3130, 1e-05
  %v3137 = vadd.f32 %v3131, 1e-05
  %v3138 = vadd.f32 %v3132, 1e-05
  %v3139 = vadd.f32 %v3133, 1e-05
  %v3140 = vadd.f32 %v3134, 1e-05
  %v3141 = vrsqrt.pop %v3135
  %v3142 = vrsqrt.pop %v3136
  %v3143 = vrsqrt.pop %v3137
  %v3144 = vrsqrt.pop %v3138
  %v3145 = vrsqrt.pop %v3139
  %v3146 = vrsqrt.pop %v3140
  %v3147 = vmul.f32 %v3099, %v3141
  %v3148 = vmul.f32 %v3100, %v3142
  %v3149 = vmul.f32 %v3101, %v3143
  %v3150 = vmul.f32 %v3102, %v3144
  %v3151 = vmul.f32 %v3103, %v3145
  %v3152 = vmul.f32 %v3104, %v3146
  %v3153 = vlaneseq
  %v3154 = vshrl.u32 %v3153, 7
  %v3155 = vsub.s32 0, %v3154
  %v3156 = vrot.slane %v3072, %v3155
  %v3157 = vmul.f32 %v3147, %v3156
  %v3158 = vmul.f32 %v3148, %v3156
  %v3159 = vmul.f32 %v3149, %v3156
  %v3160 = vmul.f32 %v3150, %v3156
  %v3161 = vmul.f32 %v3151, %v3156
  %v3162 = vmul.f32 %v3152, %v3156
  %v3163 = vlaneseq
  %v3164 = vshrl.u32 %v3163, 7
  %v3165 = vsub.s32 0, %v3164
  %v3166 = vrot.slane %v3073, %v3165
  %v3167 = vadd.f32 %v3157, %v3166
  %v3168 = vadd.f32 %v3158, %v3166
  %v3169 = vadd.f32 %v3159, %v3166
  %v3170 = vadd.f32 %v3160, %v3166
  %v3171 = vadd.f32 %v3161, %v3166
  %v3172 = vadd.f32 %v3162, %v3166
  %v3173 = vld [vmem:[%s2 + $0x570] sm:$0xff]
  %v3174 = vld [vmem:[%s2 + $0x578] sm:$0xff]
  %v3175 = vld [vmem:[%s2 + $0x580] sm:$0xff]
  %v3176 = vld [vmem:[%s2 + $0x588] sm:$0xff]
  %v3177 = vld [vmem:[%s2 + $0x590] sm:$0xff]
  %v3178 = vld [vmem:[%s2 + $0x598] sm:$0xff]
  %v3179 = vld [vmem:[%s3 + $0x270] sm:$0xff]
  %v3180 = vld [vmem:[%s3 + $0x278] sm:$0xff]
  %v3181 = vld [vmem:[%s3 + $0x280] sm:$0xff]
  %v3182 = vld [vmem:[%s3 + $0x288] sm:$0xff]
  %v3183 = vld [vmem:[%s3 + $0x290] sm:$0xff]
  %v3184 = vld [vmem:[%s3 + $0x298] sm:$0xff]
  %v3185 = vld [vmem:[%s3 + $0x2a0] sm:$0xff]
  %v3186 = vld [vmem:[%s3 + $0x2a8] sm:$0xff]
  %v3187 = vld [vmem:[%s3 + $0x2b0] sm:$0xff]
  %v3188 = vld [vmem:[%s3 + $0x2b8] sm:$0xff]
  %v3189 = vld [vmem:[%s3 + $0x2c0] sm:$0xff]
  %v3190 = vld [vmem:[%s3 + $0x2c8] sm:$0xff]
  %v3191 = vld [vmem:[%s3 + $0x2d0] sm:$0xff]
  %v3192 = vld [vmem:[%s3 + $0x2d8] sm:$0xff]
  %v3193 = vld [vmem:[%s3 + $0x2e0] sm:$0xff]
  %v3194 = vld [vmem:[%s3 + $0x2e8] sm:$0xff]
  %s3195 = scalar_lea.vmem %s3, 752
  %v3196 = vld [vmem:[%s3195] ss:$8 sm:$0x3]
  %v3198 = vlaneseq
  %v3199 = vshrl.u32 %v3198, 7
  %v3200 = vsub.s32 0, %v3199
  %v3201 = vrot.slane %v3196, %v3200
  %v3202 = vlaneseq
  %v3203 = vshrl.u32 %v3202, 7
  %v3204 = vsub.s32 1, %v3203
  %v3205 = vrot.slane %v3196, %v3204
  %v3209 = vsel %vm966, %v3167, 0
  %v3212 = vsel %vm966, %v3168, 0
  %v3215 = vsel %vm966, %v3169, 0
  %v3218 = vsel %vm966, %v3170, 0
  %v3221 = vsel %vm966, %v3171, 0
  %v3224 = vsel %vm966, %v3172, 0
  %3226 = vmatprep.subr.mxu0 %v3180
  %3227 = vmatpush1.msra.mxu0 %v3179
  %3228 = vmatprep.subr.mxu0 %v3182
  %3229 = vmatpush1.msra.mxu0 %v3181
  %3230 = vmatprep.subr.mxu0 %v3184
  %3231 = vmatpush1.msra.mxu0 %v3183
  %3232 = vmatprep.subr.mxu0 %v3186
  %3233 = vmatpush1.msra.mxu0 %v3185
  %3234 = vmatprep.subr.mxu0 %v3188
  %3235 = vmatpush1.msra.mxu0 %v3187
  %3236 = vmatprep.subr.mxu0 %v3190
  %3237 = vmatpush1.msra.mxu0 %v3189
  %3238 = vmatprep.subr.mxu0 %v3192
  %3239 = vmatpush1.msra.mxu0 %v3191
  %3240 = vmatprep.subr.mxu0 %v3194
  %3241 = vmatpush1.msra.mxu0 %v3193
  %3242 = vmatprep.subr.mxu0 0.0
  %3243 = vmatpush1.msra.mxu0 0.0
  %3244 = vmatprep.subr.mxu0 0.0
  %3245 = vmatpush1.msra.mxu0 0.0
  %3246 = vmatprep.subr.mxu0 0.0
  %3247 = vmatpush1.msra.mxu0 0.0
  %3248 = vmatprep.subr.mxu0 0.0
  %3249 = vmatpush1.msra.mxu0 0.0
  %3250 = vmatprep.subr.mxu0 0.0
  %3251 = vmatpush1.msra.mxu0 0.0
  %3252 = vmatprep.subr.mxu0 0.0
  %3253 = vmatpush1.msra.mxu0 0.0
  %3254 = vmatprep.subr.mxu0 0.0
  %3255 = vmatpush1.msra.mxu0 0.0
  %3256 = vmatprep.subr.mxu0 0.0
  %3257 = vmatpush1.msra.mxu0 0.0
  %3258 = vmatprep.subr.mxu0 0.0
  %3259 = vmatpush1.msra.mxu0 0.0
  %3260 = vmatprep.subr.mxu0 0.0
  %3261 = vmatpush1.msra.mxu0 0.0
  %3262 = vmatprep.subr.mxu0 0.0
  %3263 = vmatpush1.msra.mxu0 0.0
  %3264 = vmatprep.subr.mxu0 0.0
  %3265 = vmatpush1.msra.mxu0 0.0
  %3266 = vmatprep.subr.mxu0 0.0
  %3267 = vmatpush1.msra.mxu0 0.0
  %3268 = vmatprep.subr.mxu0 0.0
  %3269 = vmatpush1.msra.mxu0 0.0
  %3270 = vmatprep.subr.mxu0 0.0
  %3271 = vmatpush1.msra.mxu0 0.0
  %3272 = vmatprep.subr.mxu0 0.0
  %3273 = vmatpush1.msra.mxu0 0.0
  %3274 = vmatprep.subr.mxu0 0.0
  %3275 = vmatpush1.msra.mxu0 0.0
  %3276 = vmatprep.subr.mxu0 0.0
  %3277 = vmatpush1.msra.mxu0 0.0
  %3278 = vmatprep.subr.mxu0 0.0
  %3279 = vmatpush1.msra.mxu0 0.0
  %3280 = vmatprep.subr.mxu0 0.0
  %3281 = vmatpush1.msra.mxu0 0.0
  %3282 = vmatprep.subr.mxu0 0.0
  %3283 = vmatpush1.msra.mxu0 0.0
  %3284 = vmatprep.subr.mxu0 0.0
  %3285 = vmatpush1.msra.mxu0 0.0
  %3286 = vmatprep.subr.mxu0 0.0
  %3287 = vmatpush1.msra.mxu0 0.0
  %3288 = vmatprep.subr.mxu0 0.0
  %3289 = vmatpush1.msra.mxu0 0.0
  %3290 = vmatprep.mubr.f32.mxu0 0.0
  %3291 = vmatmul.mubr.f32.gmra.mrb[0].mxu0 %v3209
  %v3292 = vpop.f32.mrb[0].mxu0
  %v3293 = vadd.f32 %v3201, %v3292
  %v3294 = vpop.f32.mrb[0].mxu0
  %v3295 = vadd.f32 %v3205, %v3294
  %3296 = vmatprep.mubr.f32.mxu0 0.0
  %3297 = vmatmul.mubr.f32.gmra.mrb[0].mxu0 %v3212
  %v3298 = vpop.f32.mrb[0].mxu0
  %v3299 = vadd.f32 %v3201, %v3298
  %v3300 = vpop.f32.mrb[0].mxu0
  %v3301 = vadd.f32 %v3205, %v3300
  %3302 = vmatprep.mubr.f32.mxu0 0.0
  %3303 = vmatmul.mubr.f32.gmra.mrb[0].mxu0 %v3215
  %v3304 = vpop.f32.mrb[0].mxu0
  %v3305 = vadd.f32 %v3201, %v3304
  %v3306 = vpop.f32.mrb[0].mxu0
  %v3307 = vadd.f32 %v3205, %v3306
  %3308 = vmatprep.mubr.f32.mxu0 0.0
  %3309 = vmatmul.mubr.f32.gmra.mrb[0].mxu0 %v3218
  %v3310 = vpop.f32.mrb[0].mxu0
  %v3311 = vadd.f32 %v3201, %v3310
  %v3312 = vpop.f32.mrb[0].mxu0
  %v3313 = vadd.f32 %v3205, %v3312
  %3314 = vmatprep.mubr.f32.mxu0 0.0
  %3315 = vmatmul.mubr.f32.gmra.mrb[0].mxu0 %v3221
  %v3316 = vpop.f32.mrb[0].mxu0
  %v3317 = vadd.f32 %v3201, %v3316
  %v3318 = vpop.f32.mrb[0].mxu0
  %v3319 = vadd.f32 %v3205, %v3318
  %3320 = vmatprep.mubr.f32.mxu0 0.0
  %3321 = vmatmul.mubr.f32.gmra.mrb[0].mxu0 %v3224
  %v3322 = vpop.f32.mrb[0].mxu0
  %v3323 = vadd.f32 %v3201, %v3322
  %v3324 = vpop.f32.mrb[0].mxu0
  %v3325 = vadd.f32 %v3205, %v3324
  %3326 = vdwg.mxu0
  %v3327 = vmul.f32 %v3293, 0.17677669
  %v3328 = vmul.f32 %v3299, 0.17677669
  %v3329 = vmul.f32 %v3305, 0.17677669
  %v3330 = vmul.f32 %v3311, 0.17677669
  %v3331 = vmul.f32 %v3317, 0.17677669
  %v3332 = vmul.f32 %v3323, 0.17677669
  %3339 = vrot.lane.b32.xlu0 %v3293, 64
  %v3340 = vpop.permute.xlu0 %3339
  %3341 = vrot.lane.b32.xlu0 %v3299, 64
  %v3342 = vpop.permute.xlu0 %3341
  %3343 = vrot.lane.b32.xlu0 %v3305, 64
  %v3344 = vpop.permute.xlu0 %3343
  %3345 = vrot.lane.b32.xlu0 %v3311, 64
  %v3346 = vpop.permute.xlu0 %3345
  %3347 = vrot.lane.b32.xlu0 %v3317, 64
  %v3348 = vpop.permute.xlu0 %3347
  %3349 = vrot.lane.b32.xlu0 %v3323, 64
  %v3350 = vpop.permute.xlu0 %3349
  %v3352 = vsel %vm2662, %v3327, 0
  %v3355 = vsel %vm2662, %v3328, 0
  %v3358 = vsel %vm2662, %v3329, 0
  %v3361 = vsel %vm2662, %v3330, 0
  %v3364 = vsel %vm2662, %v3331, 0
  %v3367 = vsel %vm2662, %v3332, 0
  %v3369 = vsel %vm2662, %v3340, 0
  %v3371 = vsel %vm2662, %v3342, 0
  %v3373 = vsel %vm2662, %v3344, 0
  %v3375 = vsel %vm2662, %v3346, 0
  %v3377 = vsel %vm2662, %v3348, 0
  %v3379 = vsel %vm2662, %v3350, 0
  %3381 = vmatprep.subr.mxu0 0.0
  %3382 = vmatpush1.xpose.msra.mxu0 %v3369
  %3383 = vmatprep.subr.mxu0 0.0
  %3384 = vmatpush1.xpose.msra.mxu0 %v3371
  %3385 = vmatprep.subr.mxu0 0.0
  %3386 = vmatpush1.xpose.msra.mxu0 %v3373
  %3387 = vmatprep.subr.mxu0 0.0
  %3388 = vmatpush1.xpose.msra.mxu0 %v3375
  %3389 = vmatprep.subr.mxu0 0.0
  %3390 = vmatpush1.xpose.msra.mxu0 %v3377
  %3391 = vmatprep.subr.mxu0 0.0
  %3392 = vmatpush1.xpose.msra.mxu0 %v3379
  %3393 = vmatprep.subr.mxu0 0.0
  %3394 = vmatpush1.xpose.msra.mxu0 0.0
  %3395 = vmatprep.subr.mxu0 0.0
  %3396 = vmatpush1.xpose.msra.mxu0 0.0
  %3397 = vmatprep.subr.mxu0 0.0
  %3398 = vmatpush1.xpose.msra.mxu0 0.0
  %3399 = vmatprep.subr.mxu0 0.0
  %3400 = vmatpush1.xpose.msra.mxu0 0.0
  %3401 = vmatprep.subr.mxu0 0.0
  %3402 = vmatpush1.xpose.msra.mxu0 0.0
  %3403 = vmatprep.subr.mxu0 0.0
  %3404 = vmatpush1.xpose.msra.mxu0 0.0
  %3405 = vmatprep.subr.mxu0 0.0
  %3406 = vmatpush1.xpose.msra.mxu0 0.0
  %3407 = vmatprep.subr.mxu0 0.0
  %3408 = vmatpush1.xpose.msra.mxu0 0.0
  %3409 = vmatprep.subr.mxu0 0.0
  %3410 = vmatpush1.xpose.msra.mxu0 0.0
  %3411 = vmatprep.subr.mxu0 0.0
  %3412 = vmatpush1.xpose.msra.mxu0 0.0
  %3413 = vmatprep.subr.mxu0 0.0
  %3414 = vmatpush1.xpose.msra.mxu0 0.0
  %3415 = vmatprep.subr.mxu0 0.0
  %3416 = vmatpush1.xpose.msra.mxu0 0.0
  %3417 = vmatprep.subr.mxu0 0.0
  %3418 = vmatpush1.xpose.msra.mxu0 0.0
  %3419 = vmatprep.subr.mxu0 0.0
  %3420 = vmatpush1.xpose.msra.mxu0 0.0
  %3421 = vmatprep.subr.mxu0 0.0
  %3422 = vmatpush1.xpose.msra.mxu0 0.0
  %3423 = vmatprep.subr.mxu0 0.0
  %3424 = vmatpush1.xpose.msra.mxu0 0.0
  %3425 = vmatprep.subr.mxu0 0.0
  %3426 = vmatpush1.xpose.msra.mxu0 0.0
  %3427 = vmatprep.subr.mxu0 0.0
  %3428 = vmatpush1.xpose.msra.mxu0 0.0
  %3429 = vmatprep.subr.mxu0 0.0
  %3430 = vmatpush1.xpose.msra.mxu0 0.0
  %3431 = vmatprep.subr.mxu0 0.0
  %3432 = vmatpush1.xpose.msra.mxu0 0.0
  %3433 = vmatprep.subr.mxu0 0.0
  %3434 = vmatpush1.xpose.msra.mxu0 0.0
  %3435 = vmatprep.subr.mxu0 0.0
  %3436 = vmatpush1.xpose.msra.mxu0 0.0
  %3437 = vmatprep.subr.mxu0 0.0
  %3438 = vmatpush1.xpose.msra.mxu0 0.0
  %3439 = vmatprep.subr.mxu0 0.0
  %3440 = vmatpush1.xpose.msra.mxu0 0.0
  %3441 = vmatprep.subr.mxu0 0.0
  %3442 = vmatpush1.xpose.msra.mxu0 0.0
  %3443 = vmatprep.subr.mxu0 0.0
  %3444 = vmatpush1.xpose.msra.mxu0 0.0
  %3445 = vmatprep.mubr.f32.mxu0 0.0
  %3446 = vmatmul.mubr.f32.gmra.mrb[0].mxu0 %v3352
  %v3447 = vpop.f32.mrb[0].mxu0
  %v3448 = vadd.f32 %v3173, %v3447
  %v3449 = vpop.f32.mrb[0].mxu0
  %3450 = vmatprep.mubr.f32.mxu0 0.0
  %3451 = vmatmul.mubr.f32.gmra.mrb[0].mxu0 %v3355
  %v3452 = vpop.f32.mrb[0].mxu0
  %v3453 = vadd.f32 %v3174, %v3452
  %v3454 = vpop.f32.mrb[0].mxu0
  %3455 = vmatprep.mubr.f32.mxu0 0.0
  %3456 = vmatmul.mubr.f32.gmra.mrb[0].mxu0 %v3358
  %v3457 = vpop.f32.mrb[0].mxu0
  %v3458 = vadd.f32 %v3175, %v3457
  %v3459 = vpop.f32.mrb[0].mxu0
  %3460 = vmatprep.mubr.f32.mxu0 0.0
  %3461 = vmatmul.mubr.f32.gmra.mrb[0].mxu0 %v3361
  %v3462 = vpop.f32.mrb[0].mxu0
  %v3463 = vadd.f32 %v3176, %v3462
  %v3464 = vpop.f32.mrb[0].mxu0
  %3465 = vmatprep.mubr.f32.mxu0 0.0
  %3466 = vmatmul.mubr.f32.gmra.mrb[0].mxu0 %v3364
  %v3467 = vpop.f32.mrb[0].mxu0
  %v3468 = vadd.f32 %v3177, %v3467
  %v3469 = vpop.f32.mrb[0].mxu0
  %3470 = vmatprep.mubr.f32.mxu0 0.0
  %3471 = vmatmul.mubr.f32.gmra.mrb[0].mxu0 %v3367
  %v3472 = vpop.f32.mrb[0].mxu0
  %v3473 = vadd.f32 %v3178, %v3472
  %v3474 = vpop.f32.mrb[0].mxu0
  %3475 = vdwg.mxu0
  %vm3476 = vcmask 392192
  %v3477 = vsel %vm3476, %v3448, -inf
  %3478 = vmax.xlane.f32.xlu0 %v3477
  %v3479 = vpop.xlane.xlu0 %3478
  %v3480 = vsel %vm3476, %v3453, -inf
  %3481 = vmax.xlane.f32.xlu0 %v3480
  %v3482 = vpop.xlane.xlu0 %3481
  %v3483 = vsel %vm3476, %v3458, -inf
  %3484 = vmax.xlane.f32.xlu0 %v3483
  %v3485 = vpop.xlane.xlu0 %3484
  %v3486 = vsel %vm3476, %v3463, -inf
  %3487 = vmax.xlane.f32.xlu0 %v3486
  %v3488 = vpop.xlane.xlu0 %3487
  %v3489 = vsel %vm3476, %v3468, -inf
  %3490 = vmax.xlane.f32.xlu0 %v3489
  %v3491 = vpop.xlane.xlu0 %3490
  %v3492 = vsel %vm3476, %v3473, -inf
  %3493 = vmax.xlane.f32.xlu0 %v3492
  %v3494 = vpop.xlane.xlu0 %3493
  %v3495 = vsub.f32 %v3448, %v3479
  %v3496 = vsub.f32 %v3453, %v3482
  %v3497 = vsub.f32 %v3458, %v3485
  %v3498 = vsub.f32 %v3463, %v3488
  %v3499 = vsub.f32 %v3468, %v3491
  %v3500 = vsub.f32 %v3473, %v3494
  %v3501 = vmul.f32 %v3495, 1.442695
  %v3502 = vpow.pop %v3501
  %v3503 = vmul.f32 %v3496, 1.442695
  %v3504 = vpow.pop %v3503
  %v3505 = vmul.f32 %v3497, 1.442695
  %v3506 = vpow.pop %v3505
  %v3507 = vmul.f32 %v3498, 1.442695
  %v3508 = vpow.pop %v3507
  %v3509 = vmul.f32 %v3499, 1.442695
  %v3510 = vpow.pop %v3509
  %v3511 = vmul.f32 %v3500, 1.442695
  %v3512 = vpow.pop %v3511
  %v3513 = vsel %vm3476, %v3502, 0.0
  %3514 = vadd.xlane.f32.xlu0 %v3513
  %v3515 = vpop.xlane.xlu0 %3514
  %v3516 = vsel %vm3476, %v3504, 0.0
  %3517 = vadd.xlane.f32.xlu0 %v3516
  %v3518 = vpop.xlane.xlu0 %3517
  %v3519 = vsel %vm3476, %v3506, 0.0
  %3520 = vadd.xlane.f32.xlu0 %v3519
  %v3521 = vpop.xlane.xlu0 %3520
  %v3522 = vsel %vm3476, %v3508, 0.0
  %3523 = vadd.xlane.f32.xlu0 %v3522
  %v3524 = vpop.xlane.xlu0 %3523
  %v3525 = vsel %vm3476, %v3510, 0.0
  %3526 = vadd.xlane.f32.xlu0 %v3525
  %v3527 = vpop.xlane.xlu0 %3526
  %v3528 = vsel %vm3476, %v3512, 0.0
  %3529 = vadd.xlane.f32.xlu0 %v3528
  %v3530 = vpop.xlane.xlu0 %3529
  %v3531 = vrcp.pop %v3515
  %v3532 = vrcp.pop %v3518
  %v3533 = vrcp.pop %v3521
  %v3534 = vrcp.pop %v3524
  %v3535 = vrcp.pop %v3527
  %v3536 = vrcp.pop %v3530
  %v3537 = vmul.f32 %v3502, %v3531
  %v3538 = vmul.f32 %v3504, %v3532
  %v3539 = vmul.f32 %v3506, %v3533
  %v3540 = vmul.f32 %v3508, %v3534
  %v3541 = vmul.f32 %v3510, %v3535
  %v3542 = vmul.f32 %v3512, %v3536
  %v3544 = vsel %vm3476, %v3537, 0
  %v3547 = vsel %vm3476, %v3538, 0
  %v3550 = vsel %vm3476, %v3539, 0
  %v3553 = vsel %vm3476, %v3540, 0
  %v3556 = vsel %vm3476, %v3541, 0
  %v3559 = vsel %vm3476, %v3542, 0
  %3561 = vmatprep.subr.mxu0 0.0
  %3562 = vmatpush1.msra.mxu0 %v3295
  %3563 = vmatprep.subr.mxu0 0.0
  %3564 = vmatpush1.msra.mxu0 %v3301
  %3565 = vmatprep.subr.mxu0 0.0
  %3566 = vmatpush1.msra.mxu0 %v3307
  %3567 = vmatprep.subr.mxu0 0.0
  %3568 = vmatpush1.msra.mxu0 %v3313
  %3569 = vmatprep.subr.mxu0 0.0
  %3570 = vmatpush1.msra.mxu0 %v3319
  %3571 = vmatprep.subr.mxu0 0.0
  %3572 = vmatpush1.msra.mxu0 %v3325
  %3573 = vmatprep.subr.mxu0 0.0
  %3574 = vmatpush1.msra.mxu0 0.0
  %3575 = vmatprep.subr.mxu0 0.0
  %3576 = vmatpush1.msra.mxu0 0.0
  %3577 = vmatprep.subr.mxu0 0.0
  %3578 = vmatpush1.msra.mxu0 0.0
  %3579 = vmatprep.subr.mxu0 0.0
  %3580 = vmatpush1.msra.mxu0 0.0
  %3581 = vmatprep.subr.mxu0 0.0
  %3582 = vmatpush1.msra.mxu0 0.0
  %3583 = vmatprep.subr.mxu0 0.0
  %3584 = vmatpush1.msra.mxu0 0.0
  %3585 = vmatprep.subr.mxu0 0.0
  %3586 = vmatpush1.msra.mxu0 0.0
  %3587 = vmatprep.subr.mxu0 0.0
  %3588 = vmatpush1.msra.mxu0 0.0
  %3589 = vmatprep.subr.mxu0 0.0
  %3590 = vmatpush1.msra.mxu0 0.0
  %3591 = vmatprep.subr.mxu0 0.0
  %3592 = vmatpush1.msra.mxu0 0.0
  %3593 = vmatprep.subr.mxu0 0.0
  %3594 = vmatpush1.msra.mxu0 0.0
  %3595 = vmatprep.subr.mxu0 0.0
  %3596 = vmatpush1.msra.mxu0 0.0
  %3597 = vmatprep.subr.mxu0 0.0
  %3598 = vmatpush1.msra.mxu0 0.0
  %3599 = vmatprep.subr.mxu0 0.0
  %3600 = vmatpush1.msra.mxu0 0.0
  %3601 = vmatprep.subr.mxu0 0.0
  %3602 = vmatpush1.msra.mxu0 0.0
  %3603 = vmatprep.subr.mxu0 0.0
  %3604 = vmatpush1.msra.mxu0 0.0
  %3605 = vmatprep.subr.mxu0 0.0
  %3606 = vmatpush1.msra.mxu0 0.0
  %3607 = vmatprep.subr.mxu0 0.0
  %3608 = vmatpush1.msra.mxu0 0.0
  %3609 = vmatprep.subr.mxu0 0.0
  %3610 = vmatpush1.msra.mxu0 0.0
  %3611 = vmatprep.subr.mxu0 0.0
  %3612 = vmatpush1.msra.mxu0 0.0
  %3613 = vmatprep.subr.mxu0 0.0
  %3614 = vmatpush1.msra.mxu0 0.0
  %3615 = vmatprep.subr.mxu0 0.0
  %3616 = vmatpush1.msra.mxu0 0.0
  %3617 = vmatprep.subr.mxu0 0.0
  %3618 = vmatpush1.msra.mxu0 0.0
  %3619 = vmatprep.subr.mxu0 0.0
  %3620 = vmatpush1.msra.mxu0 0.0
  %3621 = vmatprep.subr.mxu0 0.0
  %3622 = vmatpush1.msra.mxu0 0.0
  %3623 = vmatprep.subr.mxu0 0.0
  %3624 = vmatpush1.msra.mxu0 0.0
  %3625 = vmatprep.mubr.f32.mxu0 0.0
  %3626 = vmatmul.mubr.f32.gmra.mrb[0].mxu0 %v3544
  %v3627 = vpop.f32.mrb[0].mxu0
  %v3628 = vadd.f32 0.0, %v3627
  %v3629 = vpop.f32.mrb[0].mxu0
  %3630 = vmatprep.mubr.f32.mxu0 0.0
  %3631 = vmatmul.mubr.f32.gmra.mrb[0].mxu0 %v3547
  %v3632 = vpop.f32.mrb[0].mxu0
  %v3633 = vadd.f32 0.0, %v3632
  %v3634 = vpop.f32.mrb[0].mxu0
  %3635 = vmatprep.mubr.f32.mxu0 0.0
  %3636 = vmatmul.mubr.f32.gmra.mrb[0].mxu0 %v3550
  %v3637 = vpop.f32.mrb[0].mxu0
  %v3638 = vadd.f32 0.0, %v3637
  %v3639 = vpop.f32.mrb[0].mxu0
  %3640 = vmatprep.mubr.f32.mxu0 0.0
  %3641 = vmatmul.mubr.f32.gmra.mrb[0].mxu0 %v3553
  %v3642 = vpop.f32.mrb[0].mxu0
  %v3643 = vadd.f32 0.0, %v3642
  %v3644 = vpop.f32.mrb[0].mxu0
  %3645 = vmatprep.mubr.f32.mxu0 0.0
  %3646 = vmatmul.mubr.f32.gmra.mrb[0].mxu0 %v3556
  %v3647 = vpop.f32.mrb[0].mxu0
  %v3648 = vadd.f32 0.0, %v3647
  %v3649 = vpop.f32.mrb[0].mxu0
  %3650 = vmatprep.mubr.f32.mxu0 0.0
  %3651 = vmatmul.mubr.f32.gmra.mrb[0].mxu0 %v3559
  %v3652 = vpop.f32.mrb[0].mxu0
  %v3653 = vadd.f32 0.0, %v3652
  %v3654 = vpop.f32.mrb[0].mxu0
  %3655 = vdwg.mxu0
  %3656 = vrot.lane.b32.xlu0 %v3327, 96
  %v3657 = vpop.permute.xlu0 %3656
  %3658 = vrot.lane.b32.xlu0 %v3328, 96
  %v3659 = vpop.permute.xlu0 %3658
  %3660 = vrot.lane.b32.xlu0 %v3329, 96
  %v3661 = vpop.permute.xlu0 %3660
  %3662 = vrot.lane.b32.xlu0 %v3330, 96
  %v3663 = vpop.permute.xlu0 %3662
  %3664 = vrot.lane.b32.xlu0 %v3331, 96
  %v3665 = vpop.permute.xlu0 %3664
  %3666 = vrot.lane.b32.xlu0 %v3332, 96
  %v3667 = vpop.permute.xlu0 %3666
  %3668 = vrot.lane.b32.xlu0 %v3293, 32
  %v3669 = vpop.permute.xlu0 %3668
  %3670 = vrot.lane.b32.xlu0 %v3299, 32
  %v3671 = vpop.permute.xlu0 %3670
  %3672 = vrot.lane.b32.xlu0 %v3305, 32
  %v3673 = vpop.permute.xlu0 %3672
  %3674 = vrot.lane.b32.xlu0 %v3311, 32
  %v3675 = vpop.permute.xlu0 %3674
  %3676 = vrot.lane.b32.xlu0 %v3317, 32
  %v3677 = vpop.permute.xlu0 %3676
  %3678 = vrot.lane.b32.xlu0 %v3323, 32
  %v3679 = vpop.permute.xlu0 %3678
  %v3680 = vsel %vm2662, %v3657, 0
  %v3682 = vsel %vm2662, %v3659, 0
  %v3684 = vsel %vm2662, %v3661, 0
  %v3686 = vsel %vm2662, %v3663, 0
  %v3688 = vsel %vm2662, %v3665, 0
  %v3690 = vsel %vm2662, %v3667, 0
  %v3692 = vsel %vm2662, %v3669, 0
  %v3694 = vsel %vm2662, %v3671, 0
  %v3696 = vsel %vm2662, %v3673, 0
  %v3698 = vsel %vm2662, %v3675, 0
  %v3700 = vsel %vm2662, %v3677, 0
  %v3702 = vsel %vm2662, %v3679, 0
  %3704 = vmatprep.subr.mxu0 0.0
  %3705 = vmatpush1.xpose.msra.mxu0 %v3692
  %3706 = vmatprep.subr.mxu0 0.0
  %3707 = vmatpush1.xpose.msra.mxu0 %v3694
  %3708 = vmatprep.subr.mxu0 0.0
  %3709 = vmatpush1.xpose.msra.mxu0 %v3696
  %3710 = vmatprep.subr.mxu0 0.0
  %3711 = vmatpush1.xpose.msra.mxu0 %v3698
  %3712 = vmatprep.subr.mxu0 0.0
  %3713 = vmatpush1.xpose.msra.mxu0 %v3700
  %3714 = vmatprep.subr.mxu0 0.0
  %3715 = vmatpush1.xpose.msra.mxu0 %v3702
  %3716 = vmatprep.subr.mxu0 0.0
  %3717 = vmatpush1.xpose.msra.mxu0 0.0
  %3718 = vmatprep.subr.mxu0 0.0
  %3719 = vmatpush1.xpose.msra.mxu0 0.0
  %3720 = vmatprep.subr.mxu0 0.0
  %3721 = vmatpush1.xpose.msra.mxu0 0.0
  %3722 = vmatprep.subr.mxu0 0.0
  %3723 = vmatpush1.xpose.msra.mxu0 0.0
  %3724 = vmatprep.subr.mxu0 0.0
  %3725 = vmatpush1.xpose.msra.mxu0 0.0
  %3726 = vmatprep.subr.mxu0 0.0
  %3727 = vmatpush1.xpose.msra.mxu0 0.0
  %3728 = vmatprep.subr.mxu0 0.0
  %3729 = vmatpush1.xpose.msra.mxu0 0.0
  %3730 = vmatprep.subr.mxu0 0.0
  %3731 = vmatpush1.xpose.msra.mxu0 0.0
  %3732 = vmatprep.subr.mxu0 0.0
  %3733 = vmatpush1.xpose.msra.mxu0 0.0
  %3734 = vmatprep.subr.mxu0 0.0
  %3735 = vmatpush1.xpose.msra.mxu0 0.0
  %3736 = vmatprep.subr.mxu0 0.0
  %3737 = vmatpush1.xpose.msra.mxu0 0.0
  %3738 = vmatprep.subr.mxu0 0.0
  %3739 = vmatpush1.xpose.msra.mxu0 0.0
  %3740 = vmatprep.subr.mxu0 0.0
  %3741 = vmatpush1.xpose.msra.mxu0 0.0
  %3742 = vmatprep.subr.mxu0 0.0
  %3743 = vmatpush1.xpose.msra.mxu0 0.0
  %3744 = vmatprep.subr.mxu0 0.0
  %3745 = vmatpush1.xpose.msra.mxu0 0.0
  %3746 = vmatprep.subr.mxu0 0.0
  %3747 = vmatpush1.xpose.msra.mxu0 0.0
  %3748 = vmatprep.subr.mxu0 0.0
  %3749 = vmatpush1.xpose.msra.mxu0 0.0
  %3750 = vmatprep.subr.mxu0 0.0
  %3751 = vmatpush1.xpose.msra.mxu0 0.0
  %3752 = vmatprep.subr.mxu0 0.0
  %3753 = vmatpush1.xpose.msra.mxu0 0.0
  %3754 = vmatprep.subr.mxu0 0.0
  %3755 = vmatpush1.xpose.msra.mxu0 0.0
  %3756 = vmatprep.subr.mxu0 0.0
  %3757 = vmatpush1.xpose.msra.mxu0 0.0
  %3758 = vmatprep.subr.mxu0 0.0
  %3759 = vmatpush1.xpose.msra.mxu0 0.0
  %3760 = vmatprep.subr.mxu0 0.0
  %3761 = vmatpush1.xpose.msra.mxu0 0.0
  %3762 = vmatprep.subr.mxu0 0.0
  %3763 = vmatpush1.xpose.msra.mxu0 0.0
  %3764 = vmatprep.subr.mxu0 0.0
  %3765 = vmatpush1.xpose.msra.mxu0 0.0
  %3766 = vmatprep.subr.mxu0 0.0
  %3767 = vmatpush1.xpose.msra.mxu0 0.0
  %3768 = vmatprep.mubr.f32.mxu0 0.0
  %3769 = vmatmul.mubr.f32.gmra.mrb[0].mxu0 %v3680
  %v3770 = vpop.f32.mrb[0].mxu0
  %v3771 = vadd.f32 %v3173, %v3770
  %v3772 = vpop.f32.mrb[0].mxu0
  %3773 = vmatprep.mubr.f32.mxu0 0.0
  %3774 = vmatmul.mubr.f32.gmra.mrb[0].mxu0 %v3682
  %v3775 = vpop.f32.mrb[0].mxu0
  %v3776 = vadd.f32 %v3174, %v3775
  %v3777 = vpop.f32.mrb[0].mxu0
  %3778 = vmatprep.mubr.f32.mxu0 0.0
  %3779 = vmatmul.mubr.f32.gmra.mrb[0].mxu0 %v3684
  %v3780 = vpop.f32.mrb[0].mxu0
  %v3781 = vadd.f32 %v3175, %v3780
  %v3782 = vpop.f32.mrb[0].mxu0
  %3783 = vmatprep.mubr.f32.mxu0 0.0
  %3784 = vmatmul.mubr.f32.gmra.mrb[0].mxu0 %v3686
  %v3785 = vpop.f32.mrb[0].mxu0
  %v3786 = vadd.f32 %v3176, %v3785
  %v3787 = vpop.f32.mrb[0].mxu0
  %3788 = vmatprep.mubr.f32.mxu0 0.0
  %3789 = vmatmul.mubr.f32.gmra.mrb[0].mxu0 %v3688
  %v3790 = vpop.f32.mrb[0].mxu0
  %v3791 = vadd.f32 %v3177, %v3790
  %v3792 = vpop.f32.mrb[0].mxu0
  %3793 = vmatprep.mubr.f32.mxu0 0.0
  %3794 = vmatmul.mubr.f32.gmra.mrb[0].mxu0 %v3690
  %v3795 = vpop.f32.mrb[0].mxu0
  %v3796 = vadd.f32 %v3178, %v3795
  %v3797 = vpop.f32.mrb[0].mxu0
  %3798 = vdwg.mxu0
  %v3799 = vsel %vm3476, %v3771, -inf
  %3800 = vmax.xlane.f32.xlu0 %v3799
  %v3801 = vpop.xlane.xlu0 %3800
  %v3802 = vsel %vm3476, %v3776, -inf
  %3803 = vmax.xlane.f32.xlu0 %v3802
  %v3804 = vpop.xlane.xlu0 %3803
  %v3805 = vsel %vm3476, %v3781, -inf
  %3806 = vmax.xlane.f32.xlu0 %v3805
  %v3807 = vpop.xlane.xlu0 %3806
  %v3808 = vsel %vm3476, %v3786, -inf
  %3809 = vmax.xlane.f32.xlu0 %v3808
  %v3810 = vpop.xlane.xlu0 %3809
  %v3811 = vsel %vm3476, %v3791, -inf
  %3812 = vmax.xlane.f32.xlu0 %v3811
  %v3813 = vpop.xlane.xlu0 %3812
  %v3814 = vsel %vm3476, %v3796, -inf
  %3815 = vmax.xlane.f32.xlu0 %v3814
  %v3816 = vpop.xlane.xlu0 %3815
  %v3817 = vsub.f32 %v3771, %v3801
  %v3818 = vsub.f32 %v3776, %v3804
  %v3819 = vsub.f32 %v3781, %v3807
  %v3820 = vsub.f32 %v3786, %v3810
  %v3821 = vsub.f32 %v3791, %v3813
  %v3822 = vsub.f32 %v3796, %v3816
  %v3823 = vmul.f32 %v3817, 1.442695
  %v3824 = vpow.pop %v3823
  %v3825 = vmul.f32 %v3818, 1.442695
  %v3826 = vpow.pop %v3825
  %v3827 = vmul.f32 %v3819, 1.442695
  %v3828 = vpow.pop %v3827
  %v3829 = vmul.f32 %v3820, 1.442695
  %v3830 = vpow.pop %v3829
  %v3831 = vmul.f32 %v3821, 1.442695
  %v3832 = vpow.pop %v3831
  %v3833 = vmul.f32 %v3822, 1.442695
  %v3834 = vpow.pop %v3833
  %v3835 = vsel %vm3476, %v3824, 0.0
  %3836 = vadd.xlane.f32.xlu0 %v3835
  %v3837 = vpop.xlane.xlu0 %3836
  %v3838 = vsel %vm3476, %v3826, 0.0
  %3839 = vadd.xlane.f32.xlu0 %v3838
  %v3840 = vpop.xlane.xlu0 %3839
  %v3841 = vsel %vm3476, %v3828, 0.0
  %3842 = vadd.xlane.f32.xlu0 %v3841
  %v3843 = vpop.xlane.xlu0 %3842
  %v3844 = vsel %vm3476, %v3830, 0.0
  %3845 = vadd.xlane.f32.xlu0 %v3844
  %v3846 = vpop.xlane.xlu0 %3845
  %v3847 = vsel %vm3476, %v3832, 0.0
  %3848 = vadd.xlane.f32.xlu0 %v3847
  %v3849 = vpop.xlane.xlu0 %3848
  %v3850 = vsel %vm3476, %v3834, 0.0
  %3851 = vadd.xlane.f32.xlu0 %v3850
  %v3852 = vpop.xlane.xlu0 %3851
  %v3853 = vrcp.pop %v3837
  %v3854 = vrcp.pop %v3840
  %v3855 = vrcp.pop %v3843
  %v3856 = vrcp.pop %v3846
  %v3857 = vrcp.pop %v3849
  %v3858 = vrcp.pop %v3852
  %v3859 = vmul.f32 %v3824, %v3853
  %v3860 = vmul.f32 %v3826, %v3854
  %v3861 = vmul.f32 %v3828, %v3855
  %v3862 = vmul.f32 %v3830, %v3856
  %v3863 = vmul.f32 %v3832, %v3857
  %v3864 = vmul.f32 %v3834, %v3858
  %3871 = vrot.lane.b32.xlu0 %v3295, 96
  %v3872 = vpop.permute.xlu0 %3871
  %3873 = vrot.lane.b32.xlu0 %v3301, 96
  %v3874 = vpop.permute.xlu0 %3873
  %3875 = vrot.lane.b32.xlu0 %v3307, 96
  %v3876 = vpop.permute.xlu0 %3875
  %3877 = vrot.lane.b32.xlu0 %v3313, 96
  %v3878 = vpop.permute.xlu0 %3877
  %3879 = vrot.lane.b32.xlu0 %v3319, 96
  %v3880 = vpop.permute.xlu0 %3879
  %3881 = vrot.lane.b32.xlu0 %v3325, 96
  %v3882 = vpop.permute.xlu0 %3881
  %v3890 = vsel %vm3476, %v3859, 0
  %v3893 = vsel %vm3476, %v3860, 0
  %v3896 = vsel %vm3476, %v3861, 0
  %v3899 = vsel %vm3476, %v3862, 0
  %v3902 = vsel %vm3476, %v3863, 0
  %v3905 = vsel %vm3476, %v3864, 0
  %3907 = vmatprep.subr.mxu0 0.0
  %3908 = vmatpush1.msra.mxu0 %v3872
  %3909 = vmatprep.subr.mxu0 0.0
  %3910 = vmatpush1.msra.mxu0 %v3874
  %3911 = vmatprep.subr.mxu0 0.0
  %3912 = vmatpush1.msra.mxu0 %v3876
  %3913 = vmatprep.subr.mxu0 0.0
  %3914 = vmatpush1.msra.mxu0 %v3878
  %3915 = vmatprep.subr.mxu0 0.0
  %3916 = vmatpush1.msra.mxu0 %v3880
  %3917 = vmatprep.subr.mxu0 0.0
  %3918 = vmatpush1.msra.mxu0 %v3882
  %3919 = vmatprep.subr.mxu0 0.0
  %3920 = vmatpush1.msra.mxu0 0.0
  %3921 = vmatprep.subr.mxu0 0.0
  %3922 = vmatpush1.msra.mxu0 0.0
  %3923 = vmatprep.subr.mxu0 0.0
  %3924 = vmatpush1.msra.mxu0 0.0
  %3925 = vmatprep.subr.mxu0 0.0
  %3926 = vmatpush1.msra.mxu0 0.0
  %3927 = vmatprep.subr.mxu0 0.0
  %3928 = vmatpush1.msra.mxu0 0.0
  %3929 = vmatprep.subr.mxu0 0.0
  %3930 = vmatpush1.msra.mxu0 0.0
  %3931 = vmatprep.subr.mxu0 0.0
  %3932 = vmatpush1.msra.mxu0 0.0
  %3933 = vmatprep.subr.mxu0 0.0
  %3934 = vmatpush1.msra.mxu0 0.0
  %3935 = vmatprep.subr.mxu0 0.0
  %3936 = vmatpush1.msra.mxu0 0.0
  %3937 = vmatprep.subr.mxu0 0.0
  %3938 = vmatpush1.msra.mxu0 0.0
  %3939 = vmatprep.subr.mxu0 0.0
  %3940 = vmatpush1.msra.mxu0 0.0
  %3941 = vmatprep.subr.mxu0 0.0
  %3942 = vmatpush1.msra.mxu0 0.0
  %3943 = vmatprep.subr.mxu0 0.0
  %3944 = vmatpush1.msra.mxu0 0.0
  %3945 = vmatprep.subr.mxu0 0.0
  %3946 = vmatpush1.msra.mxu0 0.0
  %3947 = vmatprep.subr.mxu0 0.0
  %3948 = vmatpush1.msra.mxu0 0.0
  %3949 = vmatprep.subr.mxu0 0.0
  %3950 = vmatpush1.msra.mxu0 0.0
  %3951 = vmatprep.subr.mxu0 0.0
  %3952 = vmatpush1.msra.mxu0 0.0
  %3953 = vmatprep.subr.mxu0 0.0
  %3954 = vmatpush1.msra.mxu0 0.0
  %3955 = vmatprep.subr.mxu0 0.0
  %3956 = vmatpush1.msra.mxu0 0.0
  %3957 = vmatprep.subr.mxu0 0.0
  %3958 = vmatpush1.msra.mxu0 0.0
  %3959 = vmatprep.subr.mxu0 0.0
  %3960 = vmatpush1.msra.mxu0 0.0
  %3961 = vmatprep.subr.mxu0 0.0
  %3962 = vmatpush1.msra.mxu0 0.0
  %3963 = vmatprep.subr.mxu0 0.0
  %3964 = vmatpush1.msra.mxu0 0.0
  %3965 = vmatprep.subr.mxu0 0.0
  %3966 = vmatpush1.msra.mxu0 0.0
  %3967 = vmatprep.subr.mxu0 0.0
  %3968 = vmatpush1.msra.mxu0 0.0
  %3969 = vmatprep.subr.mxu0 0.0
  %3970 = vmatpush1.msra.mxu0 0.0
  %3971 = vmatprep.mubr.f32.mxu0 0.0
  %3972 = vmatmul.mubr.f32.gmra.mrb[0].mxu0 %v3890
  %v3973 = vpop.f32.mrb[0].mxu0
  %v3974 = vadd.f32 0.0, %v3973
  %v3975 = vpop.f32.mrb[0].mxu0
  %3976 = vmatprep.mubr.f32.mxu0 0.0
  %3977 = vmatmul.mubr.f32.gmra.mrb[0].mxu0 %v3893
  %v3978 = vpop.f32.mrb[0].mxu0
  %v3979 = vadd.f32 0.0, %v3978
  %v3980 = vpop.f32.mrb[0].mxu0
  %3981 = vmatprep.mubr.f32.mxu0 0.0
  %3982 = vmatmul.mubr.f32.gmra.mrb[0].mxu0 %v3896
  %v3983 = vpop.f32.mrb[0].mxu0
  %v3984 = vadd.f32 0.0, %v3983
  %v3985 = vpop.f32.mrb[0].mxu0
  %3986 = vmatprep.mubr.f32.mxu0 0.0
  %3987 = vmatmul.mubr.f32.gmra.mrb[0].mxu0 %v3899
  %v3988 = vpop.f32.mrb[0].mxu0
  %v3989 = vadd.f32 0.0, %v3988
  %v3990 = vpop.f32.mrb[0].mxu0
  %3991 = vmatprep.mubr.f32.mxu0 0.0
  %3992 = vmatmul.mubr.f32.gmra.mrb[0].mxu0 %v3902
  %v3993 = vpop.f32.mrb[0].mxu0
  %v3994 = vadd.f32 0.0, %v3993
  %v3995 = vpop.f32.mrb[0].mxu0
  %3996 = vmatprep.mubr.f32.mxu0 0.0
  %3997 = vmatmul.mubr.f32.gmra.mrb[0].mxu0 %v3905
  %v3998 = vpop.f32.mrb[0].mxu0
  %v3999 = vadd.f32 0.0, %v3998
  %v4000 = vpop.f32.mrb[0].mxu0
  %4001 = vdwg.mxu0
  %4008 = vrot.lane.b32.xlu0 %v3974, 32
  %v4009 = vpop.permute.xlu0 %4008
  %4010 = vrot.lane.b32.xlu0 %v3979, 32
  %v4011 = vpop.permute.xlu0 %4010
  %4012 = vrot.lane.b32.xlu0 %v3984, 32
  %v4013 = vpop.permute.xlu0 %4012
  %4014 = vrot.lane.b32.xlu0 %v3989, 32
  %v4015 = vpop.permute.xlu0 %4014
  %4016 = vrot.lane.b32.xlu0 %v3994, 32
  %v4017 = vpop.permute.xlu0 %4016
  %4018 = vrot.lane.b32.xlu0 %v3999, 32
  %v4019 = vpop.permute.xlu0 %4018
  %v4026 = vsel %vm2662, %v3628, %v4009
  %v4027 = vsel %vm2662, %v3633, %v4011
  %v4028 = vsel %vm2662, %v3638, %v4013
  %v4029 = vsel %vm2662, %v3643, %v4015
  %v4030 = vsel %vm2662, %v3648, %v4017
  %v4031 = vsel %vm2662, %v3653, %v4019
  %v4032 = vld [vmem:[%s2 + $0x5d0] sm:$0xff]
  %v4033 = vld [vmem:[%s2 + $0x5d8] sm:$0xff]
  %v4034 = vld [vmem:[%s2 + $0x5e0] sm:$0xff]
  %v4035 = vld [vmem:[%s2 + $0x5e8] sm:$0xff]
  %v4036 = vld [vmem:[%s2 + $0x5f0] sm:$0xff]
  %v4037 = vld [vmem:[%s2 + $0x5f8] sm:$0xff]
  %v4038 = vld [vmem:[%s2 + $0x600] sm:$0xff]
  %v4039 = vld [vmem:[%s2 + $0x608] sm:$0xff]
  %v4041 = vsel %vm966, %v4026, 0
  %v4044 = vsel %vm966, %v4027, 0
  %v4047 = vsel %vm966, %v4028, 0
  %v4050 = vsel %vm966, %v4029, 0
  %v4053 = vsel %vm966, %v4030, 0
  %v4056 = vsel %vm966, %v4031, 0
  %4058 = vmatprep.subr.mxu0 0.0
  %4059 = vmatpush1.msra.mxu0 %v4032
  %4060 = vmatprep.subr.mxu0 0.0
  %4061 = vmatpush1.msra.mxu0 %v4033
  %4062 = vmatprep.subr.mxu0 0.0
  %4063 = vmatpush1.msra.mxu0 %v4034
  %4064 = vmatprep.subr.mxu0 0.0
  %4065 = vmatpush1.msra.mxu0 %v4035
  %4066 = vmatprep.subr.mxu0 0.0
  %4067 = vmatpush1.msra.mxu0 %v4036
  %4068 = vmatprep.subr.mxu0 0.0
  %4069 = vmatpush1.msra.mxu0 %v4037
  %4070 = vmatprep.subr.mxu0 0.0
  %4071 = vmatpush1.msra.mxu0 %v4038
  %4072 = vmatprep.subr.mxu0 0.0
  %4073 = vmatpush1.msra.mxu0 %v4039
  %4074 = vmatprep.subr.mxu0 0.0
  %4075 = vmatpush1.msra.mxu0 0.0
  %4076 = vmatprep.subr.mxu0 0.0
  %4077 = vmatpush1.msra.mxu0 0.0
  %4078 = vmatprep.subr.mxu0 0.0
  %4079 = vmatpush1.msra.mxu0 0.0
  %4080 = vmatprep.subr.mxu0 0.0
  %4081 = vmatpush1.msra.mxu0 0.0
  %4082 = vmatprep.subr.mxu0 0.0
  %4083 = vmatpush1.msra.mxu0 0.0
  %4084 = vmatprep.subr.mxu0 0.0
  %4085 = vmatpush1.msra.mxu0 0.0
  %4086 = vmatprep.subr.mxu0 0.0
  %4087 = vmatpush1.msra.mxu0 0.0
  %4088 = vmatprep.subr.mxu0 0.0
  %4089 = vmatpush1.msra.mxu0 0.0
  %4090 = vmatprep.subr.mxu0 0.0
  %4091 = vmatpush1.msra.mxu0 0.0
  %4092 = vmatprep.subr.mxu0 0.0
  %4093 = vmatpush1.msra.mxu0 0.0
  %4094 = vmatprep.subr.mxu0 0.0
  %4095 = vmatpush1.msra.mxu0 0.0
  %4096 = vmatprep.subr.mxu0 0.0
  %4097 = vmatpush1.msra.mxu0 0.0
  %4098 = vmatprep.subr.mxu0 0.0
  %4099 = vmatpush1.msra.mxu0 0.0
  %4100 = vmatprep.subr.mxu0 0.0
  %4101 = vmatpush1.msra.mxu0 0.0
  %4102 = vmatprep.subr.mxu0 0.0
  %4103 = vmatpush1.msra.mxu0 0.0
  %4104 = vmatprep.subr.mxu0 0.0
  %4105 = vmatpush1.msra.mxu0 0.0
  %4106 = vmatprep.subr.mxu0 0.0
  %4107 = vmatpush1.msra.mxu0 0.0
  %4108 = vmatprep.subr.mxu0 0.0
  %4109 = vmatpush1.msra.mxu0 0.0
  %4110 = vmatprep.subr.mxu0 0.0
  %4111 = vmatpush1.msra.mxu0 0.0
  %4112 = vmatprep.subr.mxu0 0.0
  %4113 = vmatpush1.msra.mxu0 0.0
  %4114 = vmatprep.subr.mxu0 0.0
  %4115 = vmatpush1.msra.mxu0 0.0
  %4116 = vmatprep.subr.mxu0 0.0
  %4117 = vmatpush1.msra.mxu0 0.0
  %4118 = vmatprep.subr.mxu0 0.0
  %4119 = vmatpush1.msra.mxu0 0.0
  %4120 = vmatprep.subr.mxu0 0.0
  %4121 = vmatpush1.msra.mxu0 0.0
  %4122 = vmatprep.mubr.f32.mxu0 0.0
  %4123 = vmatmul.mubr.f32.gmra.mrb[0].mxu0 %v4041
  %v4124 = vpop.f32.mrb[0].mxu0
  %v4125 = vadd.f32 0.0, %v4124
  %v4126 = vpop.f32.mrb[0].mxu0
  %4127 = vmatprep.mubr.f32.mxu0 0.0
  %4128 = vmatmul.mubr.f32.gmra.mrb[0].mxu0 %v4044
  %v4129 = vpop.f32.mrb[0].mxu0
  %v4130 = vadd.f32 0.0, %v4129
  %v4131 = vpop.f32.mrb[0].mxu0
  %4132 = vmatprep.mubr.f32.mxu0 0.0
  %4133 = vmatmul.mubr.f32.gmra.mrb[0].mxu0 %v4047
  %v4134 = vpop.f32.mrb[0].mxu0
  %v4135 = vadd.f32 0.0, %v4134
  %v4136 = vpop.f32.mrb[0].mxu0
  %4137 = vmatprep.mubr.f32.mxu0 0.0
  %4138 = vmatmul.mubr.f32.gmra.mrb[0].mxu0 %v4050
  %v4139 = vpop.f32.mrb[0].mxu0
  %v4140 = vadd.f32 0.0, %v4139
  %v4141 = vpop.f32.mrb[0].mxu0
  %4142 = vmatprep.mubr.f32.mxu0 0.0
  %4143 = vmatmul.mubr.f32.gmra.mrb[0].mxu0 %v4053
  %v4144 = vpop.f32.mrb[0].mxu0
  %v4145 = vadd.f32 0.0, %v4144
  %v4146 = vpop.f32.mrb[0].mxu0
  %4147 = vmatprep.mubr.f32.mxu0 0.0
  %4148 = vmatmul.mubr.f32.gmra.mrb[0].mxu0 %v4056
  %v4149 = vpop.f32.mrb[0].mxu0
  %v4150 = vadd.f32 0.0, %v4149
  %v4151 = vpop.f32.mrb[0].mxu0
  %4152 = vdwg.mxu0
  %v4153 = vadd.f32 %v3167, %v4125
  %v4154 = vadd.f32 %v3168, %v4130
  %v4155 = vadd.f32 %v3169, %v4135
  %v4156 = vadd.f32 %v3170, %v4140
  %v4157 = vadd.f32 %v3171, %v4145
  %v4158 = vadd.f32 %v3172, %v4150
  %v4159 = vld [vmem:[%s2 + $0x610] sm:$0x1]
  %v4160 = vlaneseq
  %v4161 = vshrl.u32 %v4160, 7
  %v4162 = vsub.s32 0, %v4161
  %v4163 = vrot.slane %v4159, %v4162
  %v4164 = vadd.f32 %v4153, %v4163
  %v4165 = vadd.f32 %v4154, %v4163
  %v4166 = vadd.f32 %v4155, %v4163
  %v4167 = vadd.f32 %v4156, %v4163
  %v4168 = vadd.f32 %v4157, %v4163
  %v4169 = vadd.f32 %v4158, %v4163
  %v4170 = vld [vmem:[%s2 + $0x618] sm:$0x1]
  %v4171 = vld [vmem:[%s2 + $0x620] sm:$0x1]
  %v4172 = vsel %vm966, %v4164, 0.0
  %4173 = vadd.xlane.f32.xlu0 %v4172
  %v4174 = vpop.xlane.xlu0 %4173
  %v4175 = vsel %vm966, %v4165, 0.0
  %4176 = vadd.xlane.f32.xlu0 %v4175
  %v4177 = vpop.xlane.xlu0 %4176
  %v4178 = vsel %vm966, %v4166, 0.0
  %4179 = vadd.xlane.f32.xlu0 %v4178
  %v4180 = vpop.xlane.xlu0 %4179
  %v4181 = vsel %vm966, %v4167, 0.0
  %4182 = vadd.xlane.f32.xlu0 %v4181
  %v4183 = vpop.xlane.xlu0 %4182
  %v4184 = vsel %vm966, %v4168, 0.0
  %4185 = vadd.xlane.f32.xlu0 %v4184
  %v4186 = vpop.xlane.xlu0 %4185
  %v4187 = vsel %vm966, %v4169, 0.0
  %4188 = vadd.xlane.f32.xlu0 %v4187
  %v4189 = vpop.xlane.xlu0 %4188
  %v4190 = vmul.f32 %v4174, %v3092
  %v4191 = vmul.f32 %v4177, %v3092
  %v4192 = vmul.f32 %v4180, %v3092
  %v4193 = vmul.f32 %v4183, %v3092
  %v4194 = vmul.f32 %v4186, %v3092
  %v4195 = vmul.f32 %v4189, %v3092
  %v4196 = vsub.f32 %v4164, %v4190
  %v4197 = vsub.f32 %v4165, %v4191
  %v4198 = vsub.f32 %v4166, %v4192
  %v4199 = vsub.f32 %v4167, %v4193
  %v4200 = vsub.f32 %v4168, %v4194
  %v4201 = vsub.f32 %v4169, %v4195
  %v4202 = vmul.f32 %v4196, %v4196
  %v4203 = vmul.f32 %v4197, %v4197
  %v4204 = vmul.f32 %v4198, %v4198
  %v4205 = vmul.f32 %v4199, %v4199
  %v4206 = vmul.f32 %v4200, %v4200
  %v4207 = vmul.f32 %v4201, %v4201
  %v4208 = vsel %vm966, %v4202, 0.0
  %4209 = vadd.xlane.f32.xlu0 %v4208
  %v4210 = vpop.xlane.xlu0 %4209
  %v4211 = vsel %vm966, %v4203, 0.0
  %4212 = vadd.xlane.f32.xlu0 %v4211
  %v4213 = vpop.xlane.xlu0 %4212
  %v4214 = vsel %vm966, %v4204, 0.0
  %4215 = vadd.xlane.f32.xlu0 %v4214
  %v4216 = vpop.xlane.xlu0 %4215
  %v4217 = vsel %vm966, %v4205, 0.0
  %4218 = vadd.xlane.f32.xlu0 %v4217
  %v4219 = vpop.xlane.xlu0 %4218
  %v4220 = vsel %vm966, %v4206, 0.0
  %4221 = vadd.xlane.f32.xlu0 %v4220
  %v4222 = vpop.xlane.xlu0 %4221
  %v4223 = vsel %vm966, %v4207, 0.0
  %4224 = vadd.xlane.f32.xlu0 %v4223
  %v4225 = vpop.xlane.xlu0 %4224
  %v4226 = vmul.f32 %v4210, %v3092
  %v4227 = vmul.f32 %v4213, %v3092
  %v4228 = vmul.f32 %v4216, %v3092
  %v4229 = vmul.f32 %v4219, %v3092
  %v4230 = vmul.f32 %v4222, %v3092
  %v4231 = vmul.f32 %v4225, %v3092
  %v4232 = vadd.f32 %v4226, 1e-05
  %v4233 = vadd.f32 %v4227, 1e-05
  %v4234 = vadd.f32 %v4228, 1e-05
  %v4235 = vadd.f32 %v4229, 1e-05
  %v4236 = vadd.f32 %v4230, 1e-05
  %v4237 = vadd.f32 %v4231, 1e-05
  %v4238 = vrsqrt.pop %v4232
  %v4239 = vrsqrt.pop %v4233
  %v4240 = vrsqrt.pop %v4234
  %v4241 = vrsqrt.pop %v4235
  %v4242 = vrsqrt.pop %v4236
  %v4243 = vrsqrt.pop %v4237
  %v4244 = vmul.f32 %v4196, %v4238
  %v4245 = vmul.f32 %v4197, %v4239
  %v4246 = vmul.f32 %v4198, %v4240
  %v4247 = vmul.f32 %v4199, %v4241
  %v4248 = vmul.f32 %v4200, %v4242
  %v4249 = vmul.f32 %v4201, %v4243
  %v4250 = vlaneseq
  %v4251 = vshrl.u32 %v4250, 7
  %v4252 = vsub.s32 0, %v4251
  %v4253 = vrot.slane %v4170, %v4252
  %v4254 = vmul.f32 %v4244, %v4253
  %v4255 = vmul.f32 %v4245, %v4253
  %v4256 = vmul.f32 %v4246, %v4253
  %v4257 = vmul.f32 %v4247, %v4253
  %v4258 = vmul.f32 %v4248, %v4253
  %v4259 = vmul.f32 %v4249, %v4253
  %v4260 = vlaneseq
  %v4261 = vshrl.u32 %v4260, 7
  %v4262 = vsub.s32 0, %v4261
  %v4263 = vrot.slane %v4171, %v4262
  %v4264 = vadd.f32 %v4254, %v4263
  %v4265 = vadd.f32 %v4255, %v4263
  %v4266 = vadd.f32 %v4256, %v4263
  %v4267 = vadd.f32 %v4257, %v4263
  %v4268 = vadd.f32 %v4258, %v4263
  %v4269 = vadd.f32 %v4259, %v4263
  %v4270 = vld [vmem:[%s2 + $0x628] sm:$0xff]
  %v4271 = vld [vmem:[%s2 + $0x630] sm:$0xff]
  %v4272 = vld [vmem:[%s2 + $0x638] sm:$0xff]
  %v4273 = vld [vmem:[%s2 + $0x640] sm:$0xff]
  %v4274 = vld [vmem:[%s2 + $0x648] sm:$0xff]
  %v4275 = vld [vmem:[%s2 + $0x650] sm:$0xff]
  %v4276 = vld [vmem:[%s2 + $0x658] sm:$0xff]
  %v4277 = vld [vmem:[%s2 + $0x660] sm:$0xff]
  %v4278 = vld [vmem:[%s2 + $0x668] sm:$0x1]
  %v4279 = vlaneseq
  %v4280 = vshrl.u32 %v4279, 7
  %v4281 = vsub.s32 0, %v4280
  %v4282 = vrot.slane %v4278, %v4281
  %v4284 = vsel %vm966, %v4264, 0
  %v4287 = vsel %vm966, %v4265, 0
  %v4290 = vsel %vm966, %v4266, 0
  %v4293 = vsel %vm966, %v4267, 0
  %v4296 = vsel %vm966, %v4268, 0
  %v4299 = vsel %vm966, %v4269, 0
  %4301 = vmatprep.subr.mxu0 0.0
  %4302 = vmatpush1.msra.mxu0 %v4270
  %4303 = vmatprep.subr.mxu0 0.0
  %4304 = vmatpush1.msra.mxu0 %v4271
  %4305 = vmatprep.subr.mxu0 0.0
  %4306 = vmatpush1.msra.mxu0 %v4272
  %4307 = vmatprep.subr.mxu0 0.0
  %4308 = vmatpush1.msra.mxu0 %v4273
  %4309 = vmatprep.subr.mxu0 0.0
  %4310 = vmatpush1.msra.mxu0 %v4274
  %4311 = vmatprep.subr.mxu0 0.0
  %4312 = vmatpush1.msra.mxu0 %v4275
  %4313 = vmatprep.subr.mxu0 0.0
  %4314 = vmatpush1.msra.mxu0 %v4276
  %4315 = vmatprep.subr.mxu0 0.0
  %4316 = vmatpush1.msra.mxu0 %v4277
  %4317 = vmatprep.subr.mxu0 0.0
  %4318 = vmatpush1.msra.mxu0 0.0
  %4319 = vmatprep.subr.mxu0 0.0
  %4320 = vmatpush1.msra.mxu0 0.0
  %4321 = vmatprep.subr.mxu0 0.0
  %4322 = vmatpush1.msra.mxu0 0.0
  %4323 = vmatprep.subr.mxu0 0.0
  %4324 = vmatpush1.msra.mxu0 0.0
  %4325 = vmatprep.subr.mxu0 0.0
  %4326 = vmatpush1.msra.mxu0 0.0
  %4327 = vmatprep.subr.mxu0 0.0
  %4328 = vmatpush1.msra.mxu0 0.0
  %4329 = vmatprep.subr.mxu0 0.0
  %4330 = vmatpush1.msra.mxu0 0.0
  %4331 = vmatprep.subr.mxu0 0.0
  %4332 = vmatpush1.msra.mxu0 0.0
  %4333 = vmatprep.subr.mxu0 0.0
  %4334 = vmatpush1.msra.mxu0 0.0
  %4335 = vmatprep.subr.mxu0 0.0
  %4336 = vmatpush1.msra.mxu0 0.0
  %4337 = vmatprep.subr.mxu0 0.0
  %4338 = vmatpush1.msra.mxu0 0.0
  %4339 = vmatprep.subr.mxu0 0.0
  %4340 = vmatpush1.msra.mxu0 0.0
  %4341 = vmatprep.subr.mxu0 0.0
  %4342 = vmatpush1.msra.mxu0 0.0
  %4343 = vmatprep.subr.mxu0 0.0
  %4344 = vmatpush1.msra.mxu0 0.0
  %4345 = vmatprep.subr.mxu0 0.0
  %4346 = vmatpush1.msra.mxu0 0.0
  %4347 = vmatprep.subr.mxu0 0.0
  %4348 = vmatpush1.msra.mxu0 0.0
  %4349 = vmatprep.subr.mxu0 0.0
  %4350 = vmatpush1.msra.mxu0 0.0
  %4351 = vmatprep.subr.mxu0 0.0
  %4352 = vmatpush1.msra.mxu0 0.0
  %4353 = vmatprep.subr.mxu0 0.0
  %4354 = vmatpush1.msra.mxu0 0.0
  %4355 = vmatprep.subr.mxu0 0.0
  %4356 = vmatpush1.msra.mxu0 0.0
  %4357 = vmatprep.subr.mxu0 0.0
  %4358 = vmatpush1.msra.mxu0 0.0
  %4359 = vmatprep.subr.mxu0 0.0
  %4360 = vmatpush1.msra.mxu0 0.0
  %4361 = vmatprep.subr.mxu0 0.0
  %4362 = vmatpush1.msra.mxu0 0.0
  %4363 = vmatprep.subr.mxu0 0.0
  %4364 = vmatpush1.msra.mxu0 0.0
  %4365 = vmatprep.mubr.f32.mxu0 0.0
  %4366 = vmatmul.mubr.f32.gmra.mrb[0].mxu0 %v4284
  %v4367 = vpop.f32.mrb[0].mxu0
  %v4368 = vadd.f32 %v4282, %v4367
  %v4369 = vpop.f32.mrb[0].mxu0
  %4370 = vmatprep.mubr.f32.mxu0 0.0
  %4371 = vmatmul.mubr.f32.gmra.mrb[0].mxu0 %v4287
  %v4372 = vpop.f32.mrb[0].mxu0
  %v4373 = vadd.f32 %v4282, %v4372
  %v4374 = vpop.f32.mrb[0].mxu0
  %4375 = vmatprep.mubr.f32.mxu0 0.0
  %4376 = vmatmul.mubr.f32.gmra.mrb[0].mxu0 %v4290
  %v4377 = vpop.f32.mrb[0].mxu0
  %v4378 = vadd.f32 %v4282, %v4377
  %v4379 = vpop.f32.mrb[0].mxu0
  %4380 = vmatprep.mubr.f32.mxu0 0.0
  %4381 = vmatmul.mubr.f32.gmra.mrb[0].mxu0 %v4293
  %v4382 = vpop.f32.mrb[0].mxu0
  %v4383 = vadd.f32 %v4282, %v4382
  %v4384 = vpop.f32.mrb[0].mxu0
  %4385 = vmatprep.mubr.f32.mxu0 0.0
  %4386 = vmatmul.mubr.f32.gmra.mrb[0].mxu0 %v4296
  %v4387 = vpop.f32.mrb[0].mxu0
  %v4388 = vadd.f32 %v4282, %v4387
  %v4389 = vpop.f32.mrb[0].mxu0
  %4390 = vmatprep.mubr.f32.mxu0 0.0
  %4391 = vmatmul.mubr.f32.gmra.mrb[0].mxu0 %v4299
  %v4392 = vpop.f32.mrb[0].mxu0
  %v4393 = vadd.f32 %v4282, %v4392
  %v4394 = vpop.f32.mrb[0].mxu0
  %4395 = vdwg.mxu0
  %v4396 = vmax.f32 %v4368, 0.0
  %v4397 = vmax.f32 %v4373, 0.0
  %v4398 = vmax.f32 %v4378, 0.0
  %v4399 = vmax.f32 %v4383, 0.0
  %v4400 = vmax.f32 %v4388, 0.0
  %v4401 = vmax.f32 %v4393, 0.0
  %v4402 = vld [vmem:[%s2 + $0x670] sm:$0xff]
  %v4403 = vld [vmem:[%s2 + $0x678] sm:$0xff]
  %v4404 = vld [vmem:[%s2 + $0x680] sm:$0xff]
  %v4405 = vld [vmem:[%s2 + $0x688] sm:$0xff]
  %v4406 = vld [vmem:[%s2 + $0x690] sm:$0xff]
  %v4407 = vld [vmem:[%s2 + $0x698] sm:$0xff]
  %v4408 = vld [vmem:[%s2 + $0x6a0] sm:$0xff]
  %v4409 = vld [vmem:[%s2 + $0x6a8] sm:$0xff]
  %v4410 = vld [vmem:[%s2 + $0x6b0] sm:$0x1]
  %v4411 = vlaneseq
  %v4412 = vshrl.u32 %v4411, 7
  %v4413 = vsub.s32 0, %v4412
  %v4414 = vrot.slane %v4410, %v4413
  %v4416 = vsel %vm966, %v4396, 0
  %v4419 = vsel %vm966, %v4397, 0
  %v4422 = vsel %vm966, %v4398, 0
  %v4425 = vsel %vm966, %v4399, 0
  %v4428 = vsel %vm966, %v4400, 0
  %v4431 = vsel %vm966, %v4401, 0
  %4433 = vmatprep.subr.mxu0 0.0
  %4434 = vmatpush1.msra.mxu0 %v4402
  %4435 = vmatprep.subr.mxu0 0.0
  %4436 = vmatpush1.msra.mxu0 %v4403
  %4437 = vmatprep.subr.mxu0 0.0
  %4438 = vmatpush1.msra.mxu0 %v4404
  %4439 = vmatprep.subr.mxu0 0.0
  %4440 = vmatpush1.msra.mxu0 %v4405
  %4441 = vmatprep.subr.mxu0 0.0
  %4442 = vmatpush1.msra.mxu0 %v4406
  %4443 = vmatprep.subr.mxu0 0.0
  %4444 = vmatpush1.msra.mxu0 %v4407
  %4445 = vmatprep.subr.mxu0 0.0
  %4446 = vmatpush1.msra.mxu0 %v4408
  %4447 = vmatprep.subr.mxu0 0.0
  %4448 = vmatpush1.msra.mxu0 %v4409
  %4449 = vmatprep.subr.mxu0 0.0
  %4450 = vmatpush1.msra.mxu0 0.0
  %4451 = vmatprep.subr.mxu0 0.0
  %4452 = vmatpush1.msra.mxu0 0.0
  %4453 = vmatprep.subr.mxu0 0.0
  %4454 = vmatpush1.msra.mxu0 0.0
  %4455 = vmatprep.subr.mxu0 0.0
  %4456 = vmatpush1.msra.mxu0 0.0
  %4457 = vmatprep.subr.mxu0 0.0
  %4458 = vmatpush1.msra.mxu0 0.0
  %4459 = vmatprep.subr.mxu0 0.0
  %4460 = vmatpush1.msra.mxu0 0.0
  %4461 = vmatprep.subr.mxu0 0.0
  %4462 = vmatpush1.msra.mxu0 0.0
  %4463 = vmatprep.subr.mxu0 0.0
  %4464 = vmatpush1.msra.mxu0 0.0
  %4465 = vmatprep.subr.mxu0 0.0
  %4466 = vmatpush1.msra.mxu0 0.0
  %4467 = vmatprep.subr.mxu0 0.0
  %4468 = vmatpush1.msra.mxu0 0.0
  %4469 = vmatprep.subr.mxu0 0.0
  %4470 = vmatpush1.msra.mxu0 0.0
  %4471 = vmatprep.subr.mxu0 0.0
  %4472 = vmatpush1.msra.mxu0 0.0
  %4473 = vmatprep.subr.mxu0 0.0
  %4474 = vmatpush1.msra.mxu0 0.0
  %4475 = vmatprep.subr.mxu0 0.0
  %4476 = vmatpush1.msra.mxu0 0.0
  %4477 = vmatprep.subr.mxu0 0.0
  %4478 = vmatpush1.msra.mxu0 0.0
  %4479 = vmatprep.subr.mxu0 0.0
  %4480 = vmatpush1.msra.mxu0 0.0
  %4481 = vmatprep.subr.mxu0 0.0
  %4482 = vmatpush1.msra.mxu0 0.0
  %4483 = vmatprep.subr.mxu0 0.0
  %4484 = vmatpush1.msra.mxu0 0.0
  %4485 = vmatprep.subr.mxu0 0.0
  %4486 = vmatpush1.msra.mxu0 0.0
  %4487 = vmatprep.subr.mxu0 0.0
  %4488 = vmatpush1.msra.mxu0 0.0
  %4489 = vmatprep.subr.mxu0 0.0
  %4490 = vmatpush1.msra.mxu0 0.0
  %4491 = vmatprep.subr.mxu0 0.0
  %4492 = vmatpush1.msra.mxu0 0.0
  %4493 = vmatprep.subr.mxu0 0.0
  %4494 = vmatpush1.msra.mxu0 0.0
  %4495 = vmatprep.subr.mxu0 0.0
  %4496 = vmatpush1.msra.mxu0 0.0
  %4497 = vmatprep.mubr.f32.mxu0 0.0
  %4498 = vmatmul.mubr.f32.gmra.mrb[0].mxu0 %v4416
  %v4499 = vpop.f32.mrb[0].mxu0
  %v4500 = vadd.f32 %v4414, %v4499
  %v4501 = vpop.f32.mrb[0].mxu0
  %4502 = vmatprep.mubr.f32.mxu0 0.0
  %4503 = vmatmul.mubr.f32.gmra.mrb[0].mxu0 %v4419
  %v4504 = vpop.f32.mrb[0].mxu0
  %v4505 = vadd.f32 %v4414, %v4504
  %v4506 = vpop.f32.mrb[0].mxu0
  %4507 = vmatprep.mubr.f32.mxu0 0.0
  %4508 = vmatmul.mubr.f32.gmra.mrb[0].mxu0 %v4422
  %v4509 = vpop.f32.mrb[0].mxu0
  %v4510 = vadd.f32 %v4414, %v4509
  %v4511 = vpop.f32.mrb[0].mxu0
  %4512 = vmatprep.mubr.f32.mxu0 0.0
  %4513 = vmatmul.mubr.f32.gmra.mrb[0].mxu0 %v4425
  %v4514 = vpop.f32.mrb[0].mxu0
  %v4515 = vadd.f32 %v4414, %v4514
  %v4516 = vpop.f32.mrb[0].mxu0
  %4517 = vmatprep.mubr.f32.mxu0 0.0
  %4518 = vmatmul.mubr.f32.gmra.mrb[0].mxu0 %v4428
  %v4519 = vpop.f32.mrb[0].mxu0
  %v4520 = vadd.f32 %v4414, %v4519
  %v4521 = vpop.f32.mrb[0].mxu0
  %4522 = vmatprep.mubr.f32.mxu0 0.0
  %4523 = vmatmul.mubr.f32.gmra.mrb[0].mxu0 %v4431
  %v4524 = vpop.f32.mrb[0].mxu0
  %v4525 = vadd.f32 %v4414, %v4524
  %v4526 = vpop.f32.mrb[0].mxu0
  %4527 = vdwg.mxu0
  %v4528 = vadd.f32 %v4264, %v4500
  %v4529 = vadd.f32 %v4265, %v4505
  %v4530 = vadd.f32 %v4266, %v4510
  %v4531 = vadd.f32 %v4267, %v4515
  %v4532 = vadd.f32 %v4268, %v4520
  %v4533 = vadd.f32 %v4269, %v4525
  %v4534 = vld [vmem:[%s2 + $0x6b8] sm:$0x1]
  %v4535 = vld [vmem:[%s2 + $0x6c0] sm:$0x1]
  %v4536 = vsel %vm966, %v4528, 0.0
  %4537 = vadd.xlane.f32.xlu0 %v4536
  %v4538 = vpop.xlane.xlu0 %4537
  %v4539 = vsel %vm966, %v4529, 0.0
  %4540 = vadd.xlane.f32.xlu0 %v4539
  %v4541 = vpop.xlane.xlu0 %4540
  %v4542 = vsel %vm966, %v4530, 0.0
  %4543 = vadd.xlane.f32.xlu0 %v4542
  %v4544 = vpop.xlane.xlu0 %4543
  %v4545 = vsel %vm966, %v4531, 0.0
  %4546 = vadd.xlane.f32.xlu0 %v4545
  %v4547 = vpop.xlane.xlu0 %4546
  %v4548 = vsel %vm966, %v4532, 0.0
  %4549 = vadd.xlane.f32.xlu0 %v4548
  %v4550 = vpop.xlane.xlu0 %4549
  %v4551 = vsel %vm966, %v4533, 0.0
  %4552 = vadd.xlane.f32.xlu0 %v4551
  %v4553 = vpop.xlane.xlu0 %4552
  %v4554 = vmul.f32 %v4538, %v3092
  %v4555 = vmul.f32 %v4541, %v3092
  %v4556 = vmul.f32 %v4544, %v3092
  %v4557 = vmul.f32 %v4547, %v3092
  %v4558 = vmul.f32 %v4550, %v3092
  %v4559 = vmul.f32 %v4553, %v3092
  %v4560 = vsub.f32 %v4528, %v4554
  %v4561 = vsub.f32 %v4529, %v4555
  %v4562 = vsub.f32 %v4530, %v4556
  %v4563 = vsub.f32 %v4531, %v4557
  %v4564 = vsub.f32 %v4532, %v4558
  %v4565 = vsub.f32 %v4533, %v4559
  %v4566 = vmul.f32 %v4560, %v4560
  %v4567 = vmul.f32 %v4561, %v4561
  %v4568 = vmul.f32 %v4562, %v4562
  %v4569 = vmul.f32 %v4563, %v4563
  %v4570 = vmul.f32 %v4564, %v4564
  %v4571 = vmul.f32 %v4565, %v4565
  %v4572 = vsel %vm966, %v4566, 0.0
  %4573 = vadd.xlane.f32.xlu0 %v4572
  %v4574 = vpop.xlane.xlu0 %4573
  %v4575 = vsel %vm966, %v4567, 0.0
  %4576 = vadd.xlane.f32.xlu0 %v4575
  %v4577 = vpop.xlane.xlu0 %4576
  %v4578 = vsel %vm966, %v4568, 0.0
  %4579 = vadd.xlane.f32.xlu0 %v4578
  %v4580 = vpop.xlane.xlu0 %4579
  %v4581 = vsel %vm966, %v4569, 0.0
  %4582 = vadd.xlane.f32.xlu0 %v4581
  %v4583 = vpop.xlane.xlu0 %4582
  %v4584 = vsel %vm966, %v4570, 0.0
  %4585 = vadd.xlane.f32.xlu0 %v4584
  %v4586 = vpop.xlane.xlu0 %4585
  %v4587 = vsel %vm966, %v4571, 0.0
  %4588 = vadd.xlane.f32.xlu0 %v4587
  %v4589 = vpop.xlane.xlu0 %4588
  %v4590 = vmul.f32 %v4574, %v3092
  %v4591 = vmul.f32 %v4577, %v3092
  %v4592 = vmul.f32 %v4580, %v3092
  %v4593 = vmul.f32 %v4583, %v3092
  %v4594 = vmul.f32 %v4586, %v3092
  %v4595 = vmul.f32 %v4589, %v3092
  %v4596 = vadd.f32 %v4590, 1e-05
  %v4597 = vadd.f32 %v4591, 1e-05
  %v4598 = vadd.f32 %v4592, 1e-05
  %v4599 = vadd.f32 %v4593, 1e-05
  %v4600 = vadd.f32 %v4594, 1e-05
  %v4601 = vadd.f32 %v4595, 1e-05
  %v4602 = vrsqrt.pop %v4596
  %v4603 = vrsqrt.pop %v4597
  %v4604 = vrsqrt.pop %v4598
  %v4605 = vrsqrt.pop %v4599
  %v4606 = vrsqrt.pop %v4600
  %v4607 = vrsqrt.pop %v4601
  %v4608 = vmul.f32 %v4560, %v4602
  %v4609 = vmul.f32 %v4561, %v4603
  %v4610 = vmul.f32 %v4562, %v4604
  %v4611 = vmul.f32 %v4563, %v4605
  %v4612 = vmul.f32 %v4564, %v4606
  %v4613 = vmul.f32 %v4565, %v4607
  %v4614 = vlaneseq
  %v4615 = vshrl.u32 %v4614, 7
  %v4616 = vsub.s32 0, %v4615
  %v4617 = vrot.slane %v4534, %v4616
  %v4618 = vmul.f32 %v4608, %v4617
  %v4619 = vmul.f32 %v4609, %v4617
  %v4620 = vmul.f32 %v4610, %v4617
  %v4621 = vmul.f32 %v4611, %v4617
  %v4622 = vmul.f32 %v4612, %v4617
  %v4623 = vmul.f32 %v4613, %v4617
  %v4624 = vlaneseq
  %v4625 = vshrl.u32 %v4624, 7
  %v4626 = vsub.s32 0, %v4625
  %v4627 = vrot.slane %v4535, %v4626
  %v4628 = vadd.f32 %v4618, %v4627
  %v4629 = vadd.f32 %v4619, %v4627
  %v4630 = vadd.f32 %v4620, %v4627
  %v4631 = vadd.f32 %v4621, %v4627
  %v4632 = vadd.f32 %v4622, %v4627
  %v4633 = vadd.f32 %v4623, %v4627
  %v4634 = vld [vmem:[%s2 + $0x5a0] sm:$0xff]
  %v4635 = vld [vmem:[%s2 + $0x5a8] sm:$0xff]
  %v4636 = vld [vmem:[%s2 + $0x5b0] sm:$0xff]
  %v4637 = vld [vmem:[%s2 + $0x5b8] sm:$0xff]
  %v4638 = vld [vmem:[%s2 + $0x5c0] sm:$0xff]
  %v4639 = vld [vmem:[%s2 + $0x5c8] sm:$0xff]
  %v4640 = vsub.f32 %v4634, 1.0
  %v4641 = vsub.f32 %v4635, 1.0
  %v4642 = vsub.f32 %v4636, 1.0
  %v4643 = vsub.f32 %v4637, 1.0
  %v4644 = vsub.f32 %v4638, 1.0
  %v4645 = vsub.f32 %v4639, 1.0
  %v4646 = vmul.f32 %v4640, 1e+30
  %v4647 = vmul.f32 %v4641, 1e+30
  %v4648 = vmul.f32 %v4642, 1e+30
  %v4649 = vmul.f32 %v4643, 1e+30
  %v4650 = vmul.f32 %v4644, 1e+30
  %v4651 = vmul.f32 %v4645, 1e+30
  %v4652 = vadd.f32 %v4628, %v4646
  %v4653 = vadd.f32 %v4629, %v4647
  %v4654 = vadd.f32 %v4630, %v4648
  %v4655 = vadd.f32 %v4631, %v4649
  %v4656 = vadd.f32 %v4632, %v4650
  %v4657 = vadd.f32 %v4633, %v4651
  %v4658 = vsel %vm966, %v4652, -inf
  %v4659 = vsel %vm966, %v4653, -inf
  %v4660 = vsel %vm966, %v4654, -inf
  %v4661 = vmax.f32 %v4658, %v4659
  %v4662 = vmax.f32 %v4661, %v4660
  %v4663 = vrot.slane %v4662, 4
  %v4664 = vmax.f32 %v4662, %v4663
  %v4665 = vrot.slane %v4664, 2
  %v4666 = vmax.f32 %v4664, %v4665
  %v4667 = vrot.slane %v4666, 1
  %v4668 = vmax.f32 %v4666, %v4667
  %4670 = vrot.lane.b32.xlu0 %v4668, 64
  %v4671 = vpop.permute.xlu0 %4670
  %v4673 = vsel %vm966, %v4628, %v4671
  %v4674 = vsel %vm966, %v4655, -inf
  %v4675 = vsel %vm966, %v4656, -inf
  %v4676 = vsel %vm966, %v4657, -inf
  %v4677 = vmax.f32 %v4674, %v4675
  %v4678 = vmax.f32 %v4677, %v4676
  %v4679 = vrot.slane %v4678, 4
  %v4680 = vmax.f32 %v4678, %v4679
  %v4681 = vrot.slane %v4680, 2
  %v4682 = vmax.f32 %v4680, %v4681
  %v4683 = vrot.slane %v4682, 1
  %v4684 = vmax.f32 %v4682, %v4683
  %4686 = vrot.lane.b32.xlu0 %v4684, 64
  %v4687 = vpop.permute.xlu0 %4686
  %v4689 = vsel %vm966, %v4631, %v4687
  %v4691 = vrot.slane %v4689, 7
  %vm4693 = vcmask 1040384
  %v4694 = vsel %vm4693, %v4673, %v4691
  %v4695 = vld [vmem:[%s1] sm:$0x3]
  %v4696 = vld [vmem:[%s3 + $0x300] sm:$0xff]
  %v4697 = vld [vmem:[%s3 + $0x308] sm:$0xff]
  %v4698 = vld [vmem:[%s3 + $0x310] sm:$0xff]
  %v4699 = vld [vmem:[%s3 + $0x318] sm:$0xff]
  %v4700 = vld [vmem:[%s3 + $0x320] sm:$0xff]
  %v4701 = vld [vmem:[%s3 + $0x328] sm:$0xff]
  %v4702 = vld [vmem:[%s3 + $0x330] sm:$0xff]
  %v4703 = vld [vmem:[%s3 + $0x338] sm:$0xff]
  %v4704 = vld [vmem:[%s3 + $0x340] sm:$0xff]
  %v4705 = vld [vmem:[%s3 + $0x348] sm:$0xff]
  %v4706 = vld [vmem:[%s3 + $0x350] sm:$0xff]
  %v4707 = vld [vmem:[%s3 + $0x358] sm:$0xff]
  %v4708 = vld [vmem:[%s3 + $0x360] sm:$0xff]
  %v4709 = vld [vmem:[%s3 + $0x368] sm:$0xff]
  %v4710 = vld [vmem:[%s3 + $0x370] sm:$0xff]
  %v4711 = vld [vmem:[%s3 + $0x378] sm:$0xff]
  %v4712 = vld [vmem:[%s3 + $0x380] sm:$0xff]
  %v4713 = vld [vmem:[%s3 + $0x388] sm:$0xff]
  %v4714 = vld [vmem:[%s3 + $0x390] sm:$0xff]
  %v4715 = vld [vmem:[%s3 + $0x398] sm:$0xff]
  %v4716 = vld [vmem:[%s3 + $0x3a0] sm:$0xff]
  %v4717 = vld [vmem:[%s3 + $0x3a8] sm:$0xff]
  %v4718 = vld [vmem:[%s3 + $0x3b0] sm:$0xff]
  %v4719 = vld [vmem:[%s3 + $0x3b8] sm:$0xff]
  %v4720 = vld [vmem:[%s3 + $0x3c0] sm:$0xff]
  %v4721 = vld [vmem:[%s3 + $0x3c8] sm:$0xff]
  %v4722 = vld [vmem:[%s3 + $0x3d0] sm:$0xff]
  %v4723 = vld [vmem:[%s3 + $0x3d8] sm:$0xff]
  %v4724 = vld [vmem:[%s3 + $0x3e0] sm:$0xff]
  %v4725 = vld [vmem:[%s3 + $0x3e8] sm:$0xff]
  %v4726 = vld [vmem:[%s3 + $0x3f0] sm:$0xff]
  %v4727 = vld [vmem:[%s3 + $0x3f8] sm:$0xff]
  %s4728 = scalar_lea.vmem %s3, 1152
  %v4729 = vld [vmem:[%s4728] ss:$8 sm:$0x3]
  %v4731 = vlaneseq
  %v4732 = vshrl.u32 %v4731, 7
  %v4733 = vsub.s32 0, %v4732
  %v4734 = vrot.slane %v4729, %v4733
  %v4735 = vlaneseq
  %v4736 = vshrl.u32 %v4735, 7
  %v4737 = vsub.s32 1, %v4736
  %v4738 = vrot.slane %v4729, %v4737
  %4741 = vmatprep.subr.mxu0 %v4697
  %4742 = vmatpush1.msra.mxu0 %v4696
  %4743 = vmatprep.subr.mxu0 %v4699
  %4744 = vmatpush1.msra.mxu0 %v4698
  %4745 = vmatprep.subr.mxu0 %v4701
  %4746 = vmatpush1.msra.mxu0 %v4700
  %4747 = vmatprep.subr.mxu0 %v4703
  %4748 = vmatpush1.msra.mxu0 %v4702
  %4749 = vmatprep.subr.mxu0 %v4705
  %4750 = vmatpush1.msra.mxu0 %v4704
  %4751 = vmatprep.subr.mxu0 %v4707
  %4752 = vmatpush1.msra.mxu0 %v4706
  %4753 = vmatprep.subr.mxu0 %v4709
  %4754 = vmatpush1.msra.mxu0 %v4708
  %4755 = vmatprep.subr.mxu0 %v4711
  %4756 = vmatpush1.msra.mxu0 %v4710
  %4757 = vmatprep.subr.mxu0 %v4713
  %4758 = vmatpush1.msra.mxu0 %v4712
  %4759 = vmatprep.subr.mxu0 %v4715
  %4760 = vmatpush1.msra.mxu0 %v4714
  %4761 = vmatprep.subr.mxu0 %v4717
  %4762 = vmatpush1.msra.mxu0 %v4716
  %4763 = vmatprep.subr.mxu0 %v4719
  %4764 = vmatpush1.msra.mxu0 %v4718
  %4765 = vmatprep.subr.mxu0 %v4721
  %4766 = vmatpush1.msra.mxu0 %v4720
  %4767 = vmatprep.subr.mxu0 %v4723
  %4768 = vmatpush1.msra.mxu0 %v4722
  %4769 = vmatprep.subr.mxu0 %v4725
  %4770 = vmatpush1.msra.mxu0 %v4724
  %4771 = vmatprep.subr.mxu0 %v4727
  %4772 = vmatpush1.msra.mxu0 %v4726
  %4773 = vmatprep.subr.mxu0 0.0
  %4774 = vmatpush1.msra.mxu0 0.0
  %4775 = vmatprep.subr.mxu0 0.0
  %4776 = vmatpush1.msra.mxu0 0.0
  %4777 = vmatprep.subr.mxu0 0.0
  %4778 = vmatpush1.msra.mxu0 0.0
  %4779 = vmatprep.subr.mxu0 0.0
  %4780 = vmatpush1.msra.mxu0 0.0
  %4781 = vmatprep.subr.mxu0 0.0
  %4782 = vmatpush1.msra.mxu0 0.0
  %4783 = vmatprep.subr.mxu0 0.0
  %4784 = vmatpush1.msra.mxu0 0.0
  %4785 = vmatprep.subr.mxu0 0.0
  %4786 = vmatpush1.msra.mxu0 0.0
  %4787 = vmatprep.subr.mxu0 0.0
  %4788 = vmatpush1.msra.mxu0 0.0
  %4789 = vmatprep.subr.mxu0 0.0
  %4790 = vmatpush1.msra.mxu0 0.0
  %4791 = vmatprep.subr.mxu0 0.0
  %4792 = vmatpush1.msra.mxu0 0.0
  %4793 = vmatprep.subr.mxu0 0.0
  %4794 = vmatpush1.msra.mxu0 0.0
  %4795 = vmatprep.subr.mxu0 0.0
  %4796 = vmatpush1.msra.mxu0 0.0
  %4797 = vmatprep.subr.mxu0 0.0
  %4798 = vmatpush1.msra.mxu0 0.0
  %4799 = vmatprep.subr.mxu0 0.0
  %4800 = vmatpush1.msra.mxu0 0.0
  %4801 = vmatprep.subr.mxu0 0.0
  %4802 = vmatpush1.msra.mxu0 0.0
  %4803 = vmatprep.subr.mxu0 0.0
  %4804 = vmatpush1.msra.mxu0 0.0
  %4805 = vmatprep.mubr.f32.mxu0 0.0
  %4806 = vmatmul.mubr.f32.gmra.mrb[0].mxu0 %v4694
  %v4807 = vpop.f32.mrb[0].mxu0
  %v4808 = vadd.f32 %v4734, %v4807
  %v4809 = vpop.f32.mrb[0].mxu0
  %v4810 = vadd.f32 %v4738, %v4809
  %4811 = vdwg.mxu0
  %v4812 = vld [vmem:[%s3 + $0x400] sm:$0xff]
  %v4813 = vld [vmem:[%s3 + $0x408] sm:$0xff]
  %v4814 = vld [vmem:[%s3 + $0x410] sm:$0xff]
  %v4815 = vld [vmem:[%s3 + $0x418] sm:$0xff]
  %v4816 = vld [vmem:[%s3 + $0x420] sm:$0xff]
  %v4817 = vld [vmem:[%s3 + $0x428] sm:$0xff]
  %v4818 = vld [vmem:[%s3 + $0x430] sm:$0xff]
  %v4819 = vld [vmem:[%s3 + $0x438] sm:$0xff]
  %v4820 = vld [vmem:[%s3 + $0x440] sm:$0xff]
  %v4821 = vld [vmem:[%s3 + $0x448] sm:$0xff]
  %v4822 = vld [vmem:[%s3 + $0x450] sm:$0xff]
  %v4823 = vld [vmem:[%s3 + $0x458] sm:$0xff]
  %v4824 = vld [vmem:[%s3 + $0x460] sm:$0xff]
  %v4825 = vld [vmem:[%s3 + $0x468] sm:$0xff]
  %v4826 = vld [vmem:[%s3 + $0x470] sm:$0xff]
  %v4827 = vld [vmem:[%s3 + $0x478] sm:$0xff]
  %s4828 = scalar_lea.vmem %s3, 1168
  %v4829 = vld [vmem:[%s4828] ss:$8 sm:$0x3]
  %v4831 = vlaneseq
  %v4832 = vshrl.u32 %v4831, 7
  %v4833 = vsub.s32 0, %v4832
  %v4834 = vrot.slane %v4829, %v4833
  %v4835 = vlaneseq
  %v4836 = vshrl.u32 %v4835, 7
  %v4837 = vsub.s32 1, %v4836
  %v4838 = vrot.slane %v4829, %v4837
  %4842 = vrot.lane.b32.xlu0 %v4695, 64
  %v4843 = vpop.permute.xlu0 %4842
  %v4844 = vsel %vm966, %v4843, 0
  %4846 = vmatprep.subr.mxu0 %v4813
  %4847 = vmatpush1.msra.mxu0 %v4812
  %4848 = vmatprep.subr.mxu0 %v4815
  %4849 = vmatpush1.msra.mxu0 %v4814
  %4850 = vmatprep.subr.mxu0 %v4817
  %4851 = vmatpush1.msra.mxu0 %v4816
  %4852 = vmatprep.subr.mxu0 %v4819
  %4853 = vmatpush1.msra.mxu0 %v4818
  %4854 = vmatprep.subr.mxu0 %v4821
  %4855 = vmatpush1.msra.mxu0 %v4820
  %4856 = vmatprep.subr.mxu0 %v4823
  %4857 = vmatpush1.msra.mxu0 %v4822
  %4858 = vmatprep.subr.mxu0 %v4825
  %4859 = vmatpush1.msra.mxu0 %v4824
  %4860 = vmatprep.subr.mxu0 %v4827
  %4861 = vmatpush1.msra.mxu0 %v4826
  %4862 = vmatprep.subr.mxu0 0.0
  %4863 = vmatpush1.msra.mxu0 0.0
  %4864 = vmatprep.subr.mxu0 0.0
  %4865 = vmatpush1.msra.mxu0 0.0
  %4866 = vmatprep.subr.mxu0 0.0
  %4867 = vmatpush1.msra.mxu0 0.0
  %4868 = vmatprep.subr.mxu0 0.0
  %4869 = vmatpush1.msra.mxu0 0.0
  %4870 = vmatprep.subr.mxu0 0.0
  %4871 = vmatpush1.msra.mxu0 0.0
  %4872 = vmatprep.subr.mxu0 0.0
  %4873 = vmatpush1.msra.mxu0 0.0
  %4874 = vmatprep.subr.mxu0 0.0
  %4875 = vmatpush1.msra.mxu0 0.0
  %4876 = vmatprep.subr.mxu0 0.0
  %4877 = vmatpush1.msra.mxu0 0.0
  %4878 = vmatprep.subr.mxu0 0.0
  %4879 = vmatpush1.msra.mxu0 0.0
  %4880 = vmatprep.subr.mxu0 0.0
  %4881 = vmatpush1.msra.mxu0 0.0
  %4882 = vmatprep.subr.mxu0 0.0
  %4883 = vmatpush1.msra.mxu0 0.0
  %4884 = vmatprep.subr.mxu0 0.0
  %4885 = vmatpush1.msra.mxu0 0.0
  %4886 = vmatprep.subr.mxu0 0.0
  %4887 = vmatpush1.msra.mxu0 0.0
  %4888 = vmatprep.subr.mxu0 0.0
  %4889 = vmatpush1.msra.mxu0 0.0
  %4890 = vmatprep.subr.mxu0 0.0
  %4891 = vmatpush1.msra.mxu0 0.0
  %4892 = vmatprep.subr.mxu0 0.0
  %4893 = vmatpush1.msra.mxu0 0.0
  %4894 = vmatprep.subr.mxu0 0.0
  %4895 = vmatpush1.msra.mxu0 0.0
  %4896 = vmatprep.subr.mxu0 0.0
  %4897 = vmatpush1.msra.mxu0 0.0
  %4898 = vmatprep.subr.mxu0 0.0
  %4899 = vmatpush1.msra.mxu0 0.0
  %4900 = vmatprep.subr.mxu0 0.0
  %4901 = vmatpush1.msra.mxu0 0.0
  %4902 = vmatprep.subr.mxu0 0.0
  %4903 = vmatpush1.msra.mxu0 0.0
  %4904 = vmatprep.subr.mxu0 0.0
  %4905 = vmatpush1.msra.mxu0 0.0
  %4906 = vmatprep.subr.mxu0 0.0
  %4907 = vmatpush1.msra.mxu0 0.0
  %4908 = vmatprep.subr.mxu0 0.0
  %4909 = vmatpush1.msra.mxu0 0.0
  %4910 = vmatprep.mubr.f32.mxu0 0.0
  %4911 = vmatmul.mubr.f32.gmra.mrb[0].mxu0 %v4844
  %v4912 = vpop.f32.mrb[0].mxu0
  %v4913 = vadd.f32 %v4834, %v4912
  %v4914 = vpop.f32.mrb[0].mxu0
  %v4915 = vadd.f32 %v4838, %v4914
  %4916 = vdwg.mxu0
  %v4917 = vadd.f32 %v4808, %v4913
  %v4918 = vxor.u32 %v4917, 2147483648
  %v4919 = vmul.f32 %v4918, 1.442695
  %v4920 = vpow.pop %v4919
  %v4921 = vadd.f32 %v4920, 1.0
  %v4922 = vrcp.pop %v4921
  %v4923 = vmul.f32 1.0, %v4922
  %v4924 = vmul.f32 %v4923, %v4915
  %v4925 = vadd.f32 %v4810, %v4924
  %v4926 = vtanh.pop %v4925
  %v4927 = vsub.f32 1.0, %v4923
  %4929 = vrot.lane.b32.xlu0 %v4926, 64
  %v4930 = vpop.permute.xlu0 %4929
  %v4932 = vmul.f32 %v4927, %v4930
  %v4933 = vmul.f32 %v4923, %v4695
  %v4934 = vadd.f32 %v4932, %v4933
  %4936 = vrot.lane.b32.xlu0 %v4934, 64
  %v4937 = vpop.permute.xlu0 %4936
  %vm4939 = vcmask 517120
  %4940 = vst.msk [vmem:[%s4] sm:$0x3] %vm4939, %v4937
  // Predicated region
  $region18: #{loco_transformer_lstm_forward.1} parent=0 // pred_check
    _
  $region19: #{loco_transformer_lstm_forward.1} parent=0 // pred_check_branch
    %4942 = sbr.rel (0) target = $region21
  $region20: #{loco_transformer_lstm_forward.1} parent=0 // pred_region
    _
  $region21: #{loco_transformer_lstm_forward.1} parent=0 // pred_fallthru
    _
  // Predicated region
  $region22: #{loco_transformer_lstm_forward.1} parent=0 // pred_check
    _
  $region23: #{loco_transformer_lstm_forward.1} parent=0 // pred_check_branch
    %4944 = sbr.rel (0) target = $region25
  $region24: #{loco_transformer_lstm_forward.1} parent=0 // pred_region
    _
  $region25: #{loco_transformer_lstm_forward.1} parent=0 // pred_fallthru
    _

</llo_original>
